<compile_context>
chip_gen: v6e
topology: v6e:2x2x1
jax: 0.10.0
libtpu: 0.0.40
codegen_flags: <defaults>
</compile_context>

<pallas_src>
import functools

import jax
import jax.numpy as jnp
from jax.experimental import pallas as pl
from jax.experimental.pallas import tpu as pltpu


# ----------------------------- kernel helpers ------------------------------

def _layernorm(x, g, b, eps=1e-5):
    # x: (..., D); g, b: (1, D) broadcast. PyTorch LayerNorm: biased var, eps=1e-5.
    mu = jnp.mean(x, axis=-1, keepdims=True)
    var = jnp.mean(jnp.square(x - mu), axis=-1, keepdims=True)
    return (x - mu) * jax.lax.rsqrt(var + eps) * g + b


def _gelu(x, approx=False):
    if approx:
        # tanh approximation (EUP path); changes numerics vs nn.GELU default.
        c = 0.7978845608028654  # sqrt(2/pi)
        return 0.5 * x * (1.0 + jnp.tanh(c * (x + 0.044715 * x * x * x)))
    # nn.GELU() default (approximate='none'): exact erf formulation.
    return 0.5 * x * (1.0 + jax.lax.erf(x * 0.7071067811865476))


# ------------------------------- TBlock kernel -----------------------------

def tblock_kernel(x_ref, ln1g_ref, ln1b_ref, wqkv_ref, wout_ref, bout_ref,
                  ln2g_ref, ln2b_ref, w1_ref, b1_ref, w2_ref, b2_ref,
                  o_ref, attn_scratch, *,
                  heads, dim_head, n_valid, mlp_chunk, compute_dtype,
                  approx_recip, gelu_approx):
    Bt, Np, D = x_ref.shape
    inner = heads * dim_head
    rows = Bt * Np
    cd = compute_dtype

    x = x_ref[...]                                        # (Bt, Np, D) f32

    # --------- x = Attention(LayerNorm(x)) + x ---------
    xn = _layernorm(x, ln1g_ref[...], ln1b_ref[...])      # f32
    xn2d = xn.reshape(rows, D).astype(cd)                 # layout-free (Np % 8 == 0)
    # Single wide QKV projection (attention scale already folded into Q cols).
    qkv = jnp.dot(xn2d, wqkv_ref[...],
                  preferred_element_type=jnp.float32)     # (rows, 3*inner) f32

    if n_valid < Np:
        # Mask padded key columns before softmax (static at trace time).
        key_bias = jnp.where(
            jax.lax.broadcasted_iota(jnp.int32, (1, Np), 1) < n_valid,
            0.0, -1e30).astype(jnp.float32)               # (1, Np)
    else:
        key_bias = None

    # Static unrolled head loop; each head's output is stored straight into a
    # compute-dtype VMEM scratch slice so its big intermediates die here.
    for h in range(heads):
        lo = h * dim_head
        q = qkv[:, lo:lo + dim_head].reshape(Bt, Np, dim_head).astype(cd)
        k = qkv[:, inner + lo:inner + lo + dim_head].reshape(Bt, Np, dim_head).astype(cd)
        v = qkv[:, 2 * inner + lo:2 * inner + lo + dim_head].reshape(Bt, Np, dim_head).astype(cd)

        dots = jnp.einsum('bnd,bmd->bnm', q, k,
                          preferred_element_type=jnp.float32)    # (Bt, Np, Np) f32
        if key_bias is not None:
            dots = dots + key_bias
        dots = dots - jnp.max(dots, axis=-1, keepdims=True)
        e = jnp.exp(dots)
        attn = e * pl.reciprocal(jnp.sum(e, axis=-1, keepdims=True),
                                 approx=approx_recip)
        o_h = jnp.einsum('bnm,bmd->bnd', attn.astype(cd), v,
                         preferred_element_type=jnp.float32)     # (Bt, Np, Dh)
        attn_scratch[:, lo:lo + dim_head] = o_h.reshape(rows, dim_head).astype(cd)

    attn_out = jnp.dot(attn_scratch[...], wout_ref[...],
                       preferred_element_type=jnp.float32) + bout_ref[...]
    x = x + attn_out.reshape(Bt, Np, D)

    # --------- x = FeedForward(LayerNorm(x)) + x ---------
    xn2 = _layernorm(x, ln2g_ref[...], ln2b_ref[...])
    xn2d = xn2.reshape(rows, D).astype(cd)
    mlp_dim = w1_ref.shape[1]
    # K-tile over mlp_dim: only one (rows, mlp_chunk) hidden slice live at once.
    ff = jnp.zeros((rows, D), jnp.float32)
    for c0 in range(0, mlp_dim, mlp_chunk):
        h1 = jnp.dot(xn2d, w1_ref[:, c0:c0 + mlp_chunk],
                     preferred_element_type=jnp.float32)
        h1 = _gelu(h1 + b1_ref[:, c0:c0 + mlp_chunk], approx=gelu_approx)
        ff = ff + jnp.dot(h1.astype(cd), w2_ref[c0:c0 + mlp_chunk, :],
                          preferred_element_type=jnp.float32)
    ff = ff + b2_ref[...]
    o_ref[...] = x + ff.reshape(Bt, Np, D)


# ------------------------------- wrapper ------------------------------------

def prepare_weights(p, *, heads, dim_head, compute_dtype=jnp.bfloat16):
    """One-time weight preparation (hoisted out of the per-forward path):
    fold 1/sqrt(dim_head) into the Q columns of w_qkv and cast matmul weights
    to the compute dtype. LayerNorm params and biases stay f32."""
    inner = heads * dim_head
    scale = float(dim_head) ** (-0.5)
    w_qkv = jnp.concatenate(
        [p['w_qkv'][:, :inner] * scale, p['w_qkv'][:, inner:]], axis=1)
    cd = compute_dtype
    return (
        p['ln1_g'], p['ln1_b'],
        w_qkv.astype(cd), p['w_out'].astype(cd), p['b_out'],
        p['ln2_g'], p['ln2_b'],
        p['w1'].astype(cd), p['b1'], p['w2'].astype(cd), p['b2'],
    )


def _physical_vmem_bytes():
    try:
        info = pltpu.get_tpu_info()
        for name in ("vmem_capacity_bytes", "vmem_bytes", "vmem_size_bytes"):
            v = getattr(info, name, None)
            if v:
                return int(v)
    except Exception:
        pass
    return 128 * 1024 * 1024


def tblock_apply(x, params=None, *, heads, dim_head,
                 compute_dtype=jnp.bfloat16, batch_tile=None,
                 prepared_weights=None, mlp_chunk=None, n_pad_multiple=8,
                 single_buffer_weights=True, approx_recip=None,
                 gelu_approx=False):
    B, N, D = x.shape
    inner = heads * dim_head
    cd = compute_dtype

    if prepared_weights is None:
        assert params is not None
        prepared_weights = prepare_weights(params, heads=heads,
                                           dim_head=dim_head, compute_dtype=cd)
    weights = list(prepared_weights)
    mlp_dim = weights[7].shape[1]  # w1

    if approx_recip is None:
        # EUP vrcp for the softmax denom on the bf16 path; exact on f32.
        approx_recip = jnp.dtype(cd) != jnp.dtype(jnp.float32)

    # Pad tokens to a sublane multiple so in-kernel reshapes are layout-free
    # (use n_pad_multiple=128 for fully lane-dense score tiles if the extra
    # attention FLOPs are acceptable).
    N_pad = ((N + n_pad_multiple - 1) // n_pad_multiple) * n_pad_multiple
    x_in = jnp.pad(x, ((0, 0), (0, N_pad - N), (0, 0))) if N_pad != N else x

    # Batch tile: default keeps >= 2 grid steps (feeds both v7x TensorCores)
    # and caps the flattened row count so intermediates fit VMEM.
    if batch_tile is None:
        Bt = B
        if B >= 2:
            for d in range(B // 2, 0, -1):
                if B % d == 0:
                    Bt = d
                    break
        while Bt % 2 == 0 and Bt * N_pad > 2048:
            Bt //= 2
    else:
        Bt = batch_tile
    assert B % Bt == 0, "batch must be divisible by batch_tile"

    if mlp_chunk is None:
        mlp_chunk = mlp_dim
        if mlp_dim > 512:
            for c in (512, 384, 256, 128):
                if mlp_dim % c == 0:
                    mlp_chunk = c
                    break
    assert mlp_dim % mlp_chunk == 0

    kernel = functools.partial(
        tblock_kernel, heads=heads, dim_head=dim_head, n_valid=N,
        mlp_chunk=mlp_chunk, compute_dtype=cd, approx_recip=approx_recip,
        gelu_approx=gelu_approx)

    # VMEM budget estimate: resident weights (x1 single-buffered / x2 default),
    # double-buffered activation tiles, in-kernel intermediates, headroom;
    # clamped to the physical per-core capacity.
    rows = Bt * N_pad
    itemsize = jnp.dtype(cd).itemsize
    weight_bytes = sum(int(w.size) * w.dtype.itemsize for w in weights)
    act_tile = rows * D * 4
    inter = (rows * 3 * inner * 4            # qkv (f32)
             + rows * inner * itemsize       # attention scratch
             + 2 * Bt * N_pad * N_pad * 4    # dots / exp (one head)
             + rows * (mlp_chunk + 2 * D) * 4)
    cap = _physical_vmem_bytes()

    def _run(single_buffer):
        wfactor = 1 if single_buffer else 2
        est = wfactor * weight_bytes + 4 * act_tile + inter + (8 << 20)
        vmem_limit = int(min(max(est, 32 << 20), int(0.85 * cap)))

        def weight_spec(w):
            nd = w.ndim
            idx = lambda b, _nd=nd: (0,) * _nd
            if single_buffer:
                # Constant index_map => double-buffering is pure VMEM waste.
                return pl.BlockSpec(w.shape, idx, pipeline_mode=pl.Buffered(1))
            return pl.BlockSpec(w.shape, idx)

        grid_spec = pltpu.PrefetchScalarGridSpec(
            num_scalar_prefetch=0,
            grid=(B // Bt,),
            in_specs=[pl.BlockSpec((Bt, N_pad, D), lambda b: (b, 0, 0))]
                     + [weight_spec(w) for w in weights],
            out_specs=pl.BlockSpec((Bt, N_pad, D), lambda b: (b, 0, 0)),
            scratch_shapes=[pltpu.VMEM((rows, inner), cd)],
        )
        return pl.pallas_call(
            kernel,
            out_shape=jax.ShapeDtypeStruct((B, N_pad, D), jnp.float32),
            grid_spec=grid_spec,
            compiler_params=pltpu.CompilerParams(
                dimension_semantics=("parallel",),
                vmem_limit_bytes=vmem_limit,
            ),
        )(x_in, *weights)

    if single_buffer_weights:
        try:
            out = _run(True)
        except Exception:
            # pipeline_mode=pl.Buffered(1) unsupported here -> default specs.
            out = _run(False)
    else:
        out = _run(False)

    return out[:, :N, :] if N_pad != N else out


# --------------------------- parameter init --------------------------------

def init_params(key, dim, heads, dim_head, mlp_dim):
    inner = heads * dim_head
    keys = jax.random.split(key, 10)
    return {
        'ln1_g': 1.0 + 0.1 * jax.random.normal(keys[6], (1, dim), jnp.float32),
        'ln1_b': 0.1 * jax.random.normal(keys[7], (1, dim), jnp.float32),
        'w_qkv': 0.05 * jax.random.normal(keys[0], (dim, inner * 3), jnp.float32),
        'w_out': 0.05 * jax.random.normal(keys[1], (inner, dim), jnp.float32),
        'b_out': 0.05 * jax.random.normal(keys[2], (1, dim), jnp.float32),
        'ln2_g': 1.0 + 0.1 * jax.random.normal(keys[8], (1, dim), jnp.float32),
        'ln2_b': 0.1 * jax.random.normal(keys[9], (1, dim), jnp.float32),
        'w1': 0.05 * jax.random.normal(keys[3], (dim, mlp_dim), jnp.float32),
        'b1': 0.05 * jax.random.normal(keys[4], (1, mlp_dim), jnp.float32),
        'w2': 0.05 * jax.random.normal(keys[5], (mlp_dim, dim), jnp.float32),
        'b2': jnp.zeros((1, dim), jnp.float32),
    }


# --------------------------- pure-JAX reference -----------------------------

def _ref_block(x, p, heads, dim_head):
    B, N, D = x.shape
    inner = heads * dim_head
    scale = float(dim_head) ** (-0.5)

    def ln(y, g, b):
        mu = jnp.mean(y, axis=-1, keepdims=True)
        var = jnp.mean((y - mu) ** 2, axis=-1, keepdims=True)
        return (y - mu) / jnp.sqrt(var + 1e-5) * g[0] + b[0]

    xn = ln(x, p['ln1_g'], p['ln1_b'])
    qkv = xn @ p['w_qkv']
    q, k, v = jnp.split(qkv, 3, axis=-1)

    def heads_view(t):
        return jnp.transpose(t.reshape(B, N, heads, dim_head), (0, 2, 1, 3))

    q, k, v = map(heads_view, (q, k, v))
    dots = jnp.einsum('bhnd,bhmd->bhnm', q, k) * scale
    attn = jax.nn.softmax(dots, axis=-1)
    out = jnp.einsum('bhnm,bhmd->bhnd', attn, v)
    out = jnp.transpose(out, (0, 2, 1, 3)).reshape(B, N, inner)
    x = x + out @ p['w_out'] + p['b_out'][0]

    xn2 = ln(x, p['ln2_g'], p['ln2_b'])
    h = xn2 @ p['w1'] + p['b1'][0]
    h = 0.5 * h * (1.0 + jax.lax.erf(h * 0.7071067811865476))
    return x + h @ p['w2'] + p['b2'][0]


# ------------------------------------ main ----------------------------------

if __name__ == "__main__":
    # Small shapes consistent with TBlock(dim, heads, dim_head, mlp_dim).
    B, N = 4, 8
    dim, heads, dim_head, mlp_dim = 32, 4, 8, 64

    key = jax.random.PRNGKey(0)
    kx, kp, kx2 = jax.random.split(key, 3)
    x = jax.random.normal(kx, (B, N, dim), jnp.float32)
    params = init_params(kp, dim, heads, dim_head, mlp_dim)

    y_ref = _ref_block(x, params, heads, dim_head)

    # f32 path: matches the PyTorch-exact reference tightly.
    w_f32 = prepare_weights(params, heads=heads, dim_head=dim_head,
                            compute_dtype=jnp.float32)
    y = tblock_apply(x, heads=heads, dim_head=dim_head,
                     compute_dtype=jnp.float32, prepared_weights=w_f32)
    y = jax.block_until_ready(y)
    assert y.shape == (B, N, dim)
    assert jnp.allclose(y, y_ref, atol=1e-4, rtol=1e-4), "f32 mismatch vs reference"

    # bf16 matmul-operand / f32-accumulate path (default MXU fast path).
    w_bf16 = prepare_weights(params, heads=heads, dim_head=dim_head,
                             compute_dtype=jnp.bfloat16)
    y_bf16 = tblock_apply(x, heads=heads, dim_head=dim_head,
                          compute_dtype=jnp.bfloat16, prepared_weights=w_bf16)
    y_bf16 = jax.block_until_ready(y_bf16)
    assert jnp.allclose(y_bf16, y_ref, atol=3e-2, rtol=3e-2), \
        "bf16 mismatch vs reference"

    # Padded-token path (N not a multiple of 8): exercises key-column masking.
    N2 = 6
    x2 = jax.random.normal(kx2, (B, N2, dim), jnp.float32)
    y2_ref = _ref_block(x2, params, heads, dim_head)
    y2 = tblock_apply(x2, heads=heads, dim_head=dim_head,
                      compute_dtype=jnp.float32, prepared_weights=w_f32)
    y2 = jax.block_until_ready(y2)
    assert y2.shape == (B, N2, dim)
    assert jnp.allclose(y2, y2_ref, atol=1e-4, rtol=1e-4), \
        "padded-N mismatch vs reference"

    print("KERNEL_OK")
</pallas_src>

<mosaic_0001>
module attributes {stable_mosaic.version = 11 : i64} {
  func.func @tblock_kernel(%arg0: i32, %arg1: memref<2x8x32xf32, #tpu.memory_space<vmem>>, %arg2: memref<1x32xf32, #tpu.memory_space<vmem>>, %arg3: memref<1x32xf32, #tpu.memory_space<vmem>>, %arg4: memref<32x96xf32, #tpu.memory_space<vmem>>, %arg5: memref<32x32xf32, #tpu.memory_space<vmem>>, %arg6: memref<1x32xf32, #tpu.memory_space<vmem>>, %arg7: memref<1x32xf32, #tpu.memory_space<vmem>>, %arg8: memref<1x32xf32, #tpu.memory_space<vmem>>, %arg9: memref<32x64xf32, #tpu.memory_space<vmem>>, %arg10: memref<1x64xf32, #tpu.memory_space<vmem>>, %arg11: memref<64x32xf32, #tpu.memory_space<vmem>>, %arg12: memref<1x32xf32, #tpu.memory_space<vmem>>, %arg13: memref<2x8x32xf32, #tpu.memory_space<vmem>>, %arg14: memref<16x32xf32, #tpu.memory_space<vmem>>) attributes {dimension_semantics = [#tpu.dimension_semantics<parallel>], iteration_bounds = array<i64: 2>, scalar_prefetch = 0 : i64, scratch_operands = 1 : i64, tpu.core_type = #tpu.core_type<tc>, window_params = [{transform_indices = @transform_0, window_bounds = array<i64: 2, 8, 32>}, {pipeline_mode = #tpu.pipeline_mode<synchronous>, transform_indices = @transform_1, window_bounds = array<i64: 1, 32>}, {pipeline_mode = #tpu.pipeline_mode<synchronous>, transform_indices = @transform_2, window_bounds = array<i64: 1, 32>}, {pipeline_mode = #tpu.pipeline_mode<synchronous>, transform_indices = @transform_3, window_bounds = array<i64: 32, 96>}, {pipeline_mode = #tpu.pipeline_mode<synchronous>, transform_indices = @transform_4, window_bounds = array<i64: 32, 32>}, {pipeline_mode = #tpu.pipeline_mode<synchronous>, transform_indices = @transform_5, window_bounds = array<i64: 1, 32>}, {pipeline_mode = #tpu.pipeline_mode<synchronous>, transform_indices = @transform_6, window_bounds = array<i64: 1, 32>}, {pipeline_mode = #tpu.pipeline_mode<synchronous>, transform_indices = @transform_7, window_bounds = array<i64: 1, 32>}, {pipeline_mode = #tpu.pipeline_mode<synchronous>, transform_indices = @transform_8, window_bounds = array<i64: 32, 64>}, {pipeline_mode = #tpu.pipeline_mode<synchronous>, transform_indices = @transform_9, window_bounds = array<i64: 1, 64>}, {pipeline_mode = #tpu.pipeline_mode<synchronous>, transform_indices = @transform_10, window_bounds = array<i64: 64, 32>}, {pipeline_mode = #tpu.pipeline_mode<synchronous>, transform_indices = @transform_11, window_bounds = array<i64: 1, 32>}, {transform_indices = @transform_12, window_bounds = array<i64: 2, 8, 32>}]} {
    %c0 = arith.constant 0 : index
    %c0_0 = arith.constant 0 : index
    %c0_1 = arith.constant 0 : index
    %0 = vector.load %arg1[%c0, %c0_0, %c0_1] : memref<2x8x32xf32, #tpu.memory_space<vmem>>, vector<2x8x32xf32>
    %c0_2 = arith.constant 0 : index
    %c0_3 = arith.constant 0 : index
    %1 = vector.load %arg2[%c0_2, %c0_3] : memref<1x32xf32, #tpu.memory_space<vmem>>, vector<1x32xf32>
    %c0_4 = arith.constant 0 : index
    %c0_5 = arith.constant 0 : index
    %2 = vector.load %arg3[%c0_4, %c0_5] : memref<1x32xf32, #tpu.memory_space<vmem>>, vector<1x32xf32>
    %cst = arith.constant dense<0.000000e+00> : vector<2x8xf32>
    %3 = vector.multi_reduction <add>, %0, %cst [2] : vector<2x8x32xf32> to vector<2x8xf32>
    %4 = vector.shape_cast %3 : vector<2x8xf32> to vector<2x8x1xf32>
    %cst_6 = arith.constant 3.200000e+01 : f32
    %5 = vector.broadcast %cst_6 : f32 to vector<2x8x1xf32>
    %6 = arith.divf %4, %5 : vector<2x8x1xf32>
    %7 = vector.broadcast %6 : vector<2x8x1xf32> to vector<2x8x32xf32>
    %8 = arith.subf %0, %7 : vector<2x8x32xf32>
    %9 = arith.mulf %8, %8 : vector<2x8x32xf32>
    %cst_7 = arith.constant dense<0.000000e+00> : vector<2x8xf32>
    %10 = vector.multi_reduction <add>, %9, %cst_7 [2] : vector<2x8x32xf32> to vector<2x8xf32>
    %11 = vector.shape_cast %10 : vector<2x8xf32> to vector<2x8x1xf32>
    %cst_8 = arith.constant 3.200000e+01 : f32
    %12 = vector.broadcast %cst_8 : f32 to vector<2x8x1xf32>
    %13 = arith.divf %11, %12 : vector<2x8x1xf32>
    %14 = vector.broadcast %6 : vector<2x8x1xf32> to vector<2x8x32xf32>
    %15 = arith.subf %0, %14 : vector<2x8x32xf32>
    %cst_9 = arith.constant 9.99999974E-6 : f32
    %16 = vector.broadcast %cst_9 : f32 to vector<2x8x1xf32>
    %17 = arith.addf %13, %16 : vector<2x8x1xf32>
    %18 = math.rsqrt %17 : vector<2x8x1xf32>
    %19 = vector.broadcast %18 : vector<2x8x1xf32> to vector<2x8x32xf32>
    %20 = arith.mulf %15, %19 : vector<2x8x32xf32>
    %21 = vector.shape_cast %1 : vector<1x32xf32> to vector<1x1x32xf32>
    %22 = vector.broadcast %21 : vector<1x1x32xf32> to vector<2x8x32xf32>
    %23 = arith.mulf %20, %22 : vector<2x8x32xf32>
    %24 = vector.shape_cast %2 : vector<1x32xf32> to vector<1x1x32xf32>
    %25 = vector.broadcast %24 : vector<1x1x32xf32> to vector<2x8x32xf32>
    %26 = arith.addf %23, %25 : vector<2x8x32xf32>
    %27 = vector.shape_cast %26 : vector<2x8x32xf32> to vector<16x32xf32>
    %c0_10 = arith.constant 0 : index
    %c0_11 = arith.constant 0 : index
    %28 = vector.load %arg4[%c0_10, %c0_11] : memref<32x96xf32, #tpu.memory_space<vmem>>, vector<32x96xf32>
    %cst_12 = arith.constant dense<0.000000e+00> : vector<16x96xf32>
    %29 = tpu.matmul %27, %28, %cst_12 {dimension_numbers = #tpu.dot_dimension_numbers<[1], [0], [0], [1], [0, 0, 1, 1], [], []>} : vector<16x32xf32>, vector<32x96xf32>, vector<16x96xf32> -> vector<16x96xf32>
    %30 = vector.extract_strided_slice %29 {offsets = [0, 0], sizes = [16, 8], strides = [1, 1]} : vector<16x96xf32> to vector<16x8xf32>
    %31 = vector.shape_cast %30 : vector<16x8xf32> to vector<2x8x8xf32>
    %32 = vector.extract_strided_slice %29 {offsets = [0, 32], sizes = [16, 8], strides = [1, 1]} : vector<16x96xf32> to vector<16x8xf32>
    %33 = vector.shape_cast %32 : vector<16x8xf32> to vector<2x8x8xf32>
    %34 = vector.extract_strided_slice %29 {offsets = [0, 64], sizes = [16, 8], strides = [1, 1]} : vector<16x96xf32> to vector<16x8xf32>
    %35 = vector.shape_cast %34 : vector<16x8xf32> to vector<2x8x8xf32>
    "tpu.trace_start"() <{level = 10 : i32, message = "bnd,bmd->bnm"}> : () -> ()
    %cst_13 = arith.constant dense<0.000000e+00> : vector<2x8x8xf32>
    %36 = tpu.matmul %31, %33, %cst_13 {dimension_numbers = #tpu.dot_dimension_numbers<[2], [2], [1], [1], [0, 0, 0, 1, 1, 1], [0], [0]>} : vector<2x8x8xf32>, vector<2x8x8xf32>, vector<2x8x8xf32> -> vector<2x8x8xf32>
    "tpu.trace_stop"() : () -> ()
    %cst_14 = arith.constant dense<0xFF800000> : vector<2x8xf32>
    %37 = vector.multi_reduction <maximumf>, %36, %cst_14 [2] : vector<2x8x8xf32> to vector<2x8xf32>
    %38 = vector.shape_cast %37 : vector<2x8xf32> to vector<2x8x1xf32>
    %39 = vector.broadcast %38 : vector<2x8x1xf32> to vector<2x8x8xf32>
    %40 = arith.subf %36, %39 : vector<2x8x8xf32>
    %41 = math.exp %40 : vector<2x8x8xf32>
    %cst_15 = arith.constant dense<0.000000e+00> : vector<2x8xf32>
    %42 = vector.multi_reduction <add>, %41, %cst_15 [2] : vector<2x8x8xf32> to vector<2x8xf32>
    %43 = vector.shape_cast %42 : vector<2x8xf32> to vector<2x8x1xf32>
    %44 = tpu.reciprocal %43 : vector<2x8x1xf32> -> vector<2x8x1xf32>
    %45 = vector.broadcast %44 : vector<2x8x1xf32> to vector<2x8x8xf32>
    %46 = arith.mulf %41, %45 : vector<2x8x8xf32>
    "tpu.trace_start"() <{level = 10 : i32, message = "bnm,bmd->bnd"}> : () -> ()
    %cst_16 = arith.constant dense<0.000000e+00> : vector<2x8x8xf32>
    %47 = tpu.matmul %46, %35, %cst_16 {dimension_numbers = #tpu.dot_dimension_numbers<[2], [1], [1], [2], [0, 0, 0, 1, 1, 2], [0], [0]>} : vector<2x8x8xf32>, vector<2x8x8xf32>, vector<2x8x8xf32> -> vector<2x8x8xf32>
    "tpu.trace_stop"() : () -> ()
    %48 = vector.shape_cast %47 : vector<2x8x8xf32> to vector<16x8xf32>
    %c0_17 = arith.constant 0 : index
    %c0_18 = arith.constant 0 : index
    %49 = vector.load %arg14[%c0_17, %c0_18] : memref<16x32xf32, #tpu.memory_space<vmem>>, vector<16x8xf32>
    tpu.vector_store %arg14[%c0_17, %c0_18], %48 {strides = array<i32>} : memref<16x32xf32, #tpu.memory_space<vmem>>, vector<16x8xf32>,
    %50 = vector.extract_strided_slice %29 {offsets = [0, 8], sizes = [16, 8], strides = [1, 1]} : vector<16x96xf32> to vector<16x8xf32>
    %51 = vector.shape_cast %50 : vector<16x8xf32> to vector<2x8x8xf32>
    %52 = vector.extract_strided_slice %29 {offsets = [0, 40], sizes = [16, 8], strides = [1, 1]} : vector<16x96xf32> to vector<16x8xf32>
    %53 = vector.shape_cast %52 : vector<16x8xf32> to vector<2x8x8xf32>
    %54 = vector.extract_strided_slice %29 {offsets = [0, 72], sizes = [16, 8], strides = [1, 1]} : vector<16x96xf32> to vector<16x8xf32>
    %55 = vector.shape_cast %54 : vector<16x8xf32> to vector<2x8x8xf32>
    "tpu.trace_start"() <{level = 10 : i32, message = "bnd,bmd->bnm"}> : () -> ()
    %cst_19 = arith.constant dense<0.000000e+00> : vector<2x8x8xf32>
    %56 = tpu.matmul %51, %53, %cst_19 {dimension_numbers = #tpu.dot_dimension_numbers<[2], [2], [1], [1], [0, 0, 0, 1, 1, 1], [0], [0]>} : vector<2x8x8xf32>, vector<2x8x8xf32>, vector<2x8x8xf32> -> vector<2x8x8xf32>
    "tpu.trace_stop"() : () -> ()
    %cst_20 = arith.constant dense<0xFF800000> : vector<2x8xf32>
    %57 = vector.multi_reduction <maximumf>, %56, %cst_20 [2] : vector<2x8x8xf32> to vector<2x8xf32>
    %58 = vector.shape_cast %57 : vector<2x8xf32> to vector<2x8x1xf32>
    %59 = vector.broadcast %58 : vector<2x8x1xf32> to vector<2x8x8xf32>
    %60 = arith.subf %56, %59 : vector<2x8x8xf32>
    %61 = math.exp %60 : vector<2x8x8xf32>
    %cst_21 = arith.constant dense<0.000000e+00> : vector<2x8xf32>
    %62 = vector.multi_reduction <add>, %61, %cst_21 [2] : vector<2x8x8xf32> to vector<2x8xf32>
    %63 = vector.shape_cast %62 : vector<2x8xf32> to vector<2x8x1xf32>
    %64 = tpu.reciprocal %63 : vector<2x8x1xf32> -> vector<2x8x1xf32>
    %65 = vector.broadcast %64 : vector<2x8x1xf32> to vector<2x8x8xf32>
    %66 = arith.mulf %61, %65 : vector<2x8x8xf32>
    "tpu.trace_start"() <{level = 10 : i32, message = "bnm,bmd->bnd"}> : () -> ()
    %cst_22 = arith.constant dense<0.000000e+00> : vector<2x8x8xf32>
    %67 = tpu.matmul %66, %55, %cst_22 {dimension_numbers = #tpu.dot_dimension_numbers<[2], [1], [1], [2], [0, 0, 0, 1, 1, 2], [0], [0]>} : vector<2x8x8xf32>, vector<2x8x8xf32>, vector<2x8x8xf32> -> vector<2x8x8xf32>
    "tpu.trace_stop"() : () -> ()
    %68 = vector.shape_cast %67 : vector<2x8x8xf32> to vector<16x8xf32>
    %c0_23 = arith.constant 0 : index
    %c8 = arith.constant 8 : index
    %69 = vector.load %arg14[%c0_23, %c8] : memref<16x32xf32, #tpu.memory_space<vmem>>, vector<16x8xf32>
    tpu.vector_store %arg14[%c0_23, %c8], %68 {strides = array<i32>} : memref<16x32xf32, #tpu.memory_space<vmem>>, vector<16x8xf32>,
    %70 = vector.extract_strided_slice %29 {offsets = [0, 16], sizes = [16, 8], strides = [1, 1]} : vector<16x96xf32> to vector<16x8xf32>
    %71 = vector.shape_cast %70 : vector<16x8xf32> to vector<2x8x8xf32>
    %72 = vector.extract_strided_slice %29 {offsets = [0, 48], sizes = [16, 8], strides = [1, 1]} : vector<16x96xf32> to vector<16x8xf32>
    %73 = vector.shape_cast %72 : vector<16x8xf32> to vector<2x8x8xf32>
    %74 = vector.extract_strided_slice %29 {offsets = [0, 80], sizes = [16, 8], strides = [1, 1]} : vector<16x96xf32> to vector<16x8xf32>
    %75 = vector.shape_cast %74 : vector<16x8xf32> to vector<2x8x8xf32>
    "tpu.trace_start"() <{level = 10 : i32, message = "bnd,bmd->bnm"}> : () -> ()
    %cst_24 = arith.constant dense<0.000000e+00> : vector<2x8x8xf32>
    %76 = tpu.matmul %71, %73, %cst_24 {dimension_numbers = #tpu.dot_dimension_numbers<[2], [2], [1], [1], [0, 0, 0, 1, 1, 1], [0], [0]>} : vector<2x8x8xf32>, vector<2x8x8xf32>, vector<2x8x8xf32> -> vector<2x8x8xf32>
    "tpu.trace_stop"() : () -> ()
    %cst_25 = arith.constant dense<0xFF800000> : vector<2x8xf32>
    %77 = vector.multi_reduction <maximumf>, %76, %cst_25 [2] : vector<2x8x8xf32> to vector<2x8xf32>
    %78 = vector.shape_cast %77 : vector<2x8xf32> to vector<2x8x1xf32>
    %79 = vector.broadcast %78 : vector<2x8x1xf32> to vector<2x8x8xf32>
    %80 = arith.subf %76, %79 : vector<2x8x8xf32>
    %81 = math.exp %80 : vector<2x8x8xf32>
    %cst_26 = arith.constant dense<0.000000e+00> : vector<2x8xf32>
    %82 = vector.multi_reduction <add>, %81, %cst_26 [2] : vector<2x8x8xf32> to vector<2x8xf32>
    %83 = vector.shape_cast %82 : vector<2x8xf32> to vector<2x8x1xf32>
    %84 = tpu.reciprocal %83 : vector<2x8x1xf32> -> vector<2x8x1xf32>
    %85 = vector.broadcast %84 : vector<2x8x1xf32> to vector<2x8x8xf32>
    %86 = arith.mulf %81, %85 : vector<2x8x8xf32>
    "tpu.trace_start"() <{level = 10 : i32, message = "bnm,bmd->bnd"}> : () -> ()
    %cst_27 = arith.constant dense<0.000000e+00> : vector<2x8x8xf32>
    %87 = tpu.matmul %86, %75, %cst_27 {dimension_numbers = #tpu.dot_dimension_numbers<[2], [1], [1], [2], [0, 0, 0, 1, 1, 2], [0], [0]>} : vector<2x8x8xf32>, vector<2x8x8xf32>, vector<2x8x8xf32> -> vector<2x8x8xf32>
    "tpu.trace_stop"() : () -> ()
    %88 = vector.shape_cast %87 : vector<2x8x8xf32> to vector<16x8xf32>
    %c0_28 = arith.constant 0 : index
    %c16 = arith.constant 16 : index
    %89 = vector.load %arg14[%c0_28, %c16] : memref<16x32xf32, #tpu.memory_space<vmem>>, vector<16x8xf32>
    tpu.vector_store %arg14[%c0_28, %c16], %88 {strides = array<i32>} : memref<16x32xf32, #tpu.memory_space<vmem>>, vector<16x8xf32>,
    %90 = vector.extract_strided_slice %29 {offsets = [0, 24], sizes = [16, 8], strides = [1, 1]} : vector<16x96xf32> to vector<16x8xf32>
    %91 = vector.shape_cast %90 : vector<16x8xf32> to vector<2x8x8xf32>
    %92 = vector.extract_strided_slice %29 {offsets = [0, 56], sizes = [16, 8], strides = [1, 1]} : vector<16x96xf32> to vector<16x8xf32>
    %93 = vector.shape_cast %92 : vector<16x8xf32> to vector<2x8x8xf32>
    %94 = vector.extract_strided_slice %29 {offsets = [0, 88], sizes = [16, 8], strides = [1, 1]} : vector<16x96xf32> to vector<16x8xf32>
    %95 = vector.shape_cast %94 : vector<16x8xf32> to vector<2x8x8xf32>
    "tpu.trace_start"() <{level = 10 : i32, message = "bnd,bmd->bnm"}> : () -> ()
    %cst_29 = arith.constant dense<0.000000e+00> : vector<2x8x8xf32>
    %96 = tpu.matmul %91, %93, %cst_29 {dimension_numbers = #tpu.dot_dimension_numbers<[2], [2], [1], [1], [0, 0, 0, 1, 1, 1], [0], [0]>} : vector<2x8x8xf32>, vector<2x8x8xf32>, vector<2x8x8xf32> -> vector<2x8x8xf32>
    "tpu.trace_stop"() : () -> ()
    %cst_30 = arith.constant dense<0xFF800000> : vector<2x8xf32>
    %97 = vector.multi_reduction <maximumf>, %96, %cst_30 [2] : vector<2x8x8xf32> to vector<2x8xf32>
    %98 = vector.shape_cast %97 : vector<2x8xf32> to vector<2x8x1xf32>
    %99 = vector.broadcast %98 : vector<2x8x1xf32> to vector<2x8x8xf32>
    %100 = arith.subf %96, %99 : vector<2x8x8xf32>
    %101 = math.exp %100 : vector<2x8x8xf32>
    %cst_31 = arith.constant dense<0.000000e+00> : vector<2x8xf32>
    %102 = vector.multi_reduction <add>, %101, %cst_31 [2] : vector<2x8x8xf32> to vector<2x8xf32>
    %103 = vector.shape_cast %102 : vector<2x8xf32> to vector<2x8x1xf32>
    %104 = tpu.reciprocal %103 : vector<2x8x1xf32> -> vector<2x8x1xf32>
    %105 = vector.broadcast %104 : vector<2x8x1xf32> to vector<2x8x8xf32>
    %106 = arith.mulf %101, %105 : vector<2x8x8xf32>
    "tpu.trace_start"() <{level = 10 : i32, message = "bnm,bmd->bnd"}> : () -> ()
    %cst_32 = arith.constant dense<0.000000e+00> : vector<2x8x8xf32>
    %107 = tpu.matmul %106, %95, %cst_32 {dimension_numbers = #tpu.dot_dimension_numbers<[2], [1], [1], [2], [0, 0, 0, 1, 1, 2], [0], [0]>} : vector<2x8x8xf32>, vector<2x8x8xf32>, vector<2x8x8xf32> -> vector<2x8x8xf32>
    "tpu.trace_stop"() : () -> ()
    %108 = vector.shape_cast %107 : vector<2x8x8xf32> to vector<16x8xf32>
    %c0_33 = arith.constant 0 : index
    %c24 = arith.constant 24 : index
    %109 = vector.load %arg14[%c0_33, %c24] : memref<16x32xf32, #tpu.memory_space<vmem>>, vector<16x8xf32>
    tpu.vector_store %arg14[%c0_33, %c24], %108 {strides = array<i32>} : memref<16x32xf32, #tpu.memory_space<vmem>>, vector<16x8xf32>,
    %c0_34 = arith.constant 0 : index
    %c0_35 = arith.constant 0 : index
    %110 = vector.load %arg14[%c0_34, %c0_35] : memref<16x32xf32, #tpu.memory_space<vmem>>, vector<16x32xf32>
    %c0_36 = arith.constant 0 : index
    %c0_37 = arith.constant 0 : index
    %111 = vector.load %arg5[%c0_36, %c0_37] : memref<32x32xf32, #tpu.memory_space<vmem>>, vector<32x32xf32>
    %cst_38 = arith.constant dense<0.000000e+00> : vector<16x32xf32>
    %112 = tpu.matmul %110, %111, %cst_38 {dimension_numbers = #tpu.dot_dimension_numbers<[1], [0], [0], [1], [0, 0, 1, 1], [], []>} : vector<16x32xf32>, vector<32x32xf32>, vector<16x32xf32> -> vector<16x32xf32>
    %c0_39 = arith.constant 0 : index
    %c0_40 = arith.constant 0 : index
    %113 = vector.load %arg6[%c0_39, %c0_40] : memref<1x32xf32, #tpu.memory_space<vmem>>, vector<1x32xf32>
    %114 = vector.broadcast %113 : vector<1x32xf32> to vector<16x32xf32>
    %115 = arith.addf %112, %114 : vector<16x32xf32>
    %116 = vector.shape_cast %115 : vector<16x32xf32> to vector<2x8x32xf32>
    %117 = arith.addf %0, %116 : vector<2x8x32xf32>
    %c0_41 = arith.constant 0 : index
    %c0_42 = arith.constant 0 : index
    %118 = vector.load %arg7[%c0_41, %c0_42] : memref<1x32xf32, #tpu.memory_space<vmem>>, vector<1x32xf32>
    %c0_43 = arith.constant 0 : index
    %c0_44 = arith.constant 0 : index
    %119 = vector.load %arg8[%c0_43, %c0_44] : memref<1x32xf32, #tpu.memory_space<vmem>>, vector<1x32xf32>
    %cst_45 = arith.constant dense<0.000000e+00> : vector<2x8xf32>
    %120 = vector.multi_reduction <add>, %117, %cst_45 [2] : vector<2x8x32xf32> to vector<2x8xf32>
    %121 = vector.shape_cast %120 : vector<2x8xf32> to vector<2x8x1xf32>
    %cst_46 = arith.constant 3.200000e+01 : f32
    %122 = vector.broadcast %cst_46 : f32 to vector<2x8x1xf32>
    %123 = arith.divf %121, %122 : vector<2x8x1xf32>
    %124 = vector.broadcast %123 : vector<2x8x1xf32> to vector<2x8x32xf32>
    %125 = arith.subf %117, %124 : vector<2x8x32xf32>
    %126 = arith.mulf %125, %125 : vector<2x8x32xf32>
    %cst_47 = arith.constant dense<0.000000e+00> : vector<2x8xf32>
    %127 = vector.multi_reduction <add>, %126, %cst_47 [2] : vector<2x8x32xf32> to vector<2x8xf32>
    %128 = vector.shape_cast %127 : vector<2x8xf32> to vector<2x8x1xf32>
    %cst_48 = arith.constant 3.200000e+01 : f32
    %129 = vector.broadcast %cst_48 : f32 to vector<2x8x1xf32>
    %130 = arith.divf %128, %129 : vector<2x8x1xf32>
    %131 = vector.broadcast %123 : vector<2x8x1xf32> to vector<2x8x32xf32>
    %132 = arith.subf %117, %131 : vector<2x8x32xf32>
    %cst_49 = arith.constant 9.99999974E-6 : f32
    %133 = vector.broadcast %cst_49 : f32 to vector<2x8x1xf32>
    %134 = arith.addf %130, %133 : vector<2x8x1xf32>
    %135 = math.rsqrt %134 : vector<2x8x1xf32>
    %136 = vector.broadcast %135 : vector<2x8x1xf32> to vector<2x8x32xf32>
    %137 = arith.mulf %132, %136 : vector<2x8x32xf32>
    %138 = vector.shape_cast %118 : vector<1x32xf32> to vector<1x1x32xf32>
    %139 = vector.broadcast %138 : vector<1x1x32xf32> to vector<2x8x32xf32>
    %140 = arith.mulf %137, %139 : vector<2x8x32xf32>
    %141 = vector.shape_cast %119 : vector<1x32xf32> to vector<1x1x32xf32>
    %142 = vector.broadcast %141 : vector<1x1x32xf32> to vector<2x8x32xf32>
    %143 = arith.addf %140, %142 : vector<2x8x32xf32>
    %144 = vector.shape_cast %143 : vector<2x8x32xf32> to vector<16x32xf32>
    %cst_50 = arith.constant 0.000000e+00 : f32
    %145 = vector.broadcast %cst_50 : f32 to vector<16x32xf32>
    %c0_51 = arith.constant 0 : index
    %c0_52 = arith.constant 0 : index
    %146 = vector.load %arg9[%c0_51, %c0_52] : memref<32x64xf32, #tpu.memory_space<vmem>>, vector<32x64xf32>
    %cst_53 = arith.constant dense<0.000000e+00> : vector<16x64xf32>
    %147 = tpu.matmul %144, %146, %cst_53 {dimension_numbers = #tpu.dot_dimension_numbers<[1], [0], [0], [1], [0, 0, 1, 1], [], []>} : vector<16x32xf32>, vector<32x64xf32>, vector<16x64xf32> -> vector<16x64xf32>
    %c0_54 = arith.constant 0 : index
    %c0_55 = arith.constant 0 : index
    %148 = vector.load %arg10[%c0_54, %c0_55] : memref<1x64xf32, #tpu.memory_space<vmem>>, vector<1x64xf32>
    %149 = vector.broadcast %148 : vector<1x64xf32> to vector<16x64xf32>
    %150 = arith.addf %147, %149 : vector<16x64xf32>
    %cst_56 = arith.constant 5.000000e-01 : f32
    %151 = vector.broadcast %cst_56 : f32 to vector<16x64xf32>
    %152 = arith.mulf %151, %150 : vector<16x64xf32>
    %cst_57 = arith.constant 0.707106769 : f32
    %153 = vector.broadcast %cst_57 : f32 to vector<16x64xf32>
    %154 = arith.mulf %150, %153 : vector<16x64xf32>
    %155 = math.erf %154 : vector<16x64xf32>
    %cst_58 = arith.constant 1.000000e+00 : f32
    %156 = vector.broadcast %cst_58 : f32 to vector<16x64xf32>
    %157 = arith.addf %156, %155 : vector<16x64xf32>
    %158 = arith.mulf %152, %157 : vector<16x64xf32>
    %c0_59 = arith.constant 0 : index
    %c0_60 = arith.constant 0 : index
    %159 = vector.load %arg11[%c0_59, %c0_60] : memref<64x32xf32, #tpu.memory_space<vmem>>, vector<64x32xf32>
    %cst_61 = arith.constant dense<0.000000e+00> : vector<16x32xf32>
    %160 = tpu.matmul %158, %159, %cst_61 {dimension_numbers = #tpu.dot_dimension_numbers<[1], [0], [0], [1], [0, 0, 1, 1], [], []>} : vector<16x64xf32>, vector<64x32xf32>, vector<16x32xf32> -> vector<16x32xf32>
    %161 = arith.addf %145, %160 : vector<16x32xf32>
    %c0_62 = arith.constant 0 : index
    %c0_63 = arith.constant 0 : index
    %162 = vector.load %arg12[%c0_62, %c0_63] : memref<1x32xf32, #tpu.memory_space<vmem>>, vector<1x32xf32>
    %163 = vector.broadcast %162 : vector<1x32xf32> to vector<16x32xf32>
    %164 = arith.addf %161, %163 : vector<16x32xf32>
    %165 = vector.shape_cast %164 : vector<16x32xf32> to vector<2x8x32xf32>
    %166 = arith.addf %117, %165 : vector<2x8x32xf32>
    %c0_64 = arith.constant 0 : index
    %c0_65 = arith.constant 0 : index
    %c0_66 = arith.constant 0 : index
    %167 = vector.load %arg13[%c0_64, %c0_65, %c0_66] : memref<2x8x32xf32, #tpu.memory_space<vmem>>, vector<2x8x32xf32>
    tpu.vector_store %arg13[%c0_64, %c0_65, %c0_66], %166 {strides = array<i32>} : memref<2x8x32xf32, #tpu.memory_space<vmem>>, vector<2x8x32xf32>,
    return
  }
  func.func @transform_0(%arg0: i32) -> (i32, i32, i32) {
    %c0_i32 = arith.constant 0 : i32
    %c0_i32_0 = arith.constant 0 : i32
    %c0_i32_1 = arith.constant 0 : i32
    return %arg0, %c0_i32, %c0_i32_0 : i32, i32, i32
  }
  func.func @transform_1(%arg0: i32) -> (i32, i32) {
    %c0_i32 = arith.constant 0 : i32
    %c0_i32_0 = arith.constant 0 : i32
    %c0_i32_1 = arith.constant 0 : i32
    return %c0_i32, %c0_i32_0 : i32, i32
  }
  func.func @transform_2(%arg0: i32) -> (i32, i32) {
    %c0_i32 = arith.constant 0 : i32
    %c0_i32_0 = arith.constant 0 : i32
    %c0_i32_1 = arith.constant 0 : i32
    return %c0_i32, %c0_i32_0 : i32, i32
  }
  func.func @transform_3(%arg0: i32) -> (i32, i32) {
    %c0_i32 = arith.constant 0 : i32
    %c0_i32_0 = arith.constant 0 : i32
    %c0_i32_1 = arith.constant 0 : i32
    return %c0_i32, %c0_i32_0 : i32, i32
  }
  func.func @transform_4(%arg0: i32) -> (i32, i32) {
    %c0_i32 = arith.constant 0 : i32
    %c0_i32_0 = arith.constant 0 : i32
    %c0_i32_1 = arith.constant 0 : i32
    return %c0_i32, %c0_i32_0 : i32, i32
  }
  func.func @transform_5(%arg0: i32) -> (i32, i32) {
    %c0_i32 = arith.constant 0 : i32
    %c0_i32_0 = arith.constant 0 : i32
    %c0_i32_1 = arith.constant 0 : i32
    return %c0_i32, %c0_i32_0 : i32, i32
  }
  func.func @transform_6(%arg0: i32) -> (i32, i32) {
    %c0_i32 = arith.constant 0 : i32
    %c0_i32_0 = arith.constant 0 : i32
    %c0_i32_1 = arith.constant 0 : i32
    return %c0_i32, %c0_i32_0 : i32, i32
  }
  func.func @transform_7(%arg0: i32) -> (i32, i32) {
    %c0_i32 = arith.constant 0 : i32
    %c0_i32_0 = arith.constant 0 : i32
    %c0_i32_1 = arith.constant 0 : i32
    return %c0_i32, %c0_i32_0 : i32, i32
  }
  func.func @transform_8(%arg0: i32) -> (i32, i32) {
    %c0_i32 = arith.constant 0 : i32
    %c0_i32_0 = arith.constant 0 : i32
    %c0_i32_1 = arith.constant 0 : i32
    return %c0_i32, %c0_i32_0 : i32, i32
  }
  func.func @transform_9(%arg0: i32) -> (i32, i32) {
    %c0_i32 = arith.constant 0 : i32
    %c0_i32_0 = arith.constant 0 : i32
    %c0_i32_1 = arith.constant 0 : i32
    return %c0_i32, %c0_i32_0 : i32, i32
  }
  func.func @transform_10(%arg0: i32) -> (i32, i32) {
    %c0_i32 = arith.constant 0 : i32
    %c0_i32_0 = arith.constant 0 : i32
    %c0_i32_1 = arith.constant 0 : i32
    return %c0_i32, %c0_i32_0 : i32, i32
  }
  func.func @transform_11(%arg0: i32) -> (i32, i32) {
    %c0_i32 = arith.constant 0 : i32
    %c0_i32_0 = arith.constant 0 : i32
    %c0_i32_1 = arith.constant 0 : i32
    return %c0_i32, %c0_i32_0 : i32, i32
  }
  func.func @transform_12(%arg0: i32) -> (i32, i32, i32) {
    %c0_i32 = arith.constant 0 : i32
    %c0_i32_0 = arith.constant 0 : i32
    %c0_i32_1 = arith.constant 0 : i32
    return %arg0, %c0_i32, %c0_i32_0 : i32, i32, i32
  }
}

module attributes {stable_mosaic.version = 11 : i64} {
  func.func @tblock_kernel(%arg0: i32, %arg1: memref<2x8x32xf32, #tpu.memory_space<vmem>>, %arg2: memref<1x32xf32, #tpu.memory_space<vmem>>, %arg3: memref<1x32xf32, #tpu.memory_space<vmem>>, %arg4: memref<32x96xf32, #tpu.memory_space<vmem>>, %arg5: memref<32x32xf32, #tpu.memory_space<vmem>>, %arg6: memref<1x32xf32, #tpu.memory_space<vmem>>, %arg7: memref<1x32xf32, #tpu.memory_space<vmem>>, %arg8: memref<1x32xf32, #tpu.memory_space<vmem>>, %arg9: memref<32x64xf32, #tpu.memory_space<vmem>>, %arg10: memref<1x64xf32, #tpu.memory_space<vmem>>, %arg11: memref<64x32xf32, #tpu.memory_space<vmem>>, %arg12: memref<1x32xf32, #tpu.memory_space<vmem>>, %arg13: memref<2x8x32xf32, #tpu.memory_space<vmem>>, %arg14: memref<16x32xf32, #tpu.memory_space<vmem>>) attributes {dimension_semantics = [#tpu.dimension_semantics<parallel>], iteration_bounds = array<i64: 2>, scalar_prefetch = 0 : i64, scratch_operands = 1 : i64, tpu.core_type = #tpu.core_type<tc>, window_params = [{transform_indices = @transform_0, window_bounds = array<i64: 2, 8, 32>}, {pipeline_mode = #tpu.pipeline_mode<synchronous>, transform_indices = @transform_1, window_bounds = array<i64: 1, 32>}, {pipeline_mode = #tpu.pipeline_mode<synchronous>, transform_indices = @transform_2, window_bounds = array<i64: 1, 32>}, {pipeline_mode = #tpu.pipeline_mode<synchronous>, transform_indices = @transform_3, window_bounds = array<i64: 32, 96>}, {pipeline_mode = #tpu.pipeline_mode<synchronous>, transform_indices = @transform_4, window_bounds = array<i64: 32, 32>}, {pipeline_mode = #tpu.pipeline_mode<synchronous>, transform_indices = @transform_5, window_bounds = array<i64: 1, 32>}, {pipeline_mode = #tpu.pipeline_mode<synchronous>, transform_indices = @transform_6, window_bounds = array<i64: 1, 32>}, {pipeline_mode = #tpu.pipeline_mode<synchronous>, transform_indices = @transform_7, window_bounds = array<i64: 1, 32>}, {pipeline_mode = #tpu.pipeline_mode<synchronous>, transform_indices = @transform_8, window_bounds = array<i64: 32, 64>}, {pipeline_mode = #tpu.pipeline_mode<synchronous>, transform_indices = @transform_9, window_bounds = array<i64: 1, 64>}, {pipeline_mode = #tpu.pipeline_mode<synchronous>, transform_indices = @transform_10, window_bounds = array<i64: 64, 32>}, {pipeline_mode = #tpu.pipeline_mode<synchronous>, transform_indices = @transform_11, window_bounds = array<i64: 1, 32>}, {transform_indices = @transform_12, window_bounds = array<i64: 2, 8, 32>}]} {
    %c0 = arith.constant 0 : index
    %c0_0 = arith.constant 0 : index
    %c0_1 = arith.constant 0 : index
    %0 = vector.load %arg1[%c0, %c0_0, %c0_1] : memref<2x8x32xf32, #tpu.memory_space<vmem>>, vector<2x8x32xf32>
    %c0_2 = arith.constant 0 : index
    %c0_3 = arith.constant 0 : index
    %1 = vector.load %arg2[%c0_2, %c0_3] : memref<1x32xf32, #tpu.memory_space<vmem>>, vector<1x32xf32>
    %c0_4 = arith.constant 0 : index
    %c0_5 = arith.constant 0 : index
    %2 = vector.load %arg3[%c0_4, %c0_5] : memref<1x32xf32, #tpu.memory_space<vmem>>, vector<1x32xf32>
    %cst = arith.constant dense<0.000000e+00> : vector<2x8xf32>
    %3 = vector.multi_reduction <add>, %0, %cst [2] : vector<2x8x32xf32> to vector<2x8xf32>
    %4 = vector.shape_cast %3 : vector<2x8xf32> to vector<2x8x1xf32>
    %cst_6 = arith.constant 3.200000e+01 : f32
    %5 = vector.broadcast %cst_6 : f32 to vector<2x8x1xf32>
    %6 = arith.divf %4, %5 : vector<2x8x1xf32>
    %7 = vector.broadcast %6 : vector<2x8x1xf32> to vector<2x8x32xf32>
    %8 = arith.subf %0, %7 : vector<2x8x32xf32>
    %9 = arith.mulf %8, %8 : vector<2x8x32xf32>
    %cst_7 = arith.constant dense<0.000000e+00> : vector<2x8xf32>
    %10 = vector.multi_reduction <add>, %9, %cst_7 [2] : vector<2x8x32xf32> to vector<2x8xf32>
    %11 = vector.shape_cast %10 : vector<2x8xf32> to vector<2x8x1xf32>
    %cst_8 = arith.constant 3.200000e+01 : f32
    %12 = vector.broadcast %cst_8 : f32 to vector<2x8x1xf32>
    %13 = arith.divf %11, %12 : vector<2x8x1xf32>
    %14 = vector.broadcast %6 : vector<2x8x1xf32> to vector<2x8x32xf32>
    %15 = arith.subf %0, %14 : vector<2x8x32xf32>
    %cst_9 = arith.constant 9.99999974E-6 : f32
    %16 = vector.broadcast %cst_9 : f32 to vector<2x8x1xf32>
    %17 = arith.addf %13, %16 : vector<2x8x1xf32>
    %18 = math.rsqrt %17 : vector<2x8x1xf32>
    %19 = vector.broadcast %18 : vector<2x8x1xf32> to vector<2x8x32xf32>
    %20 = arith.mulf %15, %19 : vector<2x8x32xf32>
    %21 = vector.shape_cast %1 : vector<1x32xf32> to vector<1x1x32xf32>
    %22 = vector.broadcast %21 : vector<1x1x32xf32> to vector<2x8x32xf32>
    %23 = arith.mulf %20, %22 : vector<2x8x32xf32>
    %24 = vector.shape_cast %2 : vector<1x32xf32> to vector<1x1x32xf32>
    %25 = vector.broadcast %24 : vector<1x1x32xf32> to vector<2x8x32xf32>
    %26 = arith.addf %23, %25 : vector<2x8x32xf32>
    %27 = vector.shape_cast %26 : vector<2x8x32xf32> to vector<16x32xf32>
    %c0_10 = arith.constant 0 : index
    %c0_11 = arith.constant 0 : index
    %28 = vector.load %arg4[%c0_10, %c0_11] : memref<32x96xf32, #tpu.memory_space<vmem>>, vector<32x96xf32>
    %cst_12 = arith.constant dense<0.000000e+00> : vector<16x96xf32>
    %29 = tpu.matmul %27, %28, %cst_12 {dimension_numbers = #tpu.dot_dimension_numbers<[1], [0], [0], [1], [0, 0, 1, 1], [], []>} : vector<16x32xf32>, vector<32x96xf32>, vector<16x96xf32> -> vector<16x96xf32>
    %30 = vector.extract_strided_slice %29 {offsets = [0, 0], sizes = [16, 8], strides = [1, 1]} : vector<16x96xf32> to vector<16x8xf32>
    %31 = vector.shape_cast %30 : vector<16x8xf32> to vector<2x8x8xf32>
    %32 = vector.extract_strided_slice %29 {offsets = [0, 32], sizes = [16, 8], strides = [1, 1]} : vector<16x96xf32> to vector<16x8xf32>
    %33 = vector.shape_cast %32 : vector<16x8xf32> to vector<2x8x8xf32>
    %34 = vector.extract_strided_slice %29 {offsets = [0, 64], sizes = [16, 8], strides = [1, 1]} : vector<16x96xf32> to vector<16x8xf32>
    %35 = vector.shape_cast %34 : vector<16x8xf32> to vector<2x8x8xf32>
    "tpu.trace_start"() <{level = 10 : i32, message = "bnd,bmd->bnm"}> : () -> ()
    %cst_13 = arith.constant dense<0.000000e+00> : vector<2x8x8xf32>
    %36 = tpu.matmul %31, %33, %cst_13 {dimension_numbers = #tpu.dot_dimension_numbers<[2], [2], [1], [1], [0, 0, 0, 1, 1, 1], [0], [0]>} : vector<2x8x8xf32>, vector<2x8x8xf32>, vector<2x8x8xf32> -> vector<2x8x8xf32>
    "tpu.trace_stop"() : () -> ()
    %cst_14 = arith.constant dense<0xFF800000> : vector<2x8xf32>
    %37 = vector.multi_reduction <maximumf>, %36, %cst_14 [2] : vector<2x8x8xf32> to vector<2x8xf32>
    %38 = vector.shape_cast %37 : vector<2x8xf32> to vector<2x8x1xf32>
    %39 = vector.broadcast %38 : vector<2x8x1xf32> to vector<2x8x8xf32>
    %40 = arith.subf %36, %39 : vector<2x8x8xf32>
    %41 = math.exp %40 : vector<2x8x8xf32>
    %cst_15 = arith.constant dense<0.000000e+00> : vector<2x8xf32>
    %42 = vector.multi_reduction <add>, %41, %cst_15 [2] : vector<2x8x8xf32> to vector<2x8xf32>
    %43 = vector.shape_cast %42 : vector<2x8xf32> to vector<2x8x1xf32>
    %44 = tpu.reciprocal %43 : vector<2x8x1xf32> -> vector<2x8x1xf32>
    %45 = vector.broadcast %44 : vector<2x8x1xf32> to vector<2x8x8xf32>
    %46 = arith.mulf %41, %45 : vector<2x8x8xf32>
    "tpu.trace_start"() <{level = 10 : i32, message = "bnm,bmd->bnd"}> : () -> ()
    %cst_16 = arith.constant dense<0.000000e+00> : vector<2x8x8xf32>
    %47 = tpu.matmul %46, %35, %cst_16 {dimension_numbers = #tpu.dot_dimension_numbers<[2], [1], [1], [2], [0, 0, 0, 1, 1, 2], [0], [0]>} : vector<2x8x8xf32>, vector<2x8x8xf32>, vector<2x8x8xf32> -> vector<2x8x8xf32>
    "tpu.trace_stop"() : () -> ()
    %48 = vector.shape_cast %47 : vector<2x8x8xf32> to vector<16x8xf32>
    %c0_17 = arith.constant 0 : index
    %c0_18 = arith.constant 0 : index
    %49 = vector.load %arg14[%c0_17, %c0_18] : memref<16x32xf32, #tpu.memory_space<vmem>>, vector<16x8xf32>
    tpu.vector_store %arg14[%c0_17, %c0_18], %48 {strides = array<i32>} : memref<16x32xf32, #tpu.memory_space<vmem>>, vector<16x8xf32>,
    %50 = vector.extract_strided_slice %29 {offsets = [0, 8], sizes = [16, 8], strides = [1, 1]} : vector<16x96xf32> to vector<16x8xf32>
    %51 = vector.shape_cast %50 : vector<16x8xf32> to vector<2x8x8xf32>
    %52 = vector.extract_strided_slice %29 {offsets = [0, 40], sizes = [16, 8], strides = [1, 1]} : vector<16x96xf32> to vector<16x8xf32>
    %53 = vector.shape_cast %52 : vector<16x8xf32> to vector<2x8x8xf32>
    %54 = vector.extract_strided_slice %29 {offsets = [0, 72], sizes = [16, 8], strides = [1, 1]} : vector<16x96xf32> to vector<16x8xf32>
    %55 = vector.shape_cast %54 : vector<16x8xf32> to vector<2x8x8xf32>
    "tpu.trace_start"() <{level = 10 : i32, message = "bnd,bmd->bnm"}> : () -> ()
    %cst_19 = arith.constant dense<0.000000e+00> : vector<2x8x8xf32>
    %56 = tpu.matmul %51, %53, %cst_19 {dimension_numbers = #tpu.dot_dimension_numbers<[2], [2], [1], [1], [0, 0, 0, 1, 1, 1], [0], [0]>} : vector<2x8x8xf32>, vector<2x8x8xf32>, vector<2x8x8xf32> -> vector<2x8x8xf32>
    "tpu.trace_stop"() : () -> ()
    %cst_20 = arith.constant dense<0xFF800000> : vector<2x8xf32>
    %57 = vector.multi_reduction <maximumf>, %56, %cst_20 [2] : vector<2x8x8xf32> to vector<2x8xf32>
    %58 = vector.shape_cast %57 : vector<2x8xf32> to vector<2x8x1xf32>
    %59 = vector.broadcast %58 : vector<2x8x1xf32> to vector<2x8x8xf32>
    %60 = arith.subf %56, %59 : vector<2x8x8xf32>
    %61 = math.exp %60 : vector<2x8x8xf32>
    %cst_21 = arith.constant dense<0.000000e+00> : vector<2x8xf32>
    %62 = vector.multi_reduction <add>, %61, %cst_21 [2] : vector<2x8x8xf32> to vector<2x8xf32>
    %63 = vector.shape_cast %62 : vector<2x8xf32> to vector<2x8x1xf32>
    %64 = tpu.reciprocal %63 : vector<2x8x1xf32> -> vector<2x8x1xf32>
    %65 = vector.broadcast %64 : vector<2x8x1xf32> to vector<2x8x8xf32>
    %66 = arith.mulf %61, %65 : vector<2x8x8xf32>
    "tpu.trace_start"() <{level = 10 : i32, message = "bnm,bmd->bnd"}> : () -> ()
    %cst_22 = arith.constant dense<0.000000e+00> : vector<2x8x8xf32>
    %67 = tpu.matmul %66, %55, %cst_22 {dimension_numbers = #tpu.dot_dimension_numbers<[2], [1], [1], [2], [0, 0, 0, 1, 1, 2], [0], [0]>} : vector<2x8x8xf32>, vector<2x8x8xf32>, vector<2x8x8xf32> -> vector<2x8x8xf32>
    "tpu.trace_stop"() : () -> ()
    %68 = vector.shape_cast %67 : vector<2x8x8xf32> to vector<16x8xf32>
    %c0_23 = arith.constant 0 : index
    %c8 = arith.constant 8 : index
    %69 = vector.load %arg14[%c0_23, %c8] : memref<16x32xf32, #tpu.memory_space<vmem>>, vector<16x8xf32>
    tpu.vector_store %arg14[%c0_23, %c8], %68 {strides = array<i32>} : memref<16x32xf32, #tpu.memory_space<vmem>>, vector<16x8xf32>,
    %70 = vector.extract_strided_slice %29 {offsets = [0, 16], sizes = [16, 8], strides = [1, 1]} : vector<16x96xf32> to vector<16x8xf32>
    %71 = vector.shape_cast %70 : vector<16x8xf32> to vector<2x8x8xf32>
    %72 = vector.extract_strided_slice %29 {offsets = [0, 48], sizes = [16, 8], strides = [1, 1]} : vector<16x96xf32> to vector<16x8xf32>
    %73 = vector.shape_cast %72 : vector<16x8xf32> to vector<2x8x8xf32>
    %74 = vector.extract_strided_slice %29 {offsets = [0, 80], sizes = [16, 8], strides = [1, 1]} : vector<16x96xf32> to vector<16x8xf32>
    %75 = vector.shape_cast %74 : vector<16x8xf32> to vector<2x8x8xf32>
    "tpu.trace_start"() <{level = 10 : i32, message = "bnd,bmd->bnm"}> : () -> ()
    %cst_24 = arith.constant dense<0.000000e+00> : vector<2x8x8xf32>
    %76 = tpu.matmul %71, %73, %cst_24 {dimension_numbers = #tpu.dot_dimension_numbers<[2], [2], [1], [1], [0, 0, 0, 1, 1, 1], [0], [0]>} : vector<2x8x8xf32>, vector<2x8x8xf32>, vector<2x8x8xf32> -> vector<2x8x8xf32>
    "tpu.trace_stop"() : () -> ()
    %cst_25 = arith.constant dense<0xFF800000> : vector<2x8xf32>
    %77 = vector.multi_reduction <maximumf>, %76, %cst_25 [2] : vector<2x8x8xf32> to vector<2x8xf32>
    %78 = vector.shape_cast %77 : vector<2x8xf32> to vector<2x8x1xf32>
    %79 = vector.broadcast %78 : vector<2x8x1xf32> to vector<2x8x8xf32>
    %80 = arith.subf %76, %79 : vector<2x8x8xf32>
    %81 = math.exp %80 : vector<2x8x8xf32>
    %cst_26 = arith.constant dense<0.000000e+00> : vector<2x8xf32>
    %82 = vector.multi_reduction <add>, %81, %cst_26 [2] : vector<2x8x8xf32> to vector<2x8xf32>
    %83 = vector.shape_cast %82 : vector<2x8xf32> to vector<2x8x1xf32>
    %84 = tpu.reciprocal %83 : vector<2x8x1xf32> -> vector<2x8x1xf32>
    %85 = vector.broadcast %84 : vector<2x8x1xf32> to vector<2x8x8xf32>
    %86 = arith.mulf %81, %85 : vector<2x8x8xf32>
    "tpu.trace_start"() <{level = 10 : i32, message = "bnm,bmd->bnd"}> : () -> ()
    %cst_27 = arith.constant dense<0.000000e+00> : vector<2x8x8xf32>
    %87 = tpu.matmul %86, %75, %cst_27 {dimension_numbers = #tpu.dot_dimension_numbers<[2], [1], [1], [2], [0, 0, 0, 1, 1, 2], [0], [0]>} : vector<2x8x8xf32>, vector<2x8x8xf32>, vector<2x8x8xf32> -> vector<2x8x8xf32>
    "tpu.trace_stop"() : () -> ()
    %88 = vector.shape_cast %87 : vector<2x8x8xf32> to vector<16x8xf32>
    %c0_28 = arith.constant 0 : index
    %c16 = arith.constant 16 : index
    %89 = vector.load %arg14[%c0_28, %c16] : memref<16x32xf32, #tpu.memory_space<vmem>>, vector<16x8xf32>
    tpu.vector_store %arg14[%c0_28, %c16], %88 {strides = array<i32>} : memref<16x32xf32, #tpu.memory_space<vmem>>, vector<16x8xf32>,
    %90 = vector.extract_strided_slice %29 {offsets = [0, 24], sizes = [16, 8], strides = [1, 1]} : vector<16x96xf32> to vector<16x8xf32>
    %91 = vector.shape_cast %90 : vector<16x8xf32> to vector<2x8x8xf32>
    %92 = vector.extract_strided_slice %29 {offsets = [0, 56], sizes = [16, 8], strides = [1, 1]} : vector<16x96xf32> to vector<16x8xf32>
    %93 = vector.shape_cast %92 : vector<16x8xf32> to vector<2x8x8xf32>
    %94 = vector.extract_strided_slice %29 {offsets = [0, 88], sizes = [16, 8], strides = [1, 1]} : vector<16x96xf32> to vector<16x8xf32>
    %95 = vector.shape_cast %94 : vector<16x8xf32> to vector<2x8x8xf32>
    "tpu.trace_start"() <{level = 10 : i32, message = "bnd,bmd->bnm"}> : () -> ()
    %cst_29 = arith.constant dense<0.000000e+00> : vector<2x8x8xf32>
    %96 = tpu.matmul %91, %93, %cst_29 {dimension_numbers = #tpu.dot_dimension_numbers<[2], [2], [1], [1], [0, 0, 0, 1, 1, 1], [0], [0]>} : vector<2x8x8xf32>, vector<2x8x8xf32>, vector<2x8x8xf32> -> vector<2x8x8xf32>
    "tpu.trace_stop"() : () -> ()
    %cst_30 = arith.constant dense<0xFF800000> : vector<2x8xf32>
    %97 = vector.multi_reduction <maximumf>, %96, %cst_30 [2] : vector<2x8x8xf32> to vector<2x8xf32>
    %98 = vector.shape_cast %97 : vector<2x8xf32> to vector<2x8x1xf32>
    %99 = vector.broadcast %98 : vector<2x8x1xf32> to vector<2x8x8xf32>
    %100 = arith.subf %96, %99 : vector<2x8x8xf32>
    %101 = math.exp %100 : vector<2x8x8xf32>
    %cst_31 = arith.constant dense<0.000000e+00> : vector<2x8xf32>
    %102 = vector.multi_reduction <add>, %101, %cst_31 [2] : vector<2x8x8xf32> to vector<2x8xf32>
    %103 = vector.shape_cast %102 : vector<2x8xf32> to vector<2x8x1xf32>
    %104 = tpu.reciprocal %103 : vector<2x8x1xf32> -> vector<2x8x1xf32>
    %105 = vector.broadcast %104 : vector<2x8x1xf32> to vector<2x8x8xf32>
    %106 = arith.mulf %101, %105 : vector<2x8x8xf32>
    "tpu.trace_start"() <{level = 10 : i32, message = "bnm,bmd->bnd"}> : () -> ()
    %cst_32 = arith.constant dense<0.000000e+00> : vector<2x8x8xf32>
    %107 = tpu.matmul %106, %95, %cst_32 {dimension_numbers = #tpu.dot_dimension_numbers<[2], [1], [1], [2], [0, 0, 0, 1, 1, 2], [0], [0]>} : vector<2x8x8xf32>, vector<2x8x8xf32>, vector<2x8x8xf32> -> vector<2x8x8xf32>
    "tpu.trace_stop"() : () -> ()
    %108 = vector.shape_cast %107 : vector<2x8x8xf32> to vector<16x8xf32>
    %c0_33 = arith.constant 0 : index
    %c24 = arith.constant 24 : index
    %109 = vector.load %arg14[%c0_33, %c24] : memref<16x32xf32, #tpu.memory_space<vmem>>, vector<16x8xf32>
    tpu.vector_store %arg14[%c0_33, %c24], %108 {strides = array<i32>} : memref<16x32xf32, #tpu.memory_space<vmem>>, vector<16x8xf32>,
    %c0_34 = arith.constant 0 : index
    %c0_35 = arith.constant 0 : index
    %110 = vector.load %arg14[%c0_34, %c0_35] : memref<16x32xf32, #tpu.memory_space<vmem>>, vector<16x32xf32>
    %c0_36 = arith.constant 0 : index
    %c0_37 = arith.constant 0 : index
    %111 = vector.load %arg5[%c0_36, %c0_37] : memref<32x32xf32, #tpu.memory_space<vmem>>, vector<32x32xf32>
    %cst_38 = arith.constant dense<0.000000e+00> : vector<16x32xf32>
    %112 = tpu.matmul %110, %111, %cst_38 {dimension_numbers = #tpu.dot_dimension_numbers<[1], [0], [0], [1], [0, 0, 1, 1], [], []>} : vector<16x32xf32>, vector<32x32xf32>, vector<16x32xf32> -> vector<16x32xf32>
    %c0_39 = arith.constant 0 : index
    %c0_40 = arith.constant 0 : index
    %113 = vector.load %arg6[%c0_39, %c0_40] : memref<1x32xf32, #tpu.memory_space<vmem>>, vector<1x32xf32>
    %114 = vector.broadcast %113 : vector<1x32xf32> to vector<16x32xf32>
    %115 = arith.addf %112, %114 : vector<16x32xf32>
    %116 = vector.shape_cast %115 : vector<16x32xf32> to vector<2x8x32xf32>
    %117 = arith.addf %0, %116 : vector<2x8x32xf32>
    %c0_41 = arith.constant 0 : index
    %c0_42 = arith.constant 0 : index
    %118 = vector.load %arg7[%c0_41, %c0_42] : memref<1x32xf32, #tpu.memory_space<vmem>>, vector<1x32xf32>
    %c0_43 = arith.constant 0 : index
    %c0_44 = arith.constant 0 : index
    %119 = vector.load %arg8[%c0_43, %c0_44] : memref<1x32xf32, #tpu.memory_space<vmem>>, vector<1x32xf32>
    %cst_45 = arith.constant dense<0.000000e+00> : vector<2x8xf32>
    %120 = vector.multi_reduction <add>, %117, %cst_45 [2] : vector<2x8x32xf32> to vector<2x8xf32>
    %121 = vector.shape_cast %120 : vector<2x8xf32> to vector<2x8x1xf32>
    %cst_46 = arith.constant 3.200000e+01 : f32
    %122 = vector.broadcast %cst_46 : f32 to vector<2x8x1xf32>
    %123 = arith.divf %121, %122 : vector<2x8x1xf32>
    %124 = vector.broadcast %123 : vector<2x8x1xf32> to vector<2x8x32xf32>
    %125 = arith.subf %117, %124 : vector<2x8x32xf32>
    %126 = arith.mulf %125, %125 : vector<2x8x32xf32>
    %cst_47 = arith.constant dense<0.000000e+00> : vector<2x8xf32>
    %127 = vector.multi_reduction <add>, %126, %cst_47 [2] : vector<2x8x32xf32> to vector<2x8xf32>
    %128 = vector.shape_cast %127 : vector<2x8xf32> to vector<2x8x1xf32>
    %cst_48 = arith.constant 3.200000e+01 : f32
    %129 = vector.broadcast %cst_48 : f32 to vector<2x8x1xf32>
    %130 = arith.divf %128, %129 : vector<2x8x1xf32>
    %131 = vector.broadcast %123 : vector<2x8x1xf32> to vector<2x8x32xf32>
    %132 = arith.subf %117, %131 : vector<2x8x32xf32>
    %cst_49 = arith.constant 9.99999974E-6 : f32
    %133 = vector.broadcast %cst_49 : f32 to vector<2x8x1xf32>
    %134 = arith.addf %130, %133 : vector<2x8x1xf32>
    %135 = math.rsqrt %134 : vector<2x8x1xf32>
    %136 = vector.broadcast %135 : vector<2x8x1xf32> to vector<2x8x32xf32>
    %137 = arith.mulf %132, %136 : vector<2x8x32xf32>
    %138 = vector.shape_cast %118 : vector<1x32xf32> to vector<1x1x32xf32>
    %139 = vector.broadcast %138 : vector<1x1x32xf32> to vector<2x8x32xf32>
    %140 = arith.mulf %137, %139 : vector<2x8x32xf32>
    %141 = vector.shape_cast %119 : vector<1x32xf32> to vector<1x1x32xf32>
    %142 = vector.broadcast %141 : vector<1x1x32xf32> to vector<2x8x32xf32>
    %143 = arith.addf %140, %142 : vector<2x8x32xf32>
    %144 = vector.shape_cast %143 : vector<2x8x32xf32> to vector<16x32xf32>
    %cst_50 = arith.constant 0.000000e+00 : f32
    %145 = vector.broadcast %cst_50 : f32 to vector<16x32xf32>
    %c0_51 = arith.constant 0 : index
    %c0_52 = arith.constant 0 : index
    %146 = vector.load %arg9[%c0_51, %c0_52] : memref<32x64xf32, #tpu.memory_space<vmem>>, vector<32x64xf32>
    %cst_53 = arith.constant dense<0.000000e+00> : vector<16x64xf32>
    %147 = tpu.matmul %144, %146, %cst_53 {dimension_numbers = #tpu.dot_dimension_numbers<[1], [0], [0], [1], [0, 0, 1, 1], [], []>} : vector<16x32xf32>, vector<32x64xf32>, vector<16x64xf32> -> vector<16x64xf32>
    %c0_54 = arith.constant 0 : index
    %c0_55 = arith.constant 0 : index
    %148 = vector.load %arg10[%c0_54, %c0_55] : memref<1x64xf32, #tpu.memory_space<vmem>>, vector<1x64xf32>
    %149 = vector.broadcast %148 : vector<1x64xf32> to vector<16x64xf32>
    %150 = arith.addf %147, %149 : vector<16x64xf32>
    %cst_56 = arith.constant 5.000000e-01 : f32
    %151 = vector.broadcast %cst_56 : f32 to vector<16x64xf32>
    %152 = arith.mulf %151, %150 : vector<16x64xf32>
    %cst_57 = arith.constant 0.707106769 : f32
    %153 = vector.broadcast %cst_57 : f32 to vector<16x64xf32>
    %154 = arith.mulf %150, %153 : vector<16x64xf32>
    %155 = math.erf %154 : vector<16x64xf32>
    %cst_58 = arith.constant 1.000000e+00 : f32
    %156 = vector.broadcast %cst_58 : f32 to vector<16x64xf32>
    %157 = arith.addf %156, %155 : vector<16x64xf32>
    %158 = arith.mulf %152, %157 : vector<16x64xf32>
    %c0_59 = arith.constant 0 : index
    %c0_60 = arith.constant 0 : index
    %159 = vector.load %arg11[%c0_59, %c0_60] : memref<64x32xf32, #tpu.memory_space<vmem>>, vector<64x32xf32>
    %cst_61 = arith.constant dense<0.000000e+00> : vector<16x32xf32>
    %160 = tpu.matmul %158, %159, %cst_61 {dimension_numbers = #tpu.dot_dimension_numbers<[1], [0], [0], [1], [0, 0, 1, 1], [], []>} : vector<16x64xf32>, vector<64x32xf32>, vector<16x32xf32> -> vector<16x32xf32>
    %161 = arith.addf %145, %160 : vector<16x32xf32>
    %c0_62 = arith.constant 0 : index
    %c0_63 = arith.constant 0 : index
    %162 = vector.load %arg12[%c0_62, %c0_63] : memref<1x32xf32, #tpu.memory_space<vmem>>, vector<1x32xf32>
    %163 = vector.broadcast %162 : vector<1x32xf32> to vector<16x32xf32>
    %164 = arith.addf %161, %163 : vector<16x32xf32>
    %165 = vector.shape_cast %164 : vector<16x32xf32> to vector<2x8x32xf32>
    %166 = arith.addf %117, %165 : vector<2x8x32xf32>
    %c0_64 = arith.constant 0 : index
    %c0_65 = arith.constant 0 : index
    %c0_66 = arith.constant 0 : index
    %167 = vector.load %arg13[%c0_64, %c0_65, %c0_66] : memref<2x8x32xf32, #tpu.memory_space<vmem>>, vector<2x8x32xf32>
    tpu.vector_store %arg13[%c0_64, %c0_65, %c0_66], %166 {strides = array<i32>} : memref<2x8x32xf32, #tpu.memory_space<vmem>>, vector<2x8x32xf32>,
    return
  }
  func.func @transform_0(%arg0: i32) -> (i32, i32, i32) {
    %c0_i32 = arith.constant 0 : i32
    %c0_i32_0 = arith.constant 0 : i32
    %c0_i32_1 = arith.constant 0 : i32
    return %arg0, %c0_i32, %c0_i32_0 : i32, i32, i32
  }
  func.func @transform_1(%arg0: i32) -> (i32, i32) {
    %c0_i32 = arith.constant 0 : i32
    %c0_i32_0 = arith.constant 0 : i32
    %c0_i32_1 = arith.constant 0 : i32
    return %c0_i32, %c0_i32_0 : i32, i32
  }
  func.func @transform_2(%arg0: i32) -> (i32, i32) {
    %c0_i32 = arith.constant 0 : i32
    %c0_i32_0 = arith.constant 0 : i32
    %c0_i32_1 = arith.constant 0 : i32
    return %c0_i32, %c0_i32_0 : i32, i32
  }
  func.func @transform_3(%arg0: i32) -> (i32, i32) {
    %c0_i32 = arith.constant 0 : i32
    %c0_i32_0 = arith.constant 0 : i32
    %c0_i32_1 = arith.constant 0 : i32
    return %c0_i32, %c0_i32_0 : i32, i32
  }
  func.func @transform_4(%arg0: i32) -> (i32, i32) {
    %c0_i32 = arith.constant 0 : i32
    %c0_i32_0 = arith.constant 0 : i32
    %c0_i32_1 = arith.constant 0 : i32
    return %c0_i32, %c0_i32_0 : i32, i32
  }
  func.func @transform_5(%arg0: i32) -> (i32, i32) {
    %c0_i32 = arith.constant 0 : i32
    %c0_i32_0 = arith.constant 0 : i32
    %c0_i32_1 = arith.constant 0 : i32
    return %c0_i32, %c0_i32_0 : i32, i32
  }
  func.func @transform_6(%arg0: i32) -> (i32, i32) {
    %c0_i32 = arith.constant 0 : i32
    %c0_i32_0 = arith.constant 0 : i32
    %c0_i32_1 = arith.constant 0 : i32
    return %c0_i32, %c0_i32_0 : i32, i32
  }
  func.func @transform_7(%arg0: i32) -> (i32, i32) {
    %c0_i32 = arith.constant 0 : i32
    %c0_i32_0 = arith.constant 0 : i32
    %c0_i32_1 = arith.constant 0 : i32
    return %c0_i32, %c0_i32_0 : i32, i32
  }
  func.func @transform_8(%arg0: i32) -> (i32, i32) {
    %c0_i32 = arith.constant 0 : i32
    %c0_i32_0 = arith.constant 0 : i32
    %c0_i32_1 = arith.constant 0 : i32
    return %c0_i32, %c0_i32_0 : i32, i32
  }
  func.func @transform_9(%arg0: i32) -> (i32, i32) {
    %c0_i32 = arith.constant 0 : i32
    %c0_i32_0 = arith.constant 0 : i32
    %c0_i32_1 = arith.constant 0 : i32
    return %c0_i32, %c0_i32_0 : i32, i32
  }
  func.func @transform_10(%arg0: i32) -> (i32, i32) {
    %c0_i32 = arith.constant 0 : i32
    %c0_i32_0 = arith.constant 0 : i32
    %c0_i32_1 = arith.constant 0 : i32
    return %c0_i32, %c0_i32_0 : i32, i32
  }
  func.func @transform_11(%arg0: i32) -> (i32, i32) {
    %c0_i32 = arith.constant 0 : i32
    %c0_i32_0 = arith.constant 0 : i32
    %c0_i32_1 = arith.constant 0 : i32
    return %c0_i32, %c0_i32_0 : i32, i32
  }
  func.func @transform_12(%arg0: i32) -> (i32, i32, i32) {
    %c0_i32 = arith.constant 0 : i32
    %c0_i32_0 = arith.constant 0 : i32
    %c0_i32_1 = arith.constant 0 : i32
    return %arg0, %c0_i32, %c0_i32_0 : i32, i32, i32
  }
}

</mosaic_0001>

<llo_original>
// kernel: tpu_custom_call.1
$region0: #{tpu_custom_call.1}
  #allocation0 [shape = 'u32[]', space=smem, size = 0x4, offset = 0x4, fixed_abs, tag = 'smem constant byte address 0x4 - core index']
  #allocation1 [shape = 'u32[144,128]{1,0:T(1,128)}', space=vmem, size = 0x12000, scoped, tag = 'internal scratch']
  #allocation2 [shape = 'f32[16,32]{1,0:T(8,128)}', space=vmem, size = 0x2000, scoped, tag = 'scratch operand']
  %s0 = inlined_call_operand.vmem [shape: f32[4,8,32], index: 0, kind: input, shape index: {}]
  %s1 = inlined_call_operand.vmem [shape: f32[1,32], index: 1, kind: input, shape index: {}]
  %s2 = inlined_call_operand.vmem [shape: f32[1,32], index: 2, kind: input, shape index: {}]
  %s3 = inlined_call_operand.vmem [shape: f32[32,96], index: 3, kind: input, shape index: {}]
  %s4 = inlined_call_operand.vmem [shape: f32[32,32], index: 4, kind: input, shape index: {}]
  %s5 = inlined_call_operand.vmem [shape: f32[1,32], index: 5, kind: input, shape index: {}]
  %s6 = inlined_call_operand.vmem [shape: f32[1,32], index: 6, kind: input, shape index: {}]
  %s7 = inlined_call_operand.vmem [shape: f32[1,32], index: 7, kind: input, shape index: {}]
  %s8 = inlined_call_operand.hbm [shape: f32[32,64], index: 8, kind: input, shape index: {}]
  %s9 = inlined_call_operand.vmem [shape: f32[1,64], index: 9, kind: input, shape index: {}]
  %s10 = inlined_call_operand.vmem [shape: f32[64,32], index: 10, kind: input, shape index: {}]
  %s11 = inlined_call_operand.vmem [shape: f32[1,32], index: 11, kind: input, shape index: {}]
  %s12 = inlined_call_operand.hbm [shape: f32[4,8,32], index: 12, kind: output, shape index: {}]
  %s13 = sld [smem:[#allocation0]]
  $region85: #{tpu_custom_call.1} parent=0
    _
  %s15 = ssub.s32 1, %s13
  %s16 = scalar_select 0, %s15, %s13
  $region1: #{tpu_custom_call.1} parent=0
    #allocation3 [shape = 'u8[16384]{0}', space=vmem, size = 0x4000, scoped, tag = 'input window, operand 8, single buffered']
    #allocation4 [shape = 's32[2]{0}', space=sflag, size = 0x8, scoped, tag = 'scoped memory for tpu_custom_call.1']
    #allocation5 [shape = 's32[2]{0}', space=sflag, size = 0x8, scoped, tag = 'scoped memory for tpu_custom_call.1']
    #allocation6 [shape = 'u8[16384]{0}', space=vmem, size = 0x4000, scoped, tag = 'output window, operand 0']
    %17 = vsyncpa [#allocation4], 0
    %18 = vsyncpa [#allocation5], 0
    %s19 = scalar_lea.sflag [#allocation5], 1
    %20 = vsyncpa %s19, 0
    loop: start=0, step=1, limit=4
    $region2: #{tpu_custom_call.1} parent=1 // loop_pre_header
      _
    $region3: #{tpu_custom_call.1} parent=1 // loop_header
      %s22 = sphi 0, %s26
      %p23 = scmp.ge.s32.totalorder %s22, 4
      %s32 = sphi 0, %s34
      %s35 = sphi 0, %s32
      %s36 = sphi 0, %s35
      %s52 = sphi 0, %s36
      %s56 = sphi 0, %s56
      %s58 = sphi 0, %s56
      %s59 = sphi 0, %s58
      %s73 = sphi 0, %s59
      %s77 = sphi 0, %s77
      %s79 = sphi 0, %s77
      %s80 = sphi 0, %s79
      %s94 = sphi 0, %s80
      %s98 = sphi 0, %s98
      %s100 = sphi 0, %s98
      %s101 = sphi 0, %s100
      %s115 = sphi 0, %s101
      %s119 = sphi 0, %s119
      %s121 = sphi 0, %s119
      %s122 = sphi 0, %s121
      %s136 = sphi 0, %s122
      %s140 = sphi 0, %s140
      %s142 = sphi 0, %s140
      %s143 = sphi 0, %s142
      %s157 = sphi 0, %s143
      %s161 = sphi 0, %s161
      %s163 = sphi 0, %s161
      %s164 = sphi 0, %s163
      %s178 = sphi 0, %s164
      %s182 = sphi 0, %s182
      %s184 = sphi 0, %s182
      %s185 = sphi 0, %s184
      %s199 = sphi 0, %s185
      %s203 = sphi 0, %s203
      %s205 = sphi 0, %s203
      %s206 = sphi 0, %s205
      %s220 = sphi 0, %s206
      %s224 = sphi 0, %s224
      %s226 = sphi 0, %s224
      %s227 = sphi 0, %s226
      %s241 = sphi 0, %s227
      %s245 = sphi 0, %s245
      %s247 = sphi 0, %s245
      %s248 = sphi 0, %s247
      %s262 = sphi 0, %s248
      %s266 = sphi 0, %s266
      %s268 = sphi 0, %s266
      %s269 = sphi 0, %s268
      %s283 = sphi 0, %s269
      %s289 = sphi 0, %s291
      %s292 = sphi 0, %s289
      %s293 = sphi 0, %s292
      %s309 = sphi 0, %s293
    $region4: #{tpu_custom_call.1} parent=1 // loop_header_branch
      %25 = sbr.rel (%p23) target = $region8
    $region5: #{tpu_custom_call.1} parent=1 // loop_body
      %s27 = ssub.s32 %s22, 1
      %s28 = ssub.s32 %s22, 2
      %s29 = sadd.s32 %s22, 1
      %s30 = ssub.s32 %s22, %s29
      %p31 = scmp.eq.s32.totalorder %s30, 0
      %s33 = sadd.s32 %s32, 1
      %s34 = scalar_select %p31, %s32, %s33
      %p37 = pneg %p31
      %p38 = scmp.eq.s32.totalorder %s22, 1
      %p39 = por %p37, %p38
      %p40 = scmp.ne.s32.totalorder %s32, %s35
      %p41 = scmp.eq.s32.totalorder %s22, 0
      %p42 = por %p40, %p41
      %p43 = scmp.ne.s32.totalorder %s32, %s35
      %p44 = scmp.eq.s32.totalorder %s27, 1
      %p45 = por %p43, %p44
      %p46 = scmp.ne.s32.totalorder %s35, %s36
      %p47 = scmp.eq.s32.totalorder %s27, 0
      %p48 = por %p46, %p47
      %p49 = scmp.ne.s32.totalorder %s35, %s36
      %p50 = scmp.eq.s32.totalorder %s28, 1
      %p51 = por %p49, %p50
      %p53 = scmp.ne.s32.totalorder %s36, %s52
      %p54 = scmp.eq.s32.totalorder %s28, 0
      %p55 = por %p53, %p54
      %s57 = sadd.s32 %s56, 1
      %p60 = scmp.eq.s32.totalorder %s22, 1
      %p61 = scmp.ne.s32.totalorder %s56, %s58
      %p62 = scmp.eq.s32.totalorder %s22, 0
      %p63 = por %p61, %p62
      %p64 = scmp.ne.s32.totalorder %s56, %s58
      %p65 = scmp.eq.s32.totalorder %s27, 1
      %p66 = por %p64, %p65
      %p67 = scmp.ne.s32.totalorder %s58, %s59
      %p68 = scmp.eq.s32.totalorder %s27, 0
      %p69 = por %p67, %p68
      %p70 = scmp.ne.s32.totalorder %s58, %s59
      %p71 = scmp.eq.s32.totalorder %s28, 1
      %p72 = por %p70, %p71
      %p74 = scmp.ne.s32.totalorder %s59, %s73
      %p75 = scmp.eq.s32.totalorder %s28, 0
      %p76 = por %p74, %p75
      %s78 = sadd.s32 %s77, 1
      %p81 = scmp.eq.s32.totalorder %s22, 1
      %p82 = scmp.ne.s32.totalorder %s77, %s79
      %p83 = scmp.eq.s32.totalorder %s22, 0
      %p84 = por %p82, %p83
      %p85 = scmp.ne.s32.totalorder %s77, %s79
      %p86 = scmp.eq.s32.totalorder %s27, 1
      %p87 = por %p85, %p86
      %p88 = scmp.ne.s32.totalorder %s79, %s80
      %p89 = scmp.eq.s32.totalorder %s27, 0
      %p90 = por %p88, %p89
      %p91 = scmp.ne.s32.totalorder %s79, %s80
      %p92 = scmp.eq.s32.totalorder %s28, 1
      %p93 = por %p91, %p92
      %p95 = scmp.ne.s32.totalorder %s80, %s94
      %p96 = scmp.eq.s32.totalorder %s28, 0
      %p97 = por %p95, %p96
      %s99 = sadd.s32 %s98, 1
      %p102 = scmp.eq.s32.totalorder %s22, 1
      %p103 = scmp.ne.s32.totalorder %s98, %s100
      %p104 = scmp.eq.s32.totalorder %s22, 0
      %p105 = por %p103, %p104
      %p106 = scmp.ne.s32.totalorder %s98, %s100
      %p107 = scmp.eq.s32.totalorder %s27, 1
      %p108 = por %p106, %p107
      %p109 = scmp.ne.s32.totalorder %s100, %s101
      %p110 = scmp.eq.s32.totalorder %s27, 0
      %p111 = por %p109, %p110
      %p112 = scmp.ne.s32.totalorder %s100, %s101
      %p113 = scmp.eq.s32.totalorder %s28, 1
      %p114 = por %p112, %p113
      %p116 = scmp.ne.s32.totalorder %s101, %s115
      %p117 = scmp.eq.s32.totalorder %s28, 0
      %p118 = por %p116, %p117
      %s120 = sadd.s32 %s119, 1
      %p123 = scmp.eq.s32.totalorder %s22, 1
      %p124 = scmp.ne.s32.totalorder %s119, %s121
      %p125 = scmp.eq.s32.totalorder %s22, 0
      %p126 = por %p124, %p125
      %p127 = scmp.ne.s32.totalorder %s119, %s121
      %p128 = scmp.eq.s32.totalorder %s27, 1
      %p129 = por %p127, %p128
      %p130 = scmp.ne.s32.totalorder %s121, %s122
      %p131 = scmp.eq.s32.totalorder %s27, 0
      %p132 = por %p130, %p131
      %p133 = scmp.ne.s32.totalorder %s121, %s122
      %p134 = scmp.eq.s32.totalorder %s28, 1
      %p135 = por %p133, %p134
      %p137 = scmp.ne.s32.totalorder %s122, %s136
      %p138 = scmp.eq.s32.totalorder %s28, 0
      %p139 = por %p137, %p138
      %s141 = sadd.s32 %s140, 1
      %p144 = scmp.eq.s32.totalorder %s22, 1
      %p145 = scmp.ne.s32.totalorder %s140, %s142
      %p146 = scmp.eq.s32.totalorder %s22, 0
      %p147 = por %p145, %p146
      %p148 = scmp.ne.s32.totalorder %s140, %s142
      %p149 = scmp.eq.s32.totalorder %s27, 1
      %p150 = por %p148, %p149
      %p151 = scmp.ne.s32.totalorder %s142, %s143
      %p152 = scmp.eq.s32.totalorder %s27, 0
      %p153 = por %p151, %p152
      %p154 = scmp.ne.s32.totalorder %s142, %s143
      %p155 = scmp.eq.s32.totalorder %s28, 1
      %p156 = por %p154, %p155
      %p158 = scmp.ne.s32.totalorder %s143, %s157
      %p159 = scmp.eq.s32.totalorder %s28, 0
      %p160 = por %p158, %p159
      %s162 = sadd.s32 %s161, 1
      %p165 = scmp.eq.s32.totalorder %s22, 1
      %p166 = scmp.ne.s32.totalorder %s161, %s163
      %p167 = scmp.eq.s32.totalorder %s22, 0
      %p168 = por %p166, %p167
      %p169 = scmp.ne.s32.totalorder %s161, %s163
      %p170 = scmp.eq.s32.totalorder %s27, 1
      %p171 = por %p169, %p170
      %p172 = scmp.ne.s32.totalorder %s163, %s164
      %p173 = scmp.eq.s32.totalorder %s27, 0
      %p174 = por %p172, %p173
      %p175 = scmp.ne.s32.totalorder %s163, %s164
      %p176 = scmp.eq.s32.totalorder %s28, 1
      %p177 = por %p175, %p176
      %p179 = scmp.ne.s32.totalorder %s164, %s178
      %p180 = scmp.eq.s32.totalorder %s28, 0
      %p181 = por %p179, %p180
      %s183 = sadd.s32 %s182, 1
      %p186 = scmp.eq.s32.totalorder %s22, 1
      %p187 = scmp.ne.s32.totalorder %s182, %s184
      %p188 = scmp.eq.s32.totalorder %s22, 0
      %p189 = por %p187, %p188
      %p190 = scmp.ne.s32.totalorder %s182, %s184
      %p191 = scmp.eq.s32.totalorder %s27, 1
      %p192 = por %p190, %p191
      %p193 = scmp.ne.s32.totalorder %s184, %s185
      %p194 = scmp.eq.s32.totalorder %s27, 0
      %p195 = por %p193, %p194
      %p196 = scmp.ne.s32.totalorder %s184, %s185
      %p197 = scmp.eq.s32.totalorder %s28, 1
      %p198 = por %p196, %p197
      %p200 = scmp.ne.s32.totalorder %s185, %s199
      %p201 = scmp.eq.s32.totalorder %s28, 0
      %p202 = por %p200, %p201
      %s204 = sadd.s32 %s203, 1
      %p207 = scmp.eq.s32.totalorder %s22, 1
      %p208 = scmp.ne.s32.totalorder %s203, %s205
      %p209 = scmp.eq.s32.totalorder %s22, 0
      %p210 = por %p208, %p209
      %p211 = scmp.ne.s32.totalorder %s203, %s205
      %p212 = scmp.eq.s32.totalorder %s27, 1
      %p213 = por %p211, %p212
      %p214 = scmp.ne.s32.totalorder %s205, %s206
      %p215 = scmp.eq.s32.totalorder %s27, 0
      %p216 = por %p214, %p215
      %p217 = scmp.ne.s32.totalorder %s205, %s206
      %p218 = scmp.eq.s32.totalorder %s28, 1
      %p219 = por %p217, %p218
      %p221 = scmp.ne.s32.totalorder %s206, %s220
      %p222 = scmp.eq.s32.totalorder %s28, 0
      %p223 = por %p221, %p222
      %s225 = sadd.s32 %s224, 1
      %p228 = scmp.eq.s32.totalorder %s22, 1
      %p229 = scmp.ne.s32.totalorder %s224, %s226
      %p230 = scmp.eq.s32.totalorder %s22, 0
      %p231 = por %p229, %p230
      %p232 = scmp.ne.s32.totalorder %s224, %s226
      %p233 = scmp.eq.s32.totalorder %s27, 1
      %p234 = por %p232, %p233
      %p235 = scmp.ne.s32.totalorder %s226, %s227
      %p236 = scmp.eq.s32.totalorder %s27, 0
      %p237 = por %p235, %p236
      %p238 = scmp.ne.s32.totalorder %s226, %s227
      %p239 = scmp.eq.s32.totalorder %s28, 1
      %p240 = por %p238, %p239
      %p242 = scmp.ne.s32.totalorder %s227, %s241
      %p243 = scmp.eq.s32.totalorder %s28, 0
      %p244 = por %p242, %p243
      %s246 = sadd.s32 %s245, 1
      %p249 = scmp.eq.s32.totalorder %s22, 1
      %p250 = scmp.ne.s32.totalorder %s245, %s247
      %p251 = scmp.eq.s32.totalorder %s22, 0
      %p252 = por %p250, %p251
      %p253 = scmp.ne.s32.totalorder %s245, %s247
      %p254 = scmp.eq.s32.totalorder %s27, 1
      %p255 = por %p253, %p254
      %p256 = scmp.ne.s32.totalorder %s247, %s248
      %p257 = scmp.eq.s32.totalorder %s27, 0
      %p258 = por %p256, %p257
      %p259 = scmp.ne.s32.totalorder %s247, %s248
      %p260 = scmp.eq.s32.totalorder %s28, 1
      %p261 = por %p259, %p260
      %p263 = scmp.ne.s32.totalorder %s248, %s262
      %p264 = scmp.eq.s32.totalorder %s28, 0
      %p265 = por %p263, %p264
      %s267 = sadd.s32 %s266, 1
      %p270 = scmp.eq.s32.totalorder %s22, 1
      %p271 = scmp.ne.s32.totalorder %s266, %s268
      %p272 = scmp.eq.s32.totalorder %s22, 0
      %p273 = por %p271, %p272
      %p274 = scmp.ne.s32.totalorder %s266, %s268
      %p275 = scmp.eq.s32.totalorder %s27, 1
      %p276 = por %p274, %p275
      %p277 = scmp.ne.s32.totalorder %s268, %s269
      %p278 = scmp.eq.s32.totalorder %s27, 0
      %p279 = por %p277, %p278
      %p280 = scmp.ne.s32.totalorder %s268, %s269
      %p281 = scmp.eq.s32.totalorder %s28, 1
      %p282 = por %p280, %p281
      %p284 = scmp.ne.s32.totalorder %s269, %s283
      %p285 = scmp.eq.s32.totalorder %s28, 0
      %p286 = por %p284, %p285
      %s287 = ssub.s32 %s22, %s29
      %p288 = scmp.eq.s32.totalorder %s287, 0
      %s290 = sadd.s32 %s289, 1
      %s291 = scalar_select %p288, %s289, %s290
      %p294 = pneg %p288
      %p295 = scmp.eq.s32.totalorder %s22, 1
      %p296 = por %p294, %p295
      %p297 = scmp.ne.s32.totalorder %s289, %s292
      %p298 = scmp.eq.s32.totalorder %s22, 0
      %p299 = por %p297, %p298
      %p300 = scmp.ne.s32.totalorder %s289, %s292
      %p301 = scmp.eq.s32.totalorder %s27, 1
      %p302 = por %p300, %p301
      %p303 = scmp.ne.s32.totalorder %s292, %s293
      %p304 = scmp.eq.s32.totalorder %s27, 0
      %p305 = por %p303, %p304
      %p306 = scmp.ne.s32.totalorder %s292, %s293
      %p307 = scmp.eq.s32.totalorder %s28, 1
      %p308 = por %p306, %p307
      %p310 = scmp.ne.s32.totalorder %s293, %s309
      %p311 = scmp.eq.s32.totalorder %s28, 0
      %p312 = por %p310, %p311
      %p313 = scmp.le.s32.totalorder 1, %s22
      %p314 = scmp.lt.s32.totalorder %s22, 3
      %p315 = pnand %p313, %p314
      %p316 = pneg %p315
      // Predicated region
      $region9: #{tpu_custom_call.1} parent=5 // pred_check
        _
      $region10: #{tpu_custom_call.1} parent=5 // pred_check_branch
        %318 = sbr.rel (%p315) target = $region12
      $region11: #{tpu_custom_call.1} parent=5 // pred_region
        %s319 = ssub.s32 %s22, 1
        // Predicated region
        $region13: #{tpu_custom_call.1} parent=11 // pred_check
          %p320 = pneg %p69
        $region14: #{tpu_custom_call.1} parent=11 // pred_check_branch
          %322 = sbr.rel (%p320) target = $region16
        $region15: #{tpu_custom_call.1} parent=11 // pred_region
          _
        $region16: #{tpu_custom_call.1} parent=11 // pred_fallthru
          _
        // Predicated region
        $region17: #{tpu_custom_call.1} parent=11 // pred_check
          %p323 = pneg %p90
        $region18: #{tpu_custom_call.1} parent=11 // pred_check_branch
          %325 = sbr.rel (%p323) target = $region20
        $region19: #{tpu_custom_call.1} parent=11 // pred_region
          _
        $region20: #{tpu_custom_call.1} parent=11 // pred_fallthru
          _
        // Predicated region
        $region21: #{tpu_custom_call.1} parent=11 // pred_check
          %p326 = pneg %p111
        $region22: #{tpu_custom_call.1} parent=11 // pred_check_branch
          %328 = sbr.rel (%p326) target = $region24
        $region23: #{tpu_custom_call.1} parent=11 // pred_region
          _
        $region24: #{tpu_custom_call.1} parent=11 // pred_fallthru
          _
        // Predicated region
        $region25: #{tpu_custom_call.1} parent=11 // pred_check
          %p329 = pneg %p132
        $region26: #{tpu_custom_call.1} parent=11 // pred_check_branch
          %331 = sbr.rel (%p329) target = $region28
        $region27: #{tpu_custom_call.1} parent=11 // pred_region
          _
        $region28: #{tpu_custom_call.1} parent=11 // pred_fallthru
          _
        // Predicated region
        $region29: #{tpu_custom_call.1} parent=11 // pred_check
          %p332 = pneg %p153
        $region30: #{tpu_custom_call.1} parent=11 // pred_check_branch
          %334 = sbr.rel (%p332) target = $region32
        $region31: #{tpu_custom_call.1} parent=11 // pred_region
          _
        $region32: #{tpu_custom_call.1} parent=11 // pred_fallthru
          _
        // Predicated region
        $region33: #{tpu_custom_call.1} parent=11 // pred_check
          %p335 = pneg %p174
        $region34: #{tpu_custom_call.1} parent=11 // pred_check_branch
          %337 = sbr.rel (%p335) target = $region36
        $region35: #{tpu_custom_call.1} parent=11 // pred_region
          _
        $region36: #{tpu_custom_call.1} parent=11 // pred_fallthru
          _
        // Predicated region
        $region37: #{tpu_custom_call.1} parent=11 // pred_check
          %p338 = pneg %p195
        $region38: #{tpu_custom_call.1} parent=11 // pred_check_branch
          %340 = sbr.rel (%p338) target = $region40
        $region39: #{tpu_custom_call.1} parent=11 // pred_region
          _
        $region40: #{tpu_custom_call.1} parent=11 // pred_fallthru
          _
        // Predicated region
        $region41: #{tpu_custom_call.1} parent=11 // pred_check
          %p341 = pneg %p216
        $region42: #{tpu_custom_call.1} parent=11 // pred_check_branch
          %343 = sbr.rel (%p341) target = $region44
        $region43: #{tpu_custom_call.1} parent=11 // pred_region
          %s345 = ssub.s32 512, 512
          %346 = vsyncadd [#allocation4], %s345
          %s347 = sshll.u32 [#allocation3], 4
          %s348 = int_to_ptr.vmem [resolvable:$true] %s347
          %353 = dma.hbm_to_vmem [thread:$0]  %s8, 512, %s348, [#allocation4], 128, 128, 8
        $region44: #{tpu_custom_call.1} parent=11 // pred_fallthru
          _
        // Predicated region
        $region45: #{tpu_custom_call.1} parent=11 // pred_check
          %p354 = pneg %p237
        $region46: #{tpu_custom_call.1} parent=11 // pred_check_branch
          %356 = sbr.rel (%p354) target = $region48
        $region47: #{tpu_custom_call.1} parent=11 // pred_region
          _
        $region48: #{tpu_custom_call.1} parent=11 // pred_fallthru
          _
        // Predicated region
        $region49: #{tpu_custom_call.1} parent=11 // pred_check
          %p357 = pneg %p258
        $region50: #{tpu_custom_call.1} parent=11 // pred_check_branch
          %359 = sbr.rel (%p357) target = $region52
        $region51: #{tpu_custom_call.1} parent=11 // pred_region
          _
        $region52: #{tpu_custom_call.1} parent=11 // pred_fallthru
          _
        // Predicated region
        $region53: #{tpu_custom_call.1} parent=11 // pred_check
          %p360 = pneg %p279
        $region54: #{tpu_custom_call.1} parent=11 // pred_check_branch
          %362 = sbr.rel (%p360) target = $region56
        $region55: #{tpu_custom_call.1} parent=11 // pred_region
          _
        $region56: #{tpu_custom_call.1} parent=11 // pred_fallthru
          _
      $region12: #{tpu_custom_call.1} parent=5 // pred_fallthru
        _
      %p363 = scmp.lt.s32.totalorder %s22, 2
      // Predicated region
      $region57: #{tpu_custom_call.1} parent=5 // pred_check
        %p364 = pneg %p363
      $region58: #{tpu_custom_call.1} parent=5 // pred_check_branch
        %366 = sbr.rel (%p364) target = $region60
      $region59: #{tpu_custom_call.1} parent=5 // pred_region
        // Predicated region
        $region61: #{tpu_custom_call.1} parent=59 // pred_check
          %p367 = pneg %p42
        $region62: #{tpu_custom_call.1} parent=59 // pred_check_branch
          %369 = sbr.rel (%p367) target = $region64
        $region63: #{tpu_custom_call.1} parent=59 // pred_region
          %s370 = smul.u32 2, %s22
          %p371 = scmp.lt.s32.totalorder %s370, 3
          %s372 = scalar_select %p371, %s370, 3
          %s373 = smul.addr %s372, 8
          %s374 = scalar_lea.vmem %s0, %s373
          %s375 = smul.u32 2, %s22
        $region64: #{tpu_custom_call.1} parent=59 // pred_fallthru
          _
      $region60: #{tpu_custom_call.1} parent=5 // pred_fallthru
        _
      %p376 = scmp.le.s32.totalorder 1, %s22
      %p377 = scmp.lt.s32.totalorder %s22, 3
      %p378 = pnand %p376, %p377
      %p379 = pneg %p378
      // Predicated region
      $region65: #{tpu_custom_call.1} parent=5 // pred_check
        _
      $region66: #{tpu_custom_call.1} parent=5 // pred_check_branch
        %381 = sbr.rel (%p378) target = $region68
      $region67: #{tpu_custom_call.1} parent=5 // pred_region
        %s382 = ssub.s32 %s22, 1
        // Predicated region
        $region69: #{tpu_custom_call.1} parent=67 // pred_check
          %p383 = pneg %p216
        $region70: #{tpu_custom_call.1} parent=67 // pred_check_branch
          %385 = sbr.rel (%p383) target = $region72
        $region71: #{tpu_custom_call.1} parent=67 // pred_region
          %386 = dma.done [#allocation4], 512
        $region72: #{tpu_custom_call.1} parent=67 // pred_fallthru
          _
        %s387 = smul.u32 2, %s27
        %p388 = scmp.lt.s32.totalorder %s387, 3
        %s389 = scalar_select %p388, %s387, 3
        %s390 = smul.addr %s389, 8
        %s391 = scalar_lea.vmem %s0, %s390
        %p392 = pneg %p48
        %p393 = pneg %p45
        %p394 = pneg %p69
        %p395 = pneg %p66
        %p396 = pneg %p90
        %p397 = pneg %p87
        %p398 = pneg %p111
        %p399 = pneg %p108
        %p400 = pneg %p132
        %p401 = pneg %p129
        %p402 = pneg %p153
        %p403 = pneg %p150
        %p404 = pneg %p174
        %p405 = pneg %p171
        %p406 = pneg %p195
        %p407 = pneg %p192
        %p408 = pneg %p216
        %p409 = pneg %p213
        %p410 = pneg %p237
        %p411 = pneg %p234
        %p412 = pneg %p258
        %p413 = pneg %p255
        %p414 = pneg %p279
        %p415 = pneg %p276
        %p416 = pneg %p305
        %p417 = pneg %p302
        %s418 = sand.u32 %s292, 1
        %s419 = scalar_lea.sflag [#allocation5], %s418
        %s420 = sand.u32 %s292, 1
        %s421 = smul.addr %s420, 16
        %s422 = scalar_lea.vmem [#allocation6], %s421
        %s423 = smul.u32 2, %s27
        %p424 = scmp.lt.s32.totalorder %s423, 3
        %s425 = scalar_select %p424, %s423, 3
        %s426 = smul.addr %s425, 8
        %s427 = scalar_lea.vmem %s0, %s426
        %s428 = smul.u32 2, %s27
        %s429 = smul.u32 2, %s27
        %v430 = vld [vmem:[%s427] sm:$0xff]
        %v431 = vld [vmem:[%s427 + $0x8] sm:$0xff]
        %v432 = vld [vmem:[%s1] sm:$0x1]
        %v433 = vld [vmem:[%s2] sm:$0x1]
        %vm434 = vcmask 261120
        %v435 = vsel %vm434, %v430, 0.0
        %436 = vadd.xlane.f32.xlu0 %v435
        %v437 = vpop.xlane.xlu0 %436
        %v438 = vsel %vm434, %v431, 0.0
        %439 = vadd.xlane.f32.xlu0 %v438
        %v440 = vpop.xlane.xlu0 %439
        %v441 = vrcp.pop 32.0
        %v442 = vmul.f32 %v437, %v441
        %v443 = vmul.f32 %v440, %v441
        %v444 = vsub.f32 %v430, %v442
        %v445 = vsub.f32 %v431, %v443
        %v446 = vmul.f32 %v444, %v444
        %v447 = vmul.f32 %v445, %v445
        %v448 = vsel %vm434, %v446, 0.0
        %449 = vadd.xlane.f32.xlu0 %v448
        %v450 = vpop.xlane.xlu0 %449
        %v451 = vsel %vm434, %v447, 0.0
        %452 = vadd.xlane.f32.xlu0 %v451
        %v453 = vpop.xlane.xlu0 %452
        %v454 = vmul.f32 %v450, %v441
        %v455 = vmul.f32 %v453, %v441
        %v456 = vadd.f32 %v454, 1e-05
        %v457 = vadd.f32 %v455, 1e-05
        %v458 = vrsqrt.pop %v456
        %v459 = vrsqrt.pop %v457
        %v460 = vmul.f32 %v444, %v458
        %v461 = vmul.f32 %v445, %v459
        %v463 = vlaneseq
        %v464 = vshrl.u32 %v463, 7
        %v465 = vsub.s32 0, %v464
        %v466 = vrot.slane %v432, %v465
        %v468 = vmul.f32 %v460, %v466
        %v469 = vmul.f32 %v461, %v466
        %v471 = vlaneseq
        %v472 = vshrl.u32 %v471, 7
        %v473 = vsub.s32 0, %v472
        %v474 = vrot.slane %v433, %v473
        %v476 = vadd.f32 %v468, %v474
        %v477 = vadd.f32 %v469, %v474
        %v478 = vld [vmem:[%s3] sm:$0xff]
        %v479 = vld [vmem:[%s3 + $0x8] sm:$0xff]
        %v480 = vld [vmem:[%s3 + $0x10] sm:$0xff]
        %v481 = vld [vmem:[%s3 + $0x18] sm:$0xff]
        %v483 = vsel %vm434, %v476, 0
        %v486 = vsel %vm434, %v477, 0
        %488 = vmatprep.subr.mxu0 0.0
        %489 = vmatpush1.msra.mxu0 0.0
        %490 = vmatprep.subr.mxu0 0.0
        %491 = vmatpush1.msra.mxu0 0.0
        %492 = vmatprep.subr.mxu0 0.0
        %493 = vmatpush1.msra.mxu0 0.0
        %494 = vmatprep.subr.mxu0 0.0
        %495 = vmatpush1.msra.mxu0 0.0
        %496 = vmatprep.subr.mxu0 0.0
        %497 = vmatpush1.msra.mxu0 0.0
        %498 = vmatprep.subr.mxu0 0.0
        %499 = vmatpush1.msra.mxu0 0.0
        %500 = vmatprep.subr.mxu0 0.0
        %501 = vmatpush1.msra.mxu0 0.0
        %502 = vmatprep.subr.mxu0 0.0
        %503 = vmatpush1.msra.mxu0 0.0
        %504 = vmatprep.subr.mxu0 0.0
        %505 = vmatpush1.msra.mxu0 0.0
        %506 = vmatprep.subr.mxu0 0.0
        %507 = vmatpush1.msra.mxu0 0.0
        %508 = vmatprep.subr.mxu0 0.0
        %509 = vmatpush1.msra.mxu0 0.0
        %510 = vmatprep.subr.mxu0 0.0
        %511 = vmatpush1.msra.mxu0 0.0
        %512 = vmatprep.subr.mxu0 0.0
        %513 = vmatpush1.msra.mxu0 %v481
        %514 = vmatprep.subr.mxu0 0.0
        %515 = vmatpush1.msra.mxu0 %v480
        %516 = vmatprep.subr.mxu0 0.0
        %517 = vmatpush1.msra.mxu0 %v479
        %518 = vmatprep.subr.mxu0 0.0
        %519 = vmatpush1.msra.mxu0 %v478
        %520 = vmatprep.subr.mxu0 0.0
        %521 = vmatpush2.msra.mxu0 0.0
        %522 = vmatprep.subr.mxu0 0.0
        %523 = vmatpush2.msra.mxu0 0.0
        %524 = vmatprep.subr.mxu0 0.0
        %525 = vmatpush2.msra.mxu0 0.0
        %526 = vmatprep.subr.mxu0 0.0
        %527 = vmatpush2.msra.mxu0 0.0
        %528 = vmatprep.subr.mxu0 0.0
        %529 = vmatpush2.msra.mxu0 0.0
        %530 = vmatprep.subr.mxu0 0.0
        %531 = vmatpush2.msra.mxu0 0.0
        %532 = vmatprep.subr.mxu0 0.0
        %533 = vmatpush2.msra.mxu0 0.0
        %534 = vmatprep.subr.mxu0 0.0
        %535 = vmatpush2.msra.mxu0 0.0
        %536 = vmatprep.subr.mxu0 0.0
        %537 = vmatpush2.msra.mxu0 0.0
        %538 = vmatprep.subr.mxu0 0.0
        %539 = vmatpush2.msra.mxu0 0.0
        %540 = vmatprep.subr.mxu0 0.0
        %541 = vmatpush2.msra.mxu0 0.0
        %542 = vmatprep.subr.mxu0 0.0
        %543 = vmatpush2.msra.mxu0 0.0
        %544 = vmatprep.subr.mxu0 0.0
        %545 = vmatpush2.msra.mxu0 0.0
        %546 = vmatprep.subr.mxu0 0.0
        %547 = vmatpush2.msra.mxu0 0.0
        %548 = vmatprep.subr.mxu0 0.0
        %549 = vmatpush2.msra.mxu0 0.0
        %550 = vmatprep.subr.mxu0 0.0
        %551 = vmatpush2.msra.mxu0 0.0
        %552 = vmatprep.mubr.f32.mxu0 0.0
        %553 = vmatmul.mubr.f32.gmra.mxu0 %v483
        %v554 = vpop.f32.mrf.mxu0
        %v555 = vadd.f32 0.0, %v554
        %v556 = vpop.f32.mrf.mxu0
        %557 = vmatprep.mubr.f32.mxu0 0.0
        %558 = vmatmul.mubr.f32.gmra.mxu0 %v486
        %v559 = vpop.f32.mrf.mxu0
        %v560 = vadd.f32 0.0, %v559
        %v561 = vpop.f32.mrf.mxu0
        %562 = vdwg.mxu0
        %564 = vrot.lane.b32.xlu0 %v555, 96
        %v565 = vpop.permute.xlu0 %564
        %vm566 = vcmask 64512
        %v567 = vsel %vm566, %v555, 0
        %v569 = vsel %vm566, %v565, 0
        %571 = vmatprep.subr.mxu0 0.0
        %572 = vmatpush1.xpose.msra.mxu0 0.0
        %573 = vmatprep.subr.mxu0 0.0
        %574 = vmatpush1.xpose.msra.mxu0 0.0
        %575 = vmatprep.subr.mxu0 0.0
        %576 = vmatpush1.xpose.msra.mxu0 0.0
        %577 = vmatprep.subr.mxu0 0.0
        %578 = vmatpush1.xpose.msra.mxu0 0.0
        %579 = vmatprep.subr.mxu0 0.0
        %580 = vmatpush1.xpose.msra.mxu0 0.0
        %581 = vmatprep.subr.mxu0 0.0
        %582 = vmatpush1.xpose.msra.mxu0 0.0
        %583 = vmatprep.subr.mxu0 0.0
        %584 = vmatpush1.xpose.msra.mxu0 0.0
        %585 = vmatprep.subr.mxu0 0.0
        %586 = vmatpush1.xpose.msra.mxu0 0.0
        %587 = vmatprep.subr.mxu0 0.0
        %588 = vmatpush1.xpose.msra.mxu0 0.0
        %589 = vmatprep.subr.mxu0 0.0
        %590 = vmatpush1.xpose.msra.mxu0 0.0
        %591 = vmatprep.subr.mxu0 0.0
        %592 = vmatpush1.xpose.msra.mxu0 0.0
        %593 = vmatprep.subr.mxu0 0.0
        %594 = vmatpush1.xpose.msra.mxu0 0.0
        %595 = vmatprep.subr.mxu0 0.0
        %596 = vmatpush1.xpose.msra.mxu0 0.0
        %597 = vmatprep.subr.mxu0 0.0
        %598 = vmatpush1.xpose.msra.mxu0 0.0
        %599 = vmatprep.subr.mxu0 0.0
        %600 = vmatpush1.xpose.msra.mxu0 0.0
        %601 = vmatprep.subr.mxu0 0.0
        %602 = vmatpush1.xpose.msra.mxu0 %v569
        %603 = vmatprep.subr.mxu0 0.0
        %604 = vmatpush2.xpose.msra.mxu0 0.0
        %605 = vmatprep.subr.mxu0 0.0
        %606 = vmatpush2.xpose.msra.mxu0 0.0
        %607 = vmatprep.subr.mxu0 0.0
        %608 = vmatpush2.xpose.msra.mxu0 0.0
        %609 = vmatprep.subr.mxu0 0.0
        %610 = vmatpush2.xpose.msra.mxu0 0.0
        %611 = vmatprep.subr.mxu0 0.0
        %612 = vmatpush2.xpose.msra.mxu0 0.0
        %613 = vmatprep.subr.mxu0 0.0
        %614 = vmatpush2.xpose.msra.mxu0 0.0
        %615 = vmatprep.subr.mxu0 0.0
        %616 = vmatpush2.xpose.msra.mxu0 0.0
        %617 = vmatprep.subr.mxu0 0.0
        %618 = vmatpush2.xpose.msra.mxu0 0.0
        %619 = vmatprep.subr.mxu0 0.0
        %620 = vmatpush2.xpose.msra.mxu0 0.0
        %621 = vmatprep.subr.mxu0 0.0
        %622 = vmatpush2.xpose.msra.mxu0 0.0
        %623 = vmatprep.subr.mxu0 0.0
        %624 = vmatpush2.xpose.msra.mxu0 0.0
        %625 = vmatprep.subr.mxu0 0.0
        %626 = vmatpush2.xpose.msra.mxu0 0.0
        %627 = vmatprep.subr.mxu0 0.0
        %628 = vmatpush2.xpose.msra.mxu0 0.0
        %629 = vmatprep.subr.mxu0 0.0
        %630 = vmatpush2.xpose.msra.mxu0 0.0
        %631 = vmatprep.subr.mxu0 0.0
        %632 = vmatpush2.xpose.msra.mxu0 0.0
        %633 = vmatprep.subr.mxu0 0.0
        %634 = vmatpush2.xpose.msra.mxu0 0.0
        %635 = vmatprep.mubr.f32.mxu0 0.0
        %636 = vmatmul.mubr.f32.gmra.mxu0 %v567
        %v637 = vpop.f32.mrf.mxu0
        %v638 = vadd.f32 0.0, %v637
        %v639 = vpop.f32.mrf.mxu0
        %640 = vdwg.mxu0
        %642 = vrot.lane.b32.xlu0 %v560, 96
        %v643 = vpop.permute.xlu0 %642
        %v644 = vsel %vm566, %v560, 0
        %v646 = vsel %vm566, %v643, 0
        %648 = vmatprep.subr.mxu0 0.0
        %649 = vmatpush1.xpose.msra.mxu0 0.0
        %650 = vmatprep.subr.mxu0 0.0
        %651 = vmatpush1.xpose.msra.mxu0 0.0
        %652 = vmatprep.subr.mxu0 0.0
        %653 = vmatpush1.xpose.msra.mxu0 0.0
        %654 = vmatprep.subr.mxu0 0.0
        %655 = vmatpush1.xpose.msra.mxu0 0.0
        %656 = vmatprep.subr.mxu0 0.0
        %657 = vmatpush1.xpose.msra.mxu0 0.0
        %658 = vmatprep.subr.mxu0 0.0
        %659 = vmatpush1.xpose.msra.mxu0 0.0
        %660 = vmatprep.subr.mxu0 0.0
        %661 = vmatpush1.xpose.msra.mxu0 0.0
        %662 = vmatprep.subr.mxu0 0.0
        %663 = vmatpush1.xpose.msra.mxu0 0.0
        %664 = vmatprep.subr.mxu0 0.0
        %665 = vmatpush1.xpose.msra.mxu0 0.0
        %666 = vmatprep.subr.mxu0 0.0
        %667 = vmatpush1.xpose.msra.mxu0 0.0
        %668 = vmatprep.subr.mxu0 0.0
        %669 = vmatpush1.xpose.msra.mxu0 0.0
        %670 = vmatprep.subr.mxu0 0.0
        %671 = vmatpush1.xpose.msra.mxu0 0.0
        %672 = vmatprep.subr.mxu0 0.0
        %673 = vmatpush1.xpose.msra.mxu0 0.0
        %674 = vmatprep.subr.mxu0 0.0
        %675 = vmatpush1.xpose.msra.mxu0 0.0
        %676 = vmatprep.subr.mxu0 0.0
        %677 = vmatpush1.xpose.msra.mxu0 0.0
        %678 = vmatprep.subr.mxu0 0.0
        %679 = vmatpush1.xpose.msra.mxu0 %v646
        %680 = vmatprep.subr.mxu0 0.0
        %681 = vmatpush2.xpose.msra.mxu0 0.0
        %682 = vmatprep.subr.mxu0 0.0
        %683 = vmatpush2.xpose.msra.mxu0 0.0
        %684 = vmatprep.subr.mxu0 0.0
        %685 = vmatpush2.xpose.msra.mxu0 0.0
        %686 = vmatprep.subr.mxu0 0.0
        %687 = vmatpush2.xpose.msra.mxu0 0.0
        %688 = vmatprep.subr.mxu0 0.0
        %689 = vmatpush2.xpose.msra.mxu0 0.0
        %690 = vmatprep.subr.mxu0 0.0
        %691 = vmatpush2.xpose.msra.mxu0 0.0
        %692 = vmatprep.subr.mxu0 0.0
        %693 = vmatpush2.xpose.msra.mxu0 0.0
        %694 = vmatprep.subr.mxu0 0.0
        %695 = vmatpush2.xpose.msra.mxu0 0.0
        %696 = vmatprep.subr.mxu0 0.0
        %697 = vmatpush2.xpose.msra.mxu0 0.0
        %698 = vmatprep.subr.mxu0 0.0
        %699 = vmatpush2.xpose.msra.mxu0 0.0
        %700 = vmatprep.subr.mxu0 0.0
        %701 = vmatpush2.xpose.msra.mxu0 0.0
        %702 = vmatprep.subr.mxu0 0.0
        %703 = vmatpush2.xpose.msra.mxu0 0.0
        %704 = vmatprep.subr.mxu0 0.0
        %705 = vmatpush2.xpose.msra.mxu0 0.0
        %706 = vmatprep.subr.mxu0 0.0
        %707 = vmatpush2.xpose.msra.mxu0 0.0
        %708 = vmatprep.subr.mxu0 0.0
        %709 = vmatpush2.xpose.msra.mxu0 0.0
        %710 = vmatprep.subr.mxu0 0.0
        %711 = vmatpush2.xpose.msra.mxu0 0.0
        %712 = vmatprep.mubr.f32.mxu0 0.0
        %713 = vmatmul.mubr.f32.gmra.mxu0 %v644
        %v714 = vpop.f32.mrf.mxu0
        %v715 = vadd.f32 0.0, %v714
        %v716 = vpop.f32.mrf.mxu0
        %717 = vdwg.mxu0
        %v718 = vsel %vm566, %v638, -inf
        %719 = vmax.xlane.f32.xlu0 %v718
        %v720 = vpop.xlane.xlu0 %719
        %v721 = vsel %vm566, %v715, -inf
        %722 = vmax.xlane.f32.xlu0 %v721
        %v723 = vpop.xlane.xlu0 %722
        %v724 = vsub.f32 %v638, %v720
        %v725 = vsub.f32 %v715, %v723
        %v726 = vmul.f32 %v724, 1.442695
        %v727 = vpow.pop %v726
        %v728 = vmul.f32 %v725, 1.442695
        %v729 = vpow.pop %v728
        %v730 = vsel %vm566, %v727, 0.0
        %731 = vadd.xlane.f32.xlu0 %v730
        %v732 = vpop.xlane.xlu0 %731
        %v733 = vsel %vm566, %v729, 0.0
        %734 = vadd.xlane.f32.xlu0 %v733
        %v735 = vpop.xlane.xlu0 %734
        %v736 = vrcp.pop %v732
        %v737 = vrcp.pop %v735
        %v738 = vmul.f32 %v727, %v736
        %v739 = vmul.f32 %v729, %v737
        %740 = vrot.lane.b32.xlu0 %v555, 64
        %v741 = vpop.permute.xlu0 %740
        %v744 = vsel %vm566, %v738, 0
        %746 = vmatprep.subr.mxu0 0.0
        %747 = vmatpush1.msra.mxu0 0.0
        %748 = vmatprep.subr.mxu0 0.0
        %749 = vmatpush1.msra.mxu0 0.0
        %750 = vmatprep.subr.mxu0 0.0
        %751 = vmatpush1.msra.mxu0 0.0
        %752 = vmatprep.subr.mxu0 0.0
        %753 = vmatpush1.msra.mxu0 0.0
        %754 = vmatprep.subr.mxu0 0.0
        %755 = vmatpush1.msra.mxu0 0.0
        %756 = vmatprep.subr.mxu0 0.0
        %757 = vmatpush1.msra.mxu0 0.0
        %758 = vmatprep.subr.mxu0 0.0
        %759 = vmatpush1.msra.mxu0 0.0
        %760 = vmatprep.subr.mxu0 0.0
        %761 = vmatpush1.msra.mxu0 0.0
        %762 = vmatprep.subr.mxu0 0.0
        %763 = vmatpush1.msra.mxu0 0.0
        %764 = vmatprep.subr.mxu0 0.0
        %765 = vmatpush1.msra.mxu0 0.0
        %766 = vmatprep.subr.mxu0 0.0
        %767 = vmatpush1.msra.mxu0 0.0
        %768 = vmatprep.subr.mxu0 0.0
        %769 = vmatpush1.msra.mxu0 0.0
        %770 = vmatprep.subr.mxu0 0.0
        %771 = vmatpush1.msra.mxu0 0.0
        %772 = vmatprep.subr.mxu0 0.0
        %773 = vmatpush1.msra.mxu0 0.0
        %774 = vmatprep.subr.mxu0 0.0
        %775 = vmatpush1.msra.mxu0 0.0
        %776 = vmatprep.subr.mxu0 0.0
        %777 = vmatpush1.msra.mxu0 %v741
        %778 = vmatprep.subr.mxu0 0.0
        %779 = vmatpush2.msra.mxu0 0.0
        %780 = vmatprep.subr.mxu0 0.0
        %781 = vmatpush2.msra.mxu0 0.0
        %782 = vmatprep.subr.mxu0 0.0
        %783 = vmatpush2.msra.mxu0 0.0
        %784 = vmatprep.subr.mxu0 0.0
        %785 = vmatpush2.msra.mxu0 0.0
        %786 = vmatprep.subr.mxu0 0.0
        %787 = vmatpush2.msra.mxu0 0.0
        %788 = vmatprep.subr.mxu0 0.0
        %789 = vmatpush2.msra.mxu0 0.0
        %790 = vmatprep.subr.mxu0 0.0
        %791 = vmatpush2.msra.mxu0 0.0
        %792 = vmatprep.subr.mxu0 0.0
        %793 = vmatpush2.msra.mxu0 0.0
        %794 = vmatprep.subr.mxu0 0.0
        %795 = vmatpush2.msra.mxu0 0.0
        %796 = vmatprep.subr.mxu0 0.0
        %797 = vmatpush2.msra.mxu0 0.0
        %798 = vmatprep.subr.mxu0 0.0
        %799 = vmatpush2.msra.mxu0 0.0
        %800 = vmatprep.subr.mxu0 0.0
        %801 = vmatpush2.msra.mxu0 0.0
        %802 = vmatprep.subr.mxu0 0.0
        %803 = vmatpush2.msra.mxu0 0.0
        %804 = vmatprep.subr.mxu0 0.0
        %805 = vmatpush2.msra.mxu0 0.0
        %806 = vmatprep.subr.mxu0 0.0
        %807 = vmatpush2.msra.mxu0 0.0
        %808 = vmatprep.subr.mxu0 0.0
        %809 = vmatpush2.msra.mxu0 0.0
        %810 = vmatprep.mubr.f32.mxu0 0.0
        %811 = vmatmul.mubr.f32.gmra.mxu0 %v744
        %v812 = vpop.f32.mrf.mxu0
        %v813 = vadd.f32 0.0, %v812
        %v814 = vpop.f32.mrf.mxu0
        %815 = vdwg.mxu0
        %816 = vrot.lane.b32.xlu0 %v560, 64
        %v817 = vpop.permute.xlu0 %816
        %v820 = vsel %vm566, %v739, 0
        %822 = vmatprep.subr.mxu0 0.0
        %823 = vmatpush1.msra.mxu0 0.0
        %824 = vmatprep.subr.mxu0 0.0
        %825 = vmatpush1.msra.mxu0 0.0
        %826 = vmatprep.subr.mxu0 0.0
        %827 = vmatpush1.msra.mxu0 0.0
        %828 = vmatprep.subr.mxu0 0.0
        %829 = vmatpush1.msra.mxu0 0.0
        %830 = vmatprep.subr.mxu0 0.0
        %831 = vmatpush1.msra.mxu0 0.0
        %832 = vmatprep.subr.mxu0 0.0
        %833 = vmatpush1.msra.mxu0 0.0
        %834 = vmatprep.subr.mxu0 0.0
        %835 = vmatpush1.msra.mxu0 0.0
        %836 = vmatprep.subr.mxu0 0.0
        %837 = vmatpush1.msra.mxu0 0.0
        %838 = vmatprep.subr.mxu0 0.0
        %839 = vmatpush1.msra.mxu0 0.0
        %840 = vmatprep.subr.mxu0 0.0
        %841 = vmatpush1.msra.mxu0 0.0
        %842 = vmatprep.subr.mxu0 0.0
        %843 = vmatpush1.msra.mxu0 0.0
        %844 = vmatprep.subr.mxu0 0.0
        %845 = vmatpush1.msra.mxu0 0.0
        %846 = vmatprep.subr.mxu0 0.0
        %847 = vmatpush1.msra.mxu0 0.0
        %848 = vmatprep.subr.mxu0 0.0
        %849 = vmatpush1.msra.mxu0 0.0
        %850 = vmatprep.subr.mxu0 0.0
        %851 = vmatpush1.msra.mxu0 0.0
        %852 = vmatprep.subr.mxu0 0.0
        %853 = vmatpush1.msra.mxu0 %v817
        %854 = vmatprep.subr.mxu0 0.0
        %855 = vmatpush2.msra.mxu0 0.0
        %856 = vmatprep.subr.mxu0 0.0
        %857 = vmatpush2.msra.mxu0 0.0
        %858 = vmatprep.subr.mxu0 0.0
        %859 = vmatpush2.msra.mxu0 0.0
        %860 = vmatprep.subr.mxu0 0.0
        %861 = vmatpush2.msra.mxu0 0.0
        %862 = vmatprep.subr.mxu0 0.0
        %863 = vmatpush2.msra.mxu0 0.0
        %864 = vmatprep.subr.mxu0 0.0
        %865 = vmatpush2.msra.mxu0 0.0
        %866 = vmatprep.subr.mxu0 0.0
        %867 = vmatpush2.msra.mxu0 0.0
        %868 = vmatprep.subr.mxu0 0.0
        %869 = vmatpush2.msra.mxu0 0.0
        %870 = vmatprep.subr.mxu0 0.0
        %871 = vmatpush2.msra.mxu0 0.0
        %872 = vmatprep.subr.mxu0 0.0
        %873 = vmatpush2.msra.mxu0 0.0
        %874 = vmatprep.subr.mxu0 0.0
        %875 = vmatpush2.msra.mxu0 0.0
        %876 = vmatprep.subr.mxu0 0.0
        %877 = vmatpush2.msra.mxu0 0.0
        %878 = vmatprep.subr.mxu0 0.0
        %879 = vmatpush2.msra.mxu0 0.0
        %880 = vmatprep.subr.mxu0 0.0
        %881 = vmatpush2.msra.mxu0 0.0
        %882 = vmatprep.subr.mxu0 0.0
        %883 = vmatpush2.msra.mxu0 0.0
        %884 = vmatprep.subr.mxu0 0.0
        %885 = vmatpush2.msra.mxu0 0.0
        %886 = vmatprep.mubr.f32.mxu0 0.0
        %887 = vmatmul.mubr.f32.gmra.mxu0 %v820
        %v888 = vpop.f32.mrf.mxu0
        %v889 = vadd.f32 0.0, %v888
        %v890 = vpop.f32.mrf.mxu0
        %891 = vdwg.mxu0
        %892 = vst.msk [vmem:[#allocation2] sm:$0xff] %vm566, %v813
        %893 = vst.msk [vmem:[#allocation2 + $0x8] sm:$0xff] %vm566, %v889
        %894 = vrot.lane.b32.xlu0 %v555, 120
        %v895 = vpop.permute.xlu0 %894
        %896 = vrot.lane.b32.xlu0 %v555, 88
        %v897 = vpop.permute.xlu0 %896
        %v898 = vsel %vm566, %v895, 0
        %v900 = vsel %vm566, %v897, 0
        %902 = vmatprep.subr.mxu0 0.0
        %903 = vmatpush1.xpose.msra.mxu0 0.0
        %904 = vmatprep.subr.mxu0 0.0
        %905 = vmatpush1.xpose.msra.mxu0 0.0
        %906 = vmatprep.subr.mxu0 0.0
        %907 = vmatpush1.xpose.msra.mxu0 0.0
        %908 = vmatprep.subr.mxu0 0.0
        %909 = vmatpush1.xpose.msra.mxu0 0.0
        %910 = vmatprep.subr.mxu0 0.0
        %911 = vmatpush1.xpose.msra.mxu0 0.0
        %912 = vmatprep.subr.mxu0 0.0
        %913 = vmatpush1.xpose.msra.mxu0 0.0
        %914 = vmatprep.subr.mxu0 0.0
        %915 = vmatpush1.xpose.msra.mxu0 0.0
        %916 = vmatprep.subr.mxu0 0.0
        %917 = vmatpush1.xpose.msra.mxu0 0.0
        %918 = vmatprep.subr.mxu0 0.0
        %919 = vmatpush1.xpose.msra.mxu0 0.0
        %920 = vmatprep.subr.mxu0 0.0
        %921 = vmatpush1.xpose.msra.mxu0 0.0
        %922 = vmatprep.subr.mxu0 0.0
        %923 = vmatpush1.xpose.msra.mxu0 0.0
        %924 = vmatprep.subr.mxu0 0.0
        %925 = vmatpush1.xpose.msra.mxu0 0.0
        %926 = vmatprep.subr.mxu0 0.0
        %927 = vmatpush1.xpose.msra.mxu0 0.0
        %928 = vmatprep.subr.mxu0 0.0
        %929 = vmatpush1.xpose.msra.mxu0 0.0
        %930 = vmatprep.subr.mxu0 0.0
        %931 = vmatpush1.xpose.msra.mxu0 0.0
        %932 = vmatprep.subr.mxu0 0.0
        %933 = vmatpush1.xpose.msra.mxu0 %v900
        %934 = vmatprep.subr.mxu0 0.0
        %935 = vmatpush2.xpose.msra.mxu0 0.0
        %936 = vmatprep.subr.mxu0 0.0
        %937 = vmatpush2.xpose.msra.mxu0 0.0
        %938 = vmatprep.subr.mxu0 0.0
        %939 = vmatpush2.xpose.msra.mxu0 0.0
        %940 = vmatprep.subr.mxu0 0.0
        %941 = vmatpush2.xpose.msra.mxu0 0.0
        %942 = vmatprep.subr.mxu0 0.0
        %943 = vmatpush2.xpose.msra.mxu0 0.0
        %944 = vmatprep.subr.mxu0 0.0
        %945 = vmatpush2.xpose.msra.mxu0 0.0
        %946 = vmatprep.subr.mxu0 0.0
        %947 = vmatpush2.xpose.msra.mxu0 0.0
        %948 = vmatprep.subr.mxu0 0.0
        %949 = vmatpush2.xpose.msra.mxu0 0.0
        %950 = vmatprep.subr.mxu0 0.0
        %951 = vmatpush2.xpose.msra.mxu0 0.0
        %952 = vmatprep.subr.mxu0 0.0
        %953 = vmatpush2.xpose.msra.mxu0 0.0
        %954 = vmatprep.subr.mxu0 0.0
        %955 = vmatpush2.xpose.msra.mxu0 0.0
        %956 = vmatprep.subr.mxu0 0.0
        %957 = vmatpush2.xpose.msra.mxu0 0.0
        %958 = vmatprep.subr.mxu0 0.0
        %959 = vmatpush2.xpose.msra.mxu0 0.0
        %960 = vmatprep.subr.mxu0 0.0
        %961 = vmatpush2.xpose.msra.mxu0 0.0
        %962 = vmatprep.subr.mxu0 0.0
        %963 = vmatpush2.xpose.msra.mxu0 0.0
        %964 = vmatprep.subr.mxu0 0.0
        %965 = vmatpush2.xpose.msra.mxu0 0.0
        %966 = vmatprep.mubr.f32.mxu0 0.0
        %967 = vmatmul.mubr.f32.gmra.mxu0 %v898
        %v968 = vpop.f32.mrf.mxu0
        %v969 = vadd.f32 0.0, %v968
        %v970 = vpop.f32.mrf.mxu0
        %971 = vdwg.mxu0
        %972 = vrot.lane.b32.xlu0 %v560, 120
        %v973 = vpop.permute.xlu0 %972
        %974 = vrot.lane.b32.xlu0 %v560, 88
        %v975 = vpop.permute.xlu0 %974
        %v976 = vsel %vm566, %v973, 0
        %v978 = vsel %vm566, %v975, 0
        %980 = vmatprep.subr.mxu0 0.0
        %981 = vmatpush1.xpose.msra.mxu0 0.0
        %982 = vmatprep.subr.mxu0 0.0
        %983 = vmatpush1.xpose.msra.mxu0 0.0
        %984 = vmatprep.subr.mxu0 0.0
        %985 = vmatpush1.xpose.msra.mxu0 0.0
        %986 = vmatprep.subr.mxu0 0.0
        %987 = vmatpush1.xpose.msra.mxu0 0.0
        %988 = vmatprep.subr.mxu0 0.0
        %989 = vmatpush1.xpose.msra.mxu0 0.0
        %990 = vmatprep.subr.mxu0 0.0
        %991 = vmatpush1.xpose.msra.mxu0 0.0
        %992 = vmatprep.subr.mxu0 0.0
        %993 = vmatpush1.xpose.msra.mxu0 0.0
        %994 = vmatprep.subr.mxu0 0.0
        %995 = vmatpush1.xpose.msra.mxu0 0.0
        %996 = vmatprep.subr.mxu0 0.0
        %997 = vmatpush1.xpose.msra.mxu0 0.0
        %998 = vmatprep.subr.mxu0 0.0
        %999 = vmatpush1.xpose.msra.mxu0 0.0
        %1000 = vmatprep.subr.mxu0 0.0
        %1001 = vmatpush1.xpose.msra.mxu0 0.0
        %1002 = vmatprep.subr.mxu0 0.0
        %1003 = vmatpush1.xpose.msra.mxu0 0.0
        %1004 = vmatprep.subr.mxu0 0.0
        %1005 = vmatpush1.xpose.msra.mxu0 0.0
        %1006 = vmatprep.subr.mxu0 0.0
        %1007 = vmatpush1.xpose.msra.mxu0 0.0
        %1008 = vmatprep.subr.mxu0 0.0
        %1009 = vmatpush1.xpose.msra.mxu0 0.0
        %1010 = vmatprep.subr.mxu0 0.0
        %1011 = vmatpush1.xpose.msra.mxu0 %v978
        %1012 = vmatprep.subr.mxu0 0.0
        %1013 = vmatpush2.xpose.msra.mxu0 0.0
        %1014 = vmatprep.subr.mxu0 0.0
        %1015 = vmatpush2.xpose.msra.mxu0 0.0
        %1016 = vmatprep.subr.mxu0 0.0
        %1017 = vmatpush2.xpose.msra.mxu0 0.0
        %1018 = vmatprep.subr.mxu0 0.0
        %1019 = vmatpush2.xpose.msra.mxu0 0.0
        %1020 = vmatprep.subr.mxu0 0.0
        %1021 = vmatpush2.xpose.msra.mxu0 0.0
        %1022 = vmatprep.subr.mxu0 0.0
        %1023 = vmatpush2.xpose.msra.mxu0 0.0
        %1024 = vmatprep.subr.mxu0 0.0
        %1025 = vmatpush2.xpose.msra.mxu0 0.0
        %1026 = vmatprep.subr.mxu0 0.0
        %1027 = vmatpush2.xpose.msra.mxu0 0.0
        %1028 = vmatprep.subr.mxu0 0.0
        %1029 = vmatpush2.xpose.msra.mxu0 0.0
        %1030 = vmatprep.subr.mxu0 0.0
        %1031 = vmatpush2.xpose.msra.mxu0 0.0
        %1032 = vmatprep.subr.mxu0 0.0
        %1033 = vmatpush2.xpose.msra.mxu0 0.0
        %1034 = vmatprep.subr.mxu0 0.0
        %1035 = vmatpush2.xpose.msra.mxu0 0.0
        %1036 = vmatprep.subr.mxu0 0.0
        %1037 = vmatpush2.xpose.msra.mxu0 0.0
        %1038 = vmatprep.subr.mxu0 0.0
        %1039 = vmatpush2.xpose.msra.mxu0 0.0
        %1040 = vmatprep.subr.mxu0 0.0
        %1041 = vmatpush2.xpose.msra.mxu0 0.0
        %1042 = vmatprep.subr.mxu0 0.0
        %1043 = vmatpush2.xpose.msra.mxu0 0.0
        %1044 = vmatprep.mubr.f32.mxu0 0.0
        %1045 = vmatmul.mubr.f32.gmra.mxu0 %v976
        %v1046 = vpop.f32.mrf.mxu0
        %v1047 = vadd.f32 0.0, %v1046
        %v1048 = vpop.f32.mrf.mxu0
        %1049 = vdwg.mxu0
        %v1050 = vsel %vm566, %v969, -inf
        %1051 = vmax.xlane.f32.xlu0 %v1050
        %v1052 = vpop.xlane.xlu0 %1051
        %v1053 = vsel %vm566, %v1047, -inf
        %1054 = vmax.xlane.f32.xlu0 %v1053
        %v1055 = vpop.xlane.xlu0 %1054
        %v1056 = vsub.f32 %v969, %v1052
        %v1057 = vsub.f32 %v1047, %v1055
        %v1058 = vmul.f32 %v1056, 1.442695
        %v1059 = vpow.pop %v1058
        %v1060 = vmul.f32 %v1057, 1.442695
        %v1061 = vpow.pop %v1060
        %v1062 = vsel %vm566, %v1059, 0.0
        %1063 = vadd.xlane.f32.xlu0 %v1062
        %v1064 = vpop.xlane.xlu0 %1063
        %v1065 = vsel %vm566, %v1061, 0.0
        %1066 = vadd.xlane.f32.xlu0 %v1065
        %v1067 = vpop.xlane.xlu0 %1066
        %v1068 = vrcp.pop %v1064
        %v1069 = vrcp.pop %v1067
        %v1070 = vmul.f32 %v1059, %v1068
        %v1071 = vmul.f32 %v1061, %v1069
        %1072 = vrot.lane.b32.xlu0 %v555, 56
        %v1073 = vpop.permute.xlu0 %1072
        %v1076 = vsel %vm566, %v1070, 0
        %1078 = vmatprep.subr.mxu0 0.0
        %1079 = vmatpush1.msra.mxu0 0.0
        %1080 = vmatprep.subr.mxu0 0.0
        %1081 = vmatpush1.msra.mxu0 0.0
        %1082 = vmatprep.subr.mxu0 0.0
        %1083 = vmatpush1.msra.mxu0 0.0
        %1084 = vmatprep.subr.mxu0 0.0
        %1085 = vmatpush1.msra.mxu0 0.0
        %1086 = vmatprep.subr.mxu0 0.0
        %1087 = vmatpush1.msra.mxu0 0.0
        %1088 = vmatprep.subr.mxu0 0.0
        %1089 = vmatpush1.msra.mxu0 0.0
        %1090 = vmatprep.subr.mxu0 0.0
        %1091 = vmatpush1.msra.mxu0 0.0
        %1092 = vmatprep.subr.mxu0 0.0
        %1093 = vmatpush1.msra.mxu0 0.0
        %1094 = vmatprep.subr.mxu0 0.0
        %1095 = vmatpush1.msra.mxu0 0.0
        %1096 = vmatprep.subr.mxu0 0.0
        %1097 = vmatpush1.msra.mxu0 0.0
        %1098 = vmatprep.subr.mxu0 0.0
        %1099 = vmatpush1.msra.mxu0 0.0
        %1100 = vmatprep.subr.mxu0 0.0
        %1101 = vmatpush1.msra.mxu0 0.0
        %1102 = vmatprep.subr.mxu0 0.0
        %1103 = vmatpush1.msra.mxu0 0.0
        %1104 = vmatprep.subr.mxu0 0.0
        %1105 = vmatpush1.msra.mxu0 0.0
        %1106 = vmatprep.subr.mxu0 0.0
        %1107 = vmatpush1.msra.mxu0 0.0
        %1108 = vmatprep.subr.mxu0 0.0
        %1109 = vmatpush1.msra.mxu0 %v1073
        %1110 = vmatprep.subr.mxu0 0.0
        %1111 = vmatpush2.msra.mxu0 0.0
        %1112 = vmatprep.subr.mxu0 0.0
        %1113 = vmatpush2.msra.mxu0 0.0
        %1114 = vmatprep.subr.mxu0 0.0
        %1115 = vmatpush2.msra.mxu0 0.0
        %1116 = vmatprep.subr.mxu0 0.0
        %1117 = vmatpush2.msra.mxu0 0.0
        %1118 = vmatprep.subr.mxu0 0.0
        %1119 = vmatpush2.msra.mxu0 0.0
        %1120 = vmatprep.subr.mxu0 0.0
        %1121 = vmatpush2.msra.mxu0 0.0
        %1122 = vmatprep.subr.mxu0 0.0
        %1123 = vmatpush2.msra.mxu0 0.0
        %1124 = vmatprep.subr.mxu0 0.0
        %1125 = vmatpush2.msra.mxu0 0.0
        %1126 = vmatprep.subr.mxu0 0.0
        %1127 = vmatpush2.msra.mxu0 0.0
        %1128 = vmatprep.subr.mxu0 0.0
        %1129 = vmatpush2.msra.mxu0 0.0
        %1130 = vmatprep.subr.mxu0 0.0
        %1131 = vmatpush2.msra.mxu0 0.0
        %1132 = vmatprep.subr.mxu0 0.0
        %1133 = vmatpush2.msra.mxu0 0.0
        %1134 = vmatprep.subr.mxu0 0.0
        %1135 = vmatpush2.msra.mxu0 0.0
        %1136 = vmatprep.subr.mxu0 0.0
        %1137 = vmatpush2.msra.mxu0 0.0
        %1138 = vmatprep.subr.mxu0 0.0
        %1139 = vmatpush2.msra.mxu0 0.0
        %1140 = vmatprep.subr.mxu0 0.0
        %1141 = vmatpush2.msra.mxu0 0.0
        %1142 = vmatprep.mubr.f32.mxu0 0.0
        %1143 = vmatmul.mubr.f32.gmra.mxu0 %v1076
        %v1144 = vpop.f32.mrf.mxu0
        %v1145 = vadd.f32 0.0, %v1144
        %v1146 = vpop.f32.mrf.mxu0
        %1147 = vdwg.mxu0
        %1148 = vrot.lane.b32.xlu0 %v560, 56
        %v1149 = vpop.permute.xlu0 %1148
        %v1152 = vsel %vm566, %v1071, 0
        %1154 = vmatprep.subr.mxu0 0.0
        %1155 = vmatpush1.msra.mxu0 0.0
        %1156 = vmatprep.subr.mxu0 0.0
        %1157 = vmatpush1.msra.mxu0 0.0
        %1158 = vmatprep.subr.mxu0 0.0
        %1159 = vmatpush1.msra.mxu0 0.0
        %1160 = vmatprep.subr.mxu0 0.0
        %1161 = vmatpush1.msra.mxu0 0.0
        %1162 = vmatprep.subr.mxu0 0.0
        %1163 = vmatpush1.msra.mxu0 0.0
        %1164 = vmatprep.subr.mxu0 0.0
        %1165 = vmatpush1.msra.mxu0 0.0
        %1166 = vmatprep.subr.mxu0 0.0
        %1167 = vmatpush1.msra.mxu0 0.0
        %1168 = vmatprep.subr.mxu0 0.0
        %1169 = vmatpush1.msra.mxu0 0.0
        %1170 = vmatprep.subr.mxu0 0.0
        %1171 = vmatpush1.msra.mxu0 0.0
        %1172 = vmatprep.subr.mxu0 0.0
        %1173 = vmatpush1.msra.mxu0 0.0
        %1174 = vmatprep.subr.mxu0 0.0
        %1175 = vmatpush1.msra.mxu0 0.0
        %1176 = vmatprep.subr.mxu0 0.0
        %1177 = vmatpush1.msra.mxu0 0.0
        %1178 = vmatprep.subr.mxu0 0.0
        %1179 = vmatpush1.msra.mxu0 0.0
        %1180 = vmatprep.subr.mxu0 0.0
        %1181 = vmatpush1.msra.mxu0 0.0
        %1182 = vmatprep.subr.mxu0 0.0
        %1183 = vmatpush1.msra.mxu0 0.0
        %1184 = vmatprep.subr.mxu0 0.0
        %1185 = vmatpush1.msra.mxu0 %v1149
        %1186 = vmatprep.subr.mxu0 0.0
        %1187 = vmatpush2.msra.mxu0 0.0
        %1188 = vmatprep.subr.mxu0 0.0
        %1189 = vmatpush2.msra.mxu0 0.0
        %1190 = vmatprep.subr.mxu0 0.0
        %1191 = vmatpush2.msra.mxu0 0.0
        %1192 = vmatprep.subr.mxu0 0.0
        %1193 = vmatpush2.msra.mxu0 0.0
        %1194 = vmatprep.subr.mxu0 0.0
        %1195 = vmatpush2.msra.mxu0 0.0
        %1196 = vmatprep.subr.mxu0 0.0
        %1197 = vmatpush2.msra.mxu0 0.0
        %1198 = vmatprep.subr.mxu0 0.0
        %1199 = vmatpush2.msra.mxu0 0.0
        %1200 = vmatprep.subr.mxu0 0.0
        %1201 = vmatpush2.msra.mxu0 0.0
        %1202 = vmatprep.subr.mxu0 0.0
        %1203 = vmatpush2.msra.mxu0 0.0
        %1204 = vmatprep.subr.mxu0 0.0
        %1205 = vmatpush2.msra.mxu0 0.0
        %1206 = vmatprep.subr.mxu0 0.0
        %1207 = vmatpush2.msra.mxu0 0.0
        %1208 = vmatprep.subr.mxu0 0.0
        %1209 = vmatpush2.msra.mxu0 0.0
        %1210 = vmatprep.subr.mxu0 0.0
        %1211 = vmatpush2.msra.mxu0 0.0
        %1212 = vmatprep.subr.mxu0 0.0
        %1213 = vmatpush2.msra.mxu0 0.0
        %1214 = vmatprep.subr.mxu0 0.0
        %1215 = vmatpush2.msra.mxu0 0.0
        %1216 = vmatprep.subr.mxu0 0.0
        %1217 = vmatpush2.msra.mxu0 0.0
        %1218 = vmatprep.mubr.f32.mxu0 0.0
        %1219 = vmatmul.mubr.f32.gmra.mxu0 %v1152
        %v1220 = vpop.f32.mrf.mxu0
        %v1221 = vadd.f32 0.0, %v1220
        %v1222 = vpop.f32.mrf.mxu0
        %1223 = vdwg.mxu0
        %1226 = vrot.lane.b32.xlu0 %v1145, 8
        %v1227 = vpop.permute.xlu0 %1226
        %1228 = vrot.lane.b32.xlu0 %v1221, 8
        %v1229 = vpop.permute.xlu0 %1228
        %vm1232 = vcmask 130112
        %1233 = vst.msk [vmem:[#allocation2] sm:$0xff] %vm1232, %v1227
        %1234 = vst.msk [vmem:[#allocation2 + $0x8] sm:$0xff] %vm1232, %v1229
        %1235 = vrot.lane.b32.xlu0 %v555, 112
        %v1236 = vpop.permute.xlu0 %1235
        %1237 = vrot.lane.b32.xlu0 %v555, 80
        %v1238 = vpop.permute.xlu0 %1237
        %v1239 = vsel %vm566, %v1236, 0
        %v1241 = vsel %vm566, %v1238, 0
        %1243 = vmatprep.subr.mxu0 0.0
        %1244 = vmatpush1.xpose.msra.mxu0 0.0
        %1245 = vmatprep.subr.mxu0 0.0
        %1246 = vmatpush1.xpose.msra.mxu0 0.0
        %1247 = vmatprep.subr.mxu0 0.0
        %1248 = vmatpush1.xpose.msra.mxu0 0.0
        %1249 = vmatprep.subr.mxu0 0.0
        %1250 = vmatpush1.xpose.msra.mxu0 0.0
        %1251 = vmatprep.subr.mxu0 0.0
        %1252 = vmatpush1.xpose.msra.mxu0 0.0
        %1253 = vmatprep.subr.mxu0 0.0
        %1254 = vmatpush1.xpose.msra.mxu0 0.0
        %1255 = vmatprep.subr.mxu0 0.0
        %1256 = vmatpush1.xpose.msra.mxu0 0.0
        %1257 = vmatprep.subr.mxu0 0.0
        %1258 = vmatpush1.xpose.msra.mxu0 0.0
        %1259 = vmatprep.subr.mxu0 0.0
        %1260 = vmatpush1.xpose.msra.mxu0 0.0
        %1261 = vmatprep.subr.mxu0 0.0
        %1262 = vmatpush1.xpose.msra.mxu0 0.0
        %1263 = vmatprep.subr.mxu0 0.0
        %1264 = vmatpush1.xpose.msra.mxu0 0.0
        %1265 = vmatprep.subr.mxu0 0.0
        %1266 = vmatpush1.xpose.msra.mxu0 0.0
        %1267 = vmatprep.subr.mxu0 0.0
        %1268 = vmatpush1.xpose.msra.mxu0 0.0
        %1269 = vmatprep.subr.mxu0 0.0
        %1270 = vmatpush1.xpose.msra.mxu0 0.0
        %1271 = vmatprep.subr.mxu0 0.0
        %1272 = vmatpush1.xpose.msra.mxu0 0.0
        %1273 = vmatprep.subr.mxu0 0.0
        %1274 = vmatpush1.xpose.msra.mxu0 %v1241
        %1275 = vmatprep.subr.mxu0 0.0
        %1276 = vmatpush2.xpose.msra.mxu0 0.0
        %1277 = vmatprep.subr.mxu0 0.0
        %1278 = vmatpush2.xpose.msra.mxu0 0.0
        %1279 = vmatprep.subr.mxu0 0.0
        %1280 = vmatpush2.xpose.msra.mxu0 0.0
        %1281 = vmatprep.subr.mxu0 0.0
        %1282 = vmatpush2.xpose.msra.mxu0 0.0
        %1283 = vmatprep.subr.mxu0 0.0
        %1284 = vmatpush2.xpose.msra.mxu0 0.0
        %1285 = vmatprep.subr.mxu0 0.0
        %1286 = vmatpush2.xpose.msra.mxu0 0.0
        %1287 = vmatprep.subr.mxu0 0.0
        %1288 = vmatpush2.xpose.msra.mxu0 0.0
        %1289 = vmatprep.subr.mxu0 0.0
        %1290 = vmatpush2.xpose.msra.mxu0 0.0
        %1291 = vmatprep.subr.mxu0 0.0
        %1292 = vmatpush2.xpose.msra.mxu0 0.0
        %1293 = vmatprep.subr.mxu0 0.0
        %1294 = vmatpush2.xpose.msra.mxu0 0.0
        %1295 = vmatprep.subr.mxu0 0.0
        %1296 = vmatpush2.xpose.msra.mxu0 0.0
        %1297 = vmatprep.subr.mxu0 0.0
        %1298 = vmatpush2.xpose.msra.mxu0 0.0
        %1299 = vmatprep.subr.mxu0 0.0
        %1300 = vmatpush2.xpose.msra.mxu0 0.0
        %1301 = vmatprep.subr.mxu0 0.0
        %1302 = vmatpush2.xpose.msra.mxu0 0.0
        %1303 = vmatprep.subr.mxu0 0.0
        %1304 = vmatpush2.xpose.msra.mxu0 0.0
        %1305 = vmatprep.subr.mxu0 0.0
        %1306 = vmatpush2.xpose.msra.mxu0 0.0
        %1307 = vmatprep.mubr.f32.mxu0 0.0
        %1308 = vmatmul.mubr.f32.gmra.mxu0 %v1239
        %v1309 = vpop.f32.mrf.mxu0
        %v1310 = vadd.f32 0.0, %v1309
        %v1311 = vpop.f32.mrf.mxu0
        %1312 = vdwg.mxu0
        %1313 = vrot.lane.b32.xlu0 %v560, 112
        %v1314 = vpop.permute.xlu0 %1313
        %1315 = vrot.lane.b32.xlu0 %v560, 80
        %v1316 = vpop.permute.xlu0 %1315
        %v1317 = vsel %vm566, %v1314, 0
        %v1319 = vsel %vm566, %v1316, 0
        %1321 = vmatprep.subr.mxu0 0.0
        %1322 = vmatpush1.xpose.msra.mxu0 0.0
        %1323 = vmatprep.subr.mxu0 0.0
        %1324 = vmatpush1.xpose.msra.mxu0 0.0
        %1325 = vmatprep.subr.mxu0 0.0
        %1326 = vmatpush1.xpose.msra.mxu0 0.0
        %1327 = vmatprep.subr.mxu0 0.0
        %1328 = vmatpush1.xpose.msra.mxu0 0.0
        %1329 = vmatprep.subr.mxu0 0.0
        %1330 = vmatpush1.xpose.msra.mxu0 0.0
        %1331 = vmatprep.subr.mxu0 0.0
        %1332 = vmatpush1.xpose.msra.mxu0 0.0
        %1333 = vmatprep.subr.mxu0 0.0
        %1334 = vmatpush1.xpose.msra.mxu0 0.0
        %1335 = vmatprep.subr.mxu0 0.0
        %1336 = vmatpush1.xpose.msra.mxu0 0.0
        %1337 = vmatprep.subr.mxu0 0.0
        %1338 = vmatpush1.xpose.msra.mxu0 0.0
        %1339 = vmatprep.subr.mxu0 0.0
        %1340 = vmatpush1.xpose.msra.mxu0 0.0
        %1341 = vmatprep.subr.mxu0 0.0
        %1342 = vmatpush1.xpose.msra.mxu0 0.0
        %1343 = vmatprep.subr.mxu0 0.0
        %1344 = vmatpush1.xpose.msra.mxu0 0.0
        %1345 = vmatprep.subr.mxu0 0.0
        %1346 = vmatpush1.xpose.msra.mxu0 0.0
        %1347 = vmatprep.subr.mxu0 0.0
        %1348 = vmatpush1.xpose.msra.mxu0 0.0
        %1349 = vmatprep.subr.mxu0 0.0
        %1350 = vmatpush1.xpose.msra.mxu0 0.0
        %1351 = vmatprep.subr.mxu0 0.0
        %1352 = vmatpush1.xpose.msra.mxu0 %v1319
        %1353 = vmatprep.subr.mxu0 0.0
        %1354 = vmatpush2.xpose.msra.mxu0 0.0
        %1355 = vmatprep.subr.mxu0 0.0
        %1356 = vmatpush2.xpose.msra.mxu0 0.0
        %1357 = vmatprep.subr.mxu0 0.0
        %1358 = vmatpush2.xpose.msra.mxu0 0.0
        %1359 = vmatprep.subr.mxu0 0.0
        %1360 = vmatpush2.xpose.msra.mxu0 0.0
        %1361 = vmatprep.subr.mxu0 0.0
        %1362 = vmatpush2.xpose.msra.mxu0 0.0
        %1363 = vmatprep.subr.mxu0 0.0
        %1364 = vmatpush2.xpose.msra.mxu0 0.0
        %1365 = vmatprep.subr.mxu0 0.0
        %1366 = vmatpush2.xpose.msra.mxu0 0.0
        %1367 = vmatprep.subr.mxu0 0.0
        %1368 = vmatpush2.xpose.msra.mxu0 0.0
        %1369 = vmatprep.subr.mxu0 0.0
        %1370 = vmatpush2.xpose.msra.mxu0 0.0
        %1371 = vmatprep.subr.mxu0 0.0
        %1372 = vmatpush2.xpose.msra.mxu0 0.0
        %1373 = vmatprep.subr.mxu0 0.0
        %1374 = vmatpush2.xpose.msra.mxu0 0.0
        %1375 = vmatprep.subr.mxu0 0.0
        %1376 = vmatpush2.xpose.msra.mxu0 0.0
        %1377 = vmatprep.subr.mxu0 0.0
        %1378 = vmatpush2.xpose.msra.mxu0 0.0
        %1379 = vmatprep.subr.mxu0 0.0
        %1380 = vmatpush2.xpose.msra.mxu0 0.0
        %1381 = vmatprep.subr.mxu0 0.0
        %1382 = vmatpush2.xpose.msra.mxu0 0.0
        %1383 = vmatprep.subr.mxu0 0.0
        %1384 = vmatpush2.xpose.msra.mxu0 0.0
        %1385 = vmatprep.mubr.f32.mxu0 0.0
        %1386 = vmatmul.mubr.f32.gmra.mxu0 %v1317
        %v1387 = vpop.f32.mrf.mxu0
        %v1388 = vadd.f32 0.0, %v1387
        %v1389 = vpop.f32.mrf.mxu0
        %1390 = vdwg.mxu0
        %v1391 = vsel %vm566, %v1310, -inf
        %1392 = vmax.xlane.f32.xlu0 %v1391
        %v1393 = vpop.xlane.xlu0 %1392
        %v1394 = vsel %vm566, %v1388, -inf
        %1395 = vmax.xlane.f32.xlu0 %v1394
        %v1396 = vpop.xlane.xlu0 %1395
        %v1397 = vsub.f32 %v1310, %v1393
        %v1398 = vsub.f32 %v1388, %v1396
        %v1399 = vmul.f32 %v1397, 1.442695
        %v1400 = vpow.pop %v1399
        %v1401 = vmul.f32 %v1398, 1.442695
        %v1402 = vpow.pop %v1401
        %v1403 = vsel %vm566, %v1400, 0.0
        %1404 = vadd.xlane.f32.xlu0 %v1403
        %v1405 = vpop.xlane.xlu0 %1404
        %v1406 = vsel %vm566, %v1402, 0.0
        %1407 = vadd.xlane.f32.xlu0 %v1406
        %v1408 = vpop.xlane.xlu0 %1407
        %v1409 = vrcp.pop %v1405
        %v1410 = vrcp.pop %v1408
        %v1411 = vmul.f32 %v1400, %v1409
        %v1412 = vmul.f32 %v1402, %v1410
        %1413 = vrot.lane.b32.xlu0 %v555, 48
        %v1414 = vpop.permute.xlu0 %1413
        %v1417 = vsel %vm566, %v1411, 0
        %1419 = vmatprep.subr.mxu0 0.0
        %1420 = vmatpush1.msra.mxu0 0.0
        %1421 = vmatprep.subr.mxu0 0.0
        %1422 = vmatpush1.msra.mxu0 0.0
        %1423 = vmatprep.subr.mxu0 0.0
        %1424 = vmatpush1.msra.mxu0 0.0
        %1425 = vmatprep.subr.mxu0 0.0
        %1426 = vmatpush1.msra.mxu0 0.0
        %1427 = vmatprep.subr.mxu0 0.0
        %1428 = vmatpush1.msra.mxu0 0.0
        %1429 = vmatprep.subr.mxu0 0.0
        %1430 = vmatpush1.msra.mxu0 0.0
        %1431 = vmatprep.subr.mxu0 0.0
        %1432 = vmatpush1.msra.mxu0 0.0
        %1433 = vmatprep.subr.mxu0 0.0
        %1434 = vmatpush1.msra.mxu0 0.0
        %1435 = vmatprep.subr.mxu0 0.0
        %1436 = vmatpush1.msra.mxu0 0.0
        %1437 = vmatprep.subr.mxu0 0.0
        %1438 = vmatpush1.msra.mxu0 0.0
        %1439 = vmatprep.subr.mxu0 0.0
        %1440 = vmatpush1.msra.mxu0 0.0
        %1441 = vmatprep.subr.mxu0 0.0
        %1442 = vmatpush1.msra.mxu0 0.0
        %1443 = vmatprep.subr.mxu0 0.0
        %1444 = vmatpush1.msra.mxu0 0.0
        %1445 = vmatprep.subr.mxu0 0.0
        %1446 = vmatpush1.msra.mxu0 0.0
        %1447 = vmatprep.subr.mxu0 0.0
        %1448 = vmatpush1.msra.mxu0 0.0
        %1449 = vmatprep.subr.mxu0 0.0
        %1450 = vmatpush1.msra.mxu0 %v1414
        %1451 = vmatprep.subr.mxu0 0.0
        %1452 = vmatpush2.msra.mxu0 0.0
        %1453 = vmatprep.subr.mxu0 0.0
        %1454 = vmatpush2.msra.mxu0 0.0
        %1455 = vmatprep.subr.mxu0 0.0
        %1456 = vmatpush2.msra.mxu0 0.0
        %1457 = vmatprep.subr.mxu0 0.0
        %1458 = vmatpush2.msra.mxu0 0.0
        %1459 = vmatprep.subr.mxu0 0.0
        %1460 = vmatpush2.msra.mxu0 0.0
        %1461 = vmatprep.subr.mxu0 0.0
        %1462 = vmatpush2.msra.mxu0 0.0
        %1463 = vmatprep.subr.mxu0 0.0
        %1464 = vmatpush2.msra.mxu0 0.0
        %1465 = vmatprep.subr.mxu0 0.0
        %1466 = vmatpush2.msra.mxu0 0.0
        %1467 = vmatprep.subr.mxu0 0.0
        %1468 = vmatpush2.msra.mxu0 0.0
        %1469 = vmatprep.subr.mxu0 0.0
        %1470 = vmatpush2.msra.mxu0 0.0
        %1471 = vmatprep.subr.mxu0 0.0
        %1472 = vmatpush2.msra.mxu0 0.0
        %1473 = vmatprep.subr.mxu0 0.0
        %1474 = vmatpush2.msra.mxu0 0.0
        %1475 = vmatprep.subr.mxu0 0.0
        %1476 = vmatpush2.msra.mxu0 0.0
        %1477 = vmatprep.subr.mxu0 0.0
        %1478 = vmatpush2.msra.mxu0 0.0
        %1479 = vmatprep.subr.mxu0 0.0
        %1480 = vmatpush2.msra.mxu0 0.0
        %1481 = vmatprep.subr.mxu0 0.0
        %1482 = vmatpush2.msra.mxu0 0.0
        %1483 = vmatprep.mubr.f32.mxu0 0.0
        %1484 = vmatmul.mubr.f32.gmra.mxu0 %v1417
        %v1485 = vpop.f32.mrf.mxu0
        %v1486 = vadd.f32 0.0, %v1485
        %v1487 = vpop.f32.mrf.mxu0
        %1488 = vdwg.mxu0
        %1489 = vrot.lane.b32.xlu0 %v560, 48
        %v1490 = vpop.permute.xlu0 %1489
        %v1493 = vsel %vm566, %v1412, 0
        %1495 = vmatprep.subr.mxu0 0.0
        %1496 = vmatpush1.msra.mxu0 0.0
        %1497 = vmatprep.subr.mxu0 0.0
        %1498 = vmatpush1.msra.mxu0 0.0
        %1499 = vmatprep.subr.mxu0 0.0
        %1500 = vmatpush1.msra.mxu0 0.0
        %1501 = vmatprep.subr.mxu0 0.0
        %1502 = vmatpush1.msra.mxu0 0.0
        %1503 = vmatprep.subr.mxu0 0.0
        %1504 = vmatpush1.msra.mxu0 0.0
        %1505 = vmatprep.subr.mxu0 0.0
        %1506 = vmatpush1.msra.mxu0 0.0
        %1507 = vmatprep.subr.mxu0 0.0
        %1508 = vmatpush1.msra.mxu0 0.0
        %1509 = vmatprep.subr.mxu0 0.0
        %1510 = vmatpush1.msra.mxu0 0.0
        %1511 = vmatprep.subr.mxu0 0.0
        %1512 = vmatpush1.msra.mxu0 0.0
        %1513 = vmatprep.subr.mxu0 0.0
        %1514 = vmatpush1.msra.mxu0 0.0
        %1515 = vmatprep.subr.mxu0 0.0
        %1516 = vmatpush1.msra.mxu0 0.0
        %1517 = vmatprep.subr.mxu0 0.0
        %1518 = vmatpush1.msra.mxu0 0.0
        %1519 = vmatprep.subr.mxu0 0.0
        %1520 = vmatpush1.msra.mxu0 0.0
        %1521 = vmatprep.subr.mxu0 0.0
        %1522 = vmatpush1.msra.mxu0 0.0
        %1523 = vmatprep.subr.mxu0 0.0
        %1524 = vmatpush1.msra.mxu0 0.0
        %1525 = vmatprep.subr.mxu0 0.0
        %1526 = vmatpush1.msra.mxu0 %v1490
        %1527 = vmatprep.subr.mxu0 0.0
        %1528 = vmatpush2.msra.mxu0 0.0
        %1529 = vmatprep.subr.mxu0 0.0
        %1530 = vmatpush2.msra.mxu0 0.0
        %1531 = vmatprep.subr.mxu0 0.0
        %1532 = vmatpush2.msra.mxu0 0.0
        %1533 = vmatprep.subr.mxu0 0.0
        %1534 = vmatpush2.msra.mxu0 0.0
        %1535 = vmatprep.subr.mxu0 0.0
        %1536 = vmatpush2.msra.mxu0 0.0
        %1537 = vmatprep.subr.mxu0 0.0
        %1538 = vmatpush2.msra.mxu0 0.0
        %1539 = vmatprep.subr.mxu0 0.0
        %1540 = vmatpush2.msra.mxu0 0.0
        %1541 = vmatprep.subr.mxu0 0.0
        %1542 = vmatpush2.msra.mxu0 0.0
        %1543 = vmatprep.subr.mxu0 0.0
        %1544 = vmatpush2.msra.mxu0 0.0
        %1545 = vmatprep.subr.mxu0 0.0
        %1546 = vmatpush2.msra.mxu0 0.0
        %1547 = vmatprep.subr.mxu0 0.0
        %1548 = vmatpush2.msra.mxu0 0.0
        %1549 = vmatprep.subr.mxu0 0.0
        %1550 = vmatpush2.msra.mxu0 0.0
        %1551 = vmatprep.subr.mxu0 0.0
        %1552 = vmatpush2.msra.mxu0 0.0
        %1553 = vmatprep.subr.mxu0 0.0
        %1554 = vmatpush2.msra.mxu0 0.0
        %1555 = vmatprep.subr.mxu0 0.0
        %1556 = vmatpush2.msra.mxu0 0.0
        %1557 = vmatprep.subr.mxu0 0.0
        %1558 = vmatpush2.msra.mxu0 0.0
        %1559 = vmatprep.mubr.f32.mxu0 0.0
        %1560 = vmatmul.mubr.f32.gmra.mxu0 %v1493
        %v1561 = vpop.f32.mrf.mxu0
        %v1562 = vadd.f32 0.0, %v1561
        %v1563 = vpop.f32.mrf.mxu0
        %1564 = vdwg.mxu0
        %1567 = vrot.lane.b32.xlu0 %v1486, 16
        %v1568 = vpop.permute.xlu0 %1567
        %1569 = vrot.lane.b32.xlu0 %v1562, 16
        %v1570 = vpop.permute.xlu0 %1569
        %vm1573 = vcmask 195712
        %1574 = vst.msk [vmem:[#allocation2] sm:$0xff] %vm1573, %v1568
        %1575 = vst.msk [vmem:[#allocation2 + $0x8] sm:$0xff] %vm1573, %v1570
        %1576 = vrot.lane.b32.xlu0 %v555, 104
        %v1577 = vpop.permute.xlu0 %1576
        %1578 = vrot.lane.b32.xlu0 %v555, 72
        %v1579 = vpop.permute.xlu0 %1578
        %v1580 = vsel %vm566, %v1577, 0
        %v1582 = vsel %vm566, %v1579, 0
        %1584 = vmatprep.subr.mxu0 0.0
        %1585 = vmatpush1.xpose.msra.mxu0 0.0
        %1586 = vmatprep.subr.mxu0 0.0
        %1587 = vmatpush1.xpose.msra.mxu0 0.0
        %1588 = vmatprep.subr.mxu0 0.0
        %1589 = vmatpush1.xpose.msra.mxu0 0.0
        %1590 = vmatprep.subr.mxu0 0.0
        %1591 = vmatpush1.xpose.msra.mxu0 0.0
        %1592 = vmatprep.subr.mxu0 0.0
        %1593 = vmatpush1.xpose.msra.mxu0 0.0
        %1594 = vmatprep.subr.mxu0 0.0
        %1595 = vmatpush1.xpose.msra.mxu0 0.0
        %1596 = vmatprep.subr.mxu0 0.0
        %1597 = vmatpush1.xpose.msra.mxu0 0.0
        %1598 = vmatprep.subr.mxu0 0.0
        %1599 = vmatpush1.xpose.msra.mxu0 0.0
        %1600 = vmatprep.subr.mxu0 0.0
        %1601 = vmatpush1.xpose.msra.mxu0 0.0
        %1602 = vmatprep.subr.mxu0 0.0
        %1603 = vmatpush1.xpose.msra.mxu0 0.0
        %1604 = vmatprep.subr.mxu0 0.0
        %1605 = vmatpush1.xpose.msra.mxu0 0.0
        %1606 = vmatprep.subr.mxu0 0.0
        %1607 = vmatpush1.xpose.msra.mxu0 0.0
        %1608 = vmatprep.subr.mxu0 0.0
        %1609 = vmatpush1.xpose.msra.mxu0 0.0
        %1610 = vmatprep.subr.mxu0 0.0
        %1611 = vmatpush1.xpose.msra.mxu0 0.0
        %1612 = vmatprep.subr.mxu0 0.0
        %1613 = vmatpush1.xpose.msra.mxu0 0.0
        %1614 = vmatprep.subr.mxu0 0.0
        %1615 = vmatpush1.xpose.msra.mxu0 %v1582
        %1616 = vmatprep.subr.mxu0 0.0
        %1617 = vmatpush2.xpose.msra.mxu0 0.0
        %1618 = vmatprep.subr.mxu0 0.0
        %1619 = vmatpush2.xpose.msra.mxu0 0.0
        %1620 = vmatprep.subr.mxu0 0.0
        %1621 = vmatpush2.xpose.msra.mxu0 0.0
        %1622 = vmatprep.subr.mxu0 0.0
        %1623 = vmatpush2.xpose.msra.mxu0 0.0
        %1624 = vmatprep.subr.mxu0 0.0
        %1625 = vmatpush2.xpose.msra.mxu0 0.0
        %1626 = vmatprep.subr.mxu0 0.0
        %1627 = vmatpush2.xpose.msra.mxu0 0.0
        %1628 = vmatprep.subr.mxu0 0.0
        %1629 = vmatpush2.xpose.msra.mxu0 0.0
        %1630 = vmatprep.subr.mxu0 0.0
        %1631 = vmatpush2.xpose.msra.mxu0 0.0
        %1632 = vmatprep.subr.mxu0 0.0
        %1633 = vmatpush2.xpose.msra.mxu0 0.0
        %1634 = vmatprep.subr.mxu0 0.0
        %1635 = vmatpush2.xpose.msra.mxu0 0.0
        %1636 = vmatprep.subr.mxu0 0.0
        %1637 = vmatpush2.xpose.msra.mxu0 0.0
        %1638 = vmatprep.subr.mxu0 0.0
        %1639 = vmatpush2.xpose.msra.mxu0 0.0
        %1640 = vmatprep.subr.mxu0 0.0
        %1641 = vmatpush2.xpose.msra.mxu0 0.0
        %1642 = vmatprep.subr.mxu0 0.0
        %1643 = vmatpush2.xpose.msra.mxu0 0.0
        %1644 = vmatprep.subr.mxu0 0.0
        %1645 = vmatpush2.xpose.msra.mxu0 0.0
        %1646 = vmatprep.subr.mxu0 0.0
        %1647 = vmatpush2.xpose.msra.mxu0 0.0
        %1648 = vmatprep.mubr.f32.mxu0 0.0
        %1649 = vmatmul.mubr.f32.gmra.mxu0 %v1580
        %v1650 = vpop.f32.mrf.mxu0
        %v1651 = vadd.f32 0.0, %v1650
        %v1652 = vpop.f32.mrf.mxu0
        %1653 = vdwg.mxu0
        %1654 = vrot.lane.b32.xlu0 %v560, 104
        %v1655 = vpop.permute.xlu0 %1654
        %1656 = vrot.lane.b32.xlu0 %v560, 72
        %v1657 = vpop.permute.xlu0 %1656
        %v1658 = vsel %vm566, %v1655, 0
        %v1660 = vsel %vm566, %v1657, 0
        %1662 = vmatprep.subr.mxu0 0.0
        %1663 = vmatpush1.xpose.msra.mxu0 0.0
        %1664 = vmatprep.subr.mxu0 0.0
        %1665 = vmatpush1.xpose.msra.mxu0 0.0
        %1666 = vmatprep.subr.mxu0 0.0
        %1667 = vmatpush1.xpose.msra.mxu0 0.0
        %1668 = vmatprep.subr.mxu0 0.0
        %1669 = vmatpush1.xpose.msra.mxu0 0.0
        %1670 = vmatprep.subr.mxu0 0.0
        %1671 = vmatpush1.xpose.msra.mxu0 0.0
        %1672 = vmatprep.subr.mxu0 0.0
        %1673 = vmatpush1.xpose.msra.mxu0 0.0
        %1674 = vmatprep.subr.mxu0 0.0
        %1675 = vmatpush1.xpose.msra.mxu0 0.0
        %1676 = vmatprep.subr.mxu0 0.0
        %1677 = vmatpush1.xpose.msra.mxu0 0.0
        %1678 = vmatprep.subr.mxu0 0.0
        %1679 = vmatpush1.xpose.msra.mxu0 0.0
        %1680 = vmatprep.subr.mxu0 0.0
        %1681 = vmatpush1.xpose.msra.mxu0 0.0
        %1682 = vmatprep.subr.mxu0 0.0
        %1683 = vmatpush1.xpose.msra.mxu0 0.0
        %1684 = vmatprep.subr.mxu0 0.0
        %1685 = vmatpush1.xpose.msra.mxu0 0.0
        %1686 = vmatprep.subr.mxu0 0.0
        %1687 = vmatpush1.xpose.msra.mxu0 0.0
        %1688 = vmatprep.subr.mxu0 0.0
        %1689 = vmatpush1.xpose.msra.mxu0 0.0
        %1690 = vmatprep.subr.mxu0 0.0
        %1691 = vmatpush1.xpose.msra.mxu0 0.0
        %1692 = vmatprep.subr.mxu0 0.0
        %1693 = vmatpush1.xpose.msra.mxu0 %v1660
        %1694 = vmatprep.subr.mxu0 0.0
        %1695 = vmatpush2.xpose.msra.mxu0 0.0
        %1696 = vmatprep.subr.mxu0 0.0
        %1697 = vmatpush2.xpose.msra.mxu0 0.0
        %1698 = vmatprep.subr.mxu0 0.0
        %1699 = vmatpush2.xpose.msra.mxu0 0.0
        %1700 = vmatprep.subr.mxu0 0.0
        %1701 = vmatpush2.xpose.msra.mxu0 0.0
        %1702 = vmatprep.subr.mxu0 0.0
        %1703 = vmatpush2.xpose.msra.mxu0 0.0
        %1704 = vmatprep.subr.mxu0 0.0
        %1705 = vmatpush2.xpose.msra.mxu0 0.0
        %1706 = vmatprep.subr.mxu0 0.0
        %1707 = vmatpush2.xpose.msra.mxu0 0.0
        %1708 = vmatprep.subr.mxu0 0.0
        %1709 = vmatpush2.xpose.msra.mxu0 0.0
        %1710 = vmatprep.subr.mxu0 0.0
        %1711 = vmatpush2.xpose.msra.mxu0 0.0
        %1712 = vmatprep.subr.mxu0 0.0
        %1713 = vmatpush2.xpose.msra.mxu0 0.0
        %1714 = vmatprep.subr.mxu0 0.0
        %1715 = vmatpush2.xpose.msra.mxu0 0.0
        %1716 = vmatprep.subr.mxu0 0.0
        %1717 = vmatpush2.xpose.msra.mxu0 0.0
        %1718 = vmatprep.subr.mxu0 0.0
        %1719 = vmatpush2.xpose.msra.mxu0 0.0
        %1720 = vmatprep.subr.mxu0 0.0
        %1721 = vmatpush2.xpose.msra.mxu0 0.0
        %1722 = vmatprep.subr.mxu0 0.0
        %1723 = vmatpush2.xpose.msra.mxu0 0.0
        %1724 = vmatprep.subr.mxu0 0.0
        %1725 = vmatpush2.xpose.msra.mxu0 0.0
        %1726 = vmatprep.mubr.f32.mxu0 0.0
        %1727 = vmatmul.mubr.f32.gmra.mxu0 %v1658
        %v1728 = vpop.f32.mrf.mxu0
        %v1729 = vadd.f32 0.0, %v1728
        %v1730 = vpop.f32.mrf.mxu0
        %1731 = vdwg.mxu0
        %v1732 = vsel %vm566, %v1651, -inf
        %1733 = vmax.xlane.f32.xlu0 %v1732
        %v1734 = vpop.xlane.xlu0 %1733
        %v1735 = vsel %vm566, %v1729, -inf
        %1736 = vmax.xlane.f32.xlu0 %v1735
        %v1737 = vpop.xlane.xlu0 %1736
        %v1738 = vsub.f32 %v1651, %v1734
        %v1739 = vsub.f32 %v1729, %v1737
        %v1740 = vmul.f32 %v1738, 1.442695
        %v1741 = vpow.pop %v1740
        %v1742 = vmul.f32 %v1739, 1.442695
        %v1743 = vpow.pop %v1742
        %v1744 = vsel %vm566, %v1741, 0.0
        %1745 = vadd.xlane.f32.xlu0 %v1744
        %v1746 = vpop.xlane.xlu0 %1745
        %v1747 = vsel %vm566, %v1743, 0.0
        %1748 = vadd.xlane.f32.xlu0 %v1747
        %v1749 = vpop.xlane.xlu0 %1748
        %v1750 = vrcp.pop %v1746
        %v1751 = vrcp.pop %v1749
        %v1752 = vmul.f32 %v1741, %v1750
        %v1753 = vmul.f32 %v1743, %v1751
        %1754 = vrot.lane.b32.xlu0 %v555, 40
        %v1755 = vpop.permute.xlu0 %1754
        %v1758 = vsel %vm566, %v1752, 0
        %1760 = vmatprep.subr.mxu0 0.0
        %1761 = vmatpush1.msra.mxu0 0.0
        %1762 = vmatprep.subr.mxu0 0.0
        %1763 = vmatpush1.msra.mxu0 0.0
        %1764 = vmatprep.subr.mxu0 0.0
        %1765 = vmatpush1.msra.mxu0 0.0
        %1766 = vmatprep.subr.mxu0 0.0
        %1767 = vmatpush1.msra.mxu0 0.0
        %1768 = vmatprep.subr.mxu0 0.0
        %1769 = vmatpush1.msra.mxu0 0.0
        %1770 = vmatprep.subr.mxu0 0.0
        %1771 = vmatpush1.msra.mxu0 0.0
        %1772 = vmatprep.subr.mxu0 0.0
        %1773 = vmatpush1.msra.mxu0 0.0
        %1774 = vmatprep.subr.mxu0 0.0
        %1775 = vmatpush1.msra.mxu0 0.0
        %1776 = vmatprep.subr.mxu0 0.0
        %1777 = vmatpush1.msra.mxu0 0.0
        %1778 = vmatprep.subr.mxu0 0.0
        %1779 = vmatpush1.msra.mxu0 0.0
        %1780 = vmatprep.subr.mxu0 0.0
        %1781 = vmatpush1.msra.mxu0 0.0
        %1782 = vmatprep.subr.mxu0 0.0
        %1783 = vmatpush1.msra.mxu0 0.0
        %1784 = vmatprep.subr.mxu0 0.0
        %1785 = vmatpush1.msra.mxu0 0.0
        %1786 = vmatprep.subr.mxu0 0.0
        %1787 = vmatpush1.msra.mxu0 0.0
        %1788 = vmatprep.subr.mxu0 0.0
        %1789 = vmatpush1.msra.mxu0 0.0
        %1790 = vmatprep.subr.mxu0 0.0
        %1791 = vmatpush1.msra.mxu0 %v1755
        %1792 = vmatprep.subr.mxu0 0.0
        %1793 = vmatpush2.msra.mxu0 0.0
        %1794 = vmatprep.subr.mxu0 0.0
        %1795 = vmatpush2.msra.mxu0 0.0
        %1796 = vmatprep.subr.mxu0 0.0
        %1797 = vmatpush2.msra.mxu0 0.0
        %1798 = vmatprep.subr.mxu0 0.0
        %1799 = vmatpush2.msra.mxu0 0.0
        %1800 = vmatprep.subr.mxu0 0.0
        %1801 = vmatpush2.msra.mxu0 0.0
        %1802 = vmatprep.subr.mxu0 0.0
        %1803 = vmatpush2.msra.mxu0 0.0
        %1804 = vmatprep.subr.mxu0 0.0
        %1805 = vmatpush2.msra.mxu0 0.0
        %1806 = vmatprep.subr.mxu0 0.0
        %1807 = vmatpush2.msra.mxu0 0.0
        %1808 = vmatprep.subr.mxu0 0.0
        %1809 = vmatpush2.msra.mxu0 0.0
        %1810 = vmatprep.subr.mxu0 0.0
        %1811 = vmatpush2.msra.mxu0 0.0
        %1812 = vmatprep.subr.mxu0 0.0
        %1813 = vmatpush2.msra.mxu0 0.0
        %1814 = vmatprep.subr.mxu0 0.0
        %1815 = vmatpush2.msra.mxu0 0.0
        %1816 = vmatprep.subr.mxu0 0.0
        %1817 = vmatpush2.msra.mxu0 0.0
        %1818 = vmatprep.subr.mxu0 0.0
        %1819 = vmatpush2.msra.mxu0 0.0
        %1820 = vmatprep.subr.mxu0 0.0
        %1821 = vmatpush2.msra.mxu0 0.0
        %1822 = vmatprep.subr.mxu0 0.0
        %1823 = vmatpush2.msra.mxu0 0.0
        %1824 = vmatprep.mubr.f32.mxu0 0.0
        %1825 = vmatmul.mubr.f32.gmra.mxu0 %v1758
        %v1826 = vpop.f32.mrf.mxu0
        %v1827 = vadd.f32 0.0, %v1826
        %v1828 = vpop.f32.mrf.mxu0
        %1829 = vdwg.mxu0
        %1830 = vrot.lane.b32.xlu0 %v560, 40
        %v1831 = vpop.permute.xlu0 %1830
        %v1834 = vsel %vm566, %v1753, 0
        %1836 = vmatprep.subr.mxu0 0.0
        %1837 = vmatpush1.msra.mxu0 0.0
        %1838 = vmatprep.subr.mxu0 0.0
        %1839 = vmatpush1.msra.mxu0 0.0
        %1840 = vmatprep.subr.mxu0 0.0
        %1841 = vmatpush1.msra.mxu0 0.0
        %1842 = vmatprep.subr.mxu0 0.0
        %1843 = vmatpush1.msra.mxu0 0.0
        %1844 = vmatprep.subr.mxu0 0.0
        %1845 = vmatpush1.msra.mxu0 0.0
        %1846 = vmatprep.subr.mxu0 0.0
        %1847 = vmatpush1.msra.mxu0 0.0
        %1848 = vmatprep.subr.mxu0 0.0
        %1849 = vmatpush1.msra.mxu0 0.0
        %1850 = vmatprep.subr.mxu0 0.0
        %1851 = vmatpush1.msra.mxu0 0.0
        %1852 = vmatprep.subr.mxu0 0.0
        %1853 = vmatpush1.msra.mxu0 0.0
        %1854 = vmatprep.subr.mxu0 0.0
        %1855 = vmatpush1.msra.mxu0 0.0
        %1856 = vmatprep.subr.mxu0 0.0
        %1857 = vmatpush1.msra.mxu0 0.0
        %1858 = vmatprep.subr.mxu0 0.0
        %1859 = vmatpush1.msra.mxu0 0.0
        %1860 = vmatprep.subr.mxu0 0.0
        %1861 = vmatpush1.msra.mxu0 0.0
        %1862 = vmatprep.subr.mxu0 0.0
        %1863 = vmatpush1.msra.mxu0 0.0
        %1864 = vmatprep.subr.mxu0 0.0
        %1865 = vmatpush1.msra.mxu0 0.0
        %1866 = vmatprep.subr.mxu0 0.0
        %1867 = vmatpush1.msra.mxu0 %v1831
        %1868 = vmatprep.subr.mxu0 0.0
        %1869 = vmatpush2.msra.mxu0 0.0
        %1870 = vmatprep.subr.mxu0 0.0
        %1871 = vmatpush2.msra.mxu0 0.0
        %1872 = vmatprep.subr.mxu0 0.0
        %1873 = vmatpush2.msra.mxu0 0.0
        %1874 = vmatprep.subr.mxu0 0.0
        %1875 = vmatpush2.msra.mxu0 0.0
        %1876 = vmatprep.subr.mxu0 0.0
        %1877 = vmatpush2.msra.mxu0 0.0
        %1878 = vmatprep.subr.mxu0 0.0
        %1879 = vmatpush2.msra.mxu0 0.0
        %1880 = vmatprep.subr.mxu0 0.0
        %1881 = vmatpush2.msra.mxu0 0.0
        %1882 = vmatprep.subr.mxu0 0.0
        %1883 = vmatpush2.msra.mxu0 0.0
        %1884 = vmatprep.subr.mxu0 0.0
        %1885 = vmatpush2.msra.mxu0 0.0
        %1886 = vmatprep.subr.mxu0 0.0
        %1887 = vmatpush2.msra.mxu0 0.0
        %1888 = vmatprep.subr.mxu0 0.0
        %1889 = vmatpush2.msra.mxu0 0.0
        %1890 = vmatprep.subr.mxu0 0.0
        %1891 = vmatpush2.msra.mxu0 0.0
        %1892 = vmatprep.subr.mxu0 0.0
        %1893 = vmatpush2.msra.mxu0 0.0
        %1894 = vmatprep.subr.mxu0 0.0
        %1895 = vmatpush2.msra.mxu0 0.0
        %1896 = vmatprep.subr.mxu0 0.0
        %1897 = vmatpush2.msra.mxu0 0.0
        %1898 = vmatprep.subr.mxu0 0.0
        %1899 = vmatpush2.msra.mxu0 0.0
        %1900 = vmatprep.mubr.f32.mxu0 0.0
        %1901 = vmatmul.mubr.f32.gmra.mxu0 %v1834
        %v1902 = vpop.f32.mrf.mxu0
        %v1903 = vadd.f32 0.0, %v1902
        %v1904 = vpop.f32.mrf.mxu0
        %1905 = vdwg.mxu0
        %1908 = vrot.lane.b32.xlu0 %v1827, 24
        %v1909 = vpop.permute.xlu0 %1908
        %1910 = vrot.lane.b32.xlu0 %v1903, 24
        %v1911 = vpop.permute.xlu0 %1910
        %vm1914 = vcmask 261312
        %1915 = vst.msk [vmem:[#allocation2] sm:$0xff] %vm1914, %v1909
        %1916 = vst.msk [vmem:[#allocation2 + $0x8] sm:$0xff] %vm1914, %v1911
        %v1917 = vld [vmem:[#allocation2] sm:$0xff]
        %v1918 = vld [vmem:[#allocation2 + $0x8] sm:$0xff]
        %v1919 = vld [vmem:[%s4] sm:$0xff]
        %v1920 = vld [vmem:[%s4 + $0x8] sm:$0xff]
        %v1921 = vld [vmem:[%s4 + $0x10] sm:$0xff]
        %v1922 = vld [vmem:[%s4 + $0x18] sm:$0xff]
        %v1923 = vld [vmem:[%s5] sm:$0x1]
        %v1925 = vlaneseq
        %v1926 = vshrl.u32 %v1925, 7
        %v1927 = vsub.s32 0, %v1926
        %v1928 = vrot.slane %v1923, %v1927
        %v1931 = vsel %vm434, %v1917, 0
        %v1934 = vsel %vm434, %v1918, 0
        %1936 = vmatprep.subr.mxu0 0.0
        %1937 = vmatpush1.msra.mxu0 0.0
        %1938 = vmatprep.subr.mxu0 0.0
        %1939 = vmatpush1.msra.mxu0 0.0
        %1940 = vmatprep.subr.mxu0 0.0
        %1941 = vmatpush1.msra.mxu0 0.0
        %1942 = vmatprep.subr.mxu0 0.0
        %1943 = vmatpush1.msra.mxu0 0.0
        %1944 = vmatprep.subr.mxu0 0.0
        %1945 = vmatpush1.msra.mxu0 0.0
        %1946 = vmatprep.subr.mxu0 0.0
        %1947 = vmatpush1.msra.mxu0 0.0
        %1948 = vmatprep.subr.mxu0 0.0
        %1949 = vmatpush1.msra.mxu0 0.0
        %1950 = vmatprep.subr.mxu0 0.0
        %1951 = vmatpush1.msra.mxu0 0.0
        %1952 = vmatprep.subr.mxu0 0.0
        %1953 = vmatpush1.msra.mxu0 0.0
        %1954 = vmatprep.subr.mxu0 0.0
        %1955 = vmatpush1.msra.mxu0 0.0
        %1956 = vmatprep.subr.mxu0 0.0
        %1957 = vmatpush1.msra.mxu0 0.0
        %1958 = vmatprep.subr.mxu0 0.0
        %1959 = vmatpush1.msra.mxu0 0.0
        %1960 = vmatprep.subr.mxu0 0.0
        %1961 = vmatpush1.msra.mxu0 %v1922
        %1962 = vmatprep.subr.mxu0 0.0
        %1963 = vmatpush1.msra.mxu0 %v1921
        %1964 = vmatprep.subr.mxu0 0.0
        %1965 = vmatpush1.msra.mxu0 %v1920
        %1966 = vmatprep.subr.mxu0 0.0
        %1967 = vmatpush1.msra.mxu0 %v1919
        %1968 = vmatprep.subr.mxu0 0.0
        %1969 = vmatpush2.msra.mxu0 0.0
        %1970 = vmatprep.subr.mxu0 0.0
        %1971 = vmatpush2.msra.mxu0 0.0
        %1972 = vmatprep.subr.mxu0 0.0
        %1973 = vmatpush2.msra.mxu0 0.0
        %1974 = vmatprep.subr.mxu0 0.0
        %1975 = vmatpush2.msra.mxu0 0.0
        %1976 = vmatprep.subr.mxu0 0.0
        %1977 = vmatpush2.msra.mxu0 0.0
        %1978 = vmatprep.subr.mxu0 0.0
        %1979 = vmatpush2.msra.mxu0 0.0
        %1980 = vmatprep.subr.mxu0 0.0
        %1981 = vmatpush2.msra.mxu0 0.0
        %1982 = vmatprep.subr.mxu0 0.0
        %1983 = vmatpush2.msra.mxu0 0.0
        %1984 = vmatprep.subr.mxu0 0.0
        %1985 = vmatpush2.msra.mxu0 0.0
        %1986 = vmatprep.subr.mxu0 0.0
        %1987 = vmatpush2.msra.mxu0 0.0
        %1988 = vmatprep.subr.mxu0 0.0
        %1989 = vmatpush2.msra.mxu0 0.0
        %1990 = vmatprep.subr.mxu0 0.0
        %1991 = vmatpush2.msra.mxu0 0.0
        %1992 = vmatprep.subr.mxu0 0.0
        %1993 = vmatpush2.msra.mxu0 0.0
        %1994 = vmatprep.subr.mxu0 0.0
        %1995 = vmatpush2.msra.mxu0 0.0
        %1996 = vmatprep.subr.mxu0 0.0
        %1997 = vmatpush2.msra.mxu0 0.0
        %1998 = vmatprep.subr.mxu0 0.0
        %1999 = vmatpush2.msra.mxu0 0.0
        %2000 = vmatprep.mubr.f32.mxu0 0.0
        %2001 = vmatmul.mubr.f32.gmra.mxu0 %v1931
        %v2002 = vpop.f32.mrf.mxu0
        %v2003 = vadd.f32 %v1928, %v2002
        %v2004 = vpop.f32.mrf.mxu0
        %2005 = vmatprep.mubr.f32.mxu0 0.0
        %2006 = vmatmul.mubr.f32.gmra.mxu0 %v1934
        %v2007 = vpop.f32.mrf.mxu0
        %v2008 = vadd.f32 %v1928, %v2007
        %v2009 = vpop.f32.mrf.mxu0
        %2010 = vdwg.mxu0
        %v2011 = vadd.f32 %v430, %v2003
        %v2012 = vadd.f32 %v431, %v2008
        %v2013 = vld [vmem:[%s6] sm:$0x1]
        %v2014 = vld [vmem:[%s7] sm:$0x1]
        %v2015 = vsel %vm434, %v2011, 0.0
        %2016 = vadd.xlane.f32.xlu0 %v2015
        %v2017 = vpop.xlane.xlu0 %2016
        %v2018 = vsel %vm434, %v2012, 0.0
        %2019 = vadd.xlane.f32.xlu0 %v2018
        %v2020 = vpop.xlane.xlu0 %2019
        %v2021 = vmul.f32 %v2017, %v441
        %v2022 = vmul.f32 %v2020, %v441
        %v2023 = vsub.f32 %v2011, %v2021
        %v2024 = vsub.f32 %v2012, %v2022
        %v2025 = vmul.f32 %v2023, %v2023
        %v2026 = vmul.f32 %v2024, %v2024
        %v2027 = vsel %vm434, %v2025, 0.0
        %2028 = vadd.xlane.f32.xlu0 %v2027
        %v2029 = vpop.xlane.xlu0 %2028
        %v2030 = vsel %vm434, %v2026, 0.0
        %2031 = vadd.xlane.f32.xlu0 %v2030
        %v2032 = vpop.xlane.xlu0 %2031
        %v2033 = vmul.f32 %v2029, %v441
        %v2034 = vmul.f32 %v2032, %v441
        %v2035 = vadd.f32 %v2033, 1e-05
        %v2036 = vadd.f32 %v2034, 1e-05
        %v2037 = vrsqrt.pop %v2035
        %v2038 = vrsqrt.pop %v2036
        %v2039 = vmul.f32 %v2023, %v2037
        %v2040 = vmul.f32 %v2024, %v2038
        %v2042 = vlaneseq
        %v2043 = vshrl.u32 %v2042, 7
        %v2044 = vsub.s32 0, %v2043
        %v2045 = vrot.slane %v2013, %v2044
        %v2047 = vmul.f32 %v2039, %v2045
        %v2048 = vmul.f32 %v2040, %v2045
        %v2050 = vlaneseq
        %v2051 = vshrl.u32 %v2050, 7
        %v2052 = vsub.s32 0, %v2051
        %v2053 = vrot.slane %v2014, %v2052
        %v2055 = vadd.f32 %v2047, %v2053
        %v2056 = vadd.f32 %v2048, %v2053
        %v2057 = vld [vmem:[#allocation3] sm:$0xff]
        %v2058 = vld [vmem:[#allocation3 + $0x8] sm:$0xff]
        %v2059 = vld [vmem:[#allocation3 + $0x10] sm:$0xff]
        %v2060 = vld [vmem:[#allocation3 + $0x18] sm:$0xff]
        %v2061 = vld [vmem:[%s9] sm:$0x1]
        %v2063 = vlaneseq
        %v2064 = vshrl.u32 %v2063, 7
        %v2065 = vsub.s32 0, %v2064
        %v2066 = vrot.slane %v2061, %v2065
        %v2069 = vsel %vm434, %v2055, 0
        %v2072 = vsel %vm434, %v2056, 0
        %2074 = vmatprep.subr.mxu0 0.0
        %2075 = vmatpush1.msra.mxu0 0.0
        %2076 = vmatprep.subr.mxu0 0.0
        %2077 = vmatpush1.msra.mxu0 0.0
        %2078 = vmatprep.subr.mxu0 0.0
        %2079 = vmatpush1.msra.mxu0 0.0
        %2080 = vmatprep.subr.mxu0 0.0
        %2081 = vmatpush1.msra.mxu0 0.0
        %2082 = vmatprep.subr.mxu0 0.0
        %2083 = vmatpush1.msra.mxu0 0.0
        %2084 = vmatprep.subr.mxu0 0.0
        %2085 = vmatpush1.msra.mxu0 0.0
        %2086 = vmatprep.subr.mxu0 0.0
        %2087 = vmatpush1.msra.mxu0 0.0
        %2088 = vmatprep.subr.mxu0 0.0
        %2089 = vmatpush1.msra.mxu0 0.0
        %2090 = vmatprep.subr.mxu0 0.0
        %2091 = vmatpush1.msra.mxu0 0.0
        %2092 = vmatprep.subr.mxu0 0.0
        %2093 = vmatpush1.msra.mxu0 0.0
        %2094 = vmatprep.subr.mxu0 0.0
        %2095 = vmatpush1.msra.mxu0 0.0
        %2096 = vmatprep.subr.mxu0 0.0
        %2097 = vmatpush1.msra.mxu0 0.0
        %2098 = vmatprep.subr.mxu0 0.0
        %2099 = vmatpush1.msra.mxu0 %v2060
        %2100 = vmatprep.subr.mxu0 0.0
        %2101 = vmatpush1.msra.mxu0 %v2059
        %2102 = vmatprep.subr.mxu0 0.0
        %2103 = vmatpush1.msra.mxu0 %v2058
        %2104 = vmatprep.subr.mxu0 0.0
        %2105 = vmatpush1.msra.mxu0 %v2057
        %2106 = vmatprep.subr.mxu0 0.0
        %2107 = vmatpush2.msra.mxu0 0.0
        %2108 = vmatprep.subr.mxu0 0.0
        %2109 = vmatpush2.msra.mxu0 0.0
        %2110 = vmatprep.subr.mxu0 0.0
        %2111 = vmatpush2.msra.mxu0 0.0
        %2112 = vmatprep.subr.mxu0 0.0
        %2113 = vmatpush2.msra.mxu0 0.0
        %2114 = vmatprep.subr.mxu0 0.0
        %2115 = vmatpush2.msra.mxu0 0.0
        %2116 = vmatprep.subr.mxu0 0.0
        %2117 = vmatpush2.msra.mxu0 0.0
        %2118 = vmatprep.subr.mxu0 0.0
        %2119 = vmatpush2.msra.mxu0 0.0
        %2120 = vmatprep.subr.mxu0 0.0
        %2121 = vmatpush2.msra.mxu0 0.0
        %2122 = vmatprep.subr.mxu0 0.0
        %2123 = vmatpush2.msra.mxu0 0.0
        %2124 = vmatprep.subr.mxu0 0.0
        %2125 = vmatpush2.msra.mxu0 0.0
        %2126 = vmatprep.subr.mxu0 0.0
        %2127 = vmatpush2.msra.mxu0 0.0
        %2128 = vmatprep.subr.mxu0 0.0
        %2129 = vmatpush2.msra.mxu0 0.0
        %2130 = vmatprep.subr.mxu0 0.0
        %2131 = vmatpush2.msra.mxu0 0.0
        %2132 = vmatprep.subr.mxu0 0.0
        %2133 = vmatpush2.msra.mxu0 0.0
        %2134 = vmatprep.subr.mxu0 0.0
        %2135 = vmatpush2.msra.mxu0 0.0
        %2136 = vmatprep.subr.mxu0 0.0
        %2137 = vmatpush2.msra.mxu0 0.0
        %2138 = vmatprep.mubr.f32.mxu0 0.0
        %2139 = vmatmul.mubr.f32.gmra.mxu0 %v2069
        %v2140 = vpop.f32.mrf.mxu0
        %v2141 = vadd.f32 %v2066, %v2140
        %v2142 = vpop.f32.mrf.mxu0
        %2143 = vmatprep.mubr.f32.mxu0 0.0
        %2144 = vmatmul.mubr.f32.gmra.mxu0 %v2072
        %v2145 = vpop.f32.mrf.mxu0
        %v2146 = vadd.f32 %v2066, %v2145
        %v2147 = vpop.f32.mrf.mxu0
        %2148 = vdwg.mxu0
        %v2149 = vmul.f32 %v2141, 0.5
        %v2150 = vmul.f32 %v2146, 0.5
        %v2151 = vmul.f32 %v2141, 0.70710677
        %v2152 = vmul.f32 %v2146, 0.70710677
        %v2153 = verf.f32.pop %v2151
        %v2154 = verf.f32.pop %v2152
        %v2155 = vadd.f32 %v2153, 1.0
        %v2156 = vadd.f32 %v2154, 1.0
        %v2157 = vmul.f32 %v2149, %v2155
        %v2158 = vmul.f32 %v2150, %v2156
        %v2159 = vld [vmem:[%s10] sm:$0xff]
        %v2160 = vld [vmem:[%s10 + $0x8] sm:$0xff]
        %v2161 = vld [vmem:[%s10 + $0x10] sm:$0xff]
        %v2162 = vld [vmem:[%s10 + $0x18] sm:$0xff]
        %v2163 = vld [vmem:[%s10 + $0x20] sm:$0xff]
        %v2164 = vld [vmem:[%s10 + $0x28] sm:$0xff]
        %v2165 = vld [vmem:[%s10 + $0x30] sm:$0xff]
        %v2166 = vld [vmem:[%s10 + $0x38] sm:$0xff]
        %v2167 = vld [vmem:[%s11] sm:$0x1]
        %v2169 = vlaneseq
        %v2170 = vshrl.u32 %v2169, 7
        %v2171 = vsub.s32 0, %v2170
        %v2172 = vrot.slane %v2167, %v2171
        %vm2174 = vcmask 523264
        %v2176 = vsel %vm2174, %v2157, 0
        %v2179 = vsel %vm2174, %v2158, 0
        %2181 = vmatprep.subr.mxu0 0.0
        %2182 = vmatpush1.msra.mxu0 0.0
        %2183 = vmatprep.subr.mxu0 0.0
        %2184 = vmatpush1.msra.mxu0 0.0
        %2185 = vmatprep.subr.mxu0 0.0
        %2186 = vmatpush1.msra.mxu0 0.0
        %2187 = vmatprep.subr.mxu0 0.0
        %2188 = vmatpush1.msra.mxu0 0.0
        %2189 = vmatprep.subr.mxu0 0.0
        %2190 = vmatpush1.msra.mxu0 0.0
        %2191 = vmatprep.subr.mxu0 0.0
        %2192 = vmatpush1.msra.mxu0 0.0
        %2193 = vmatprep.subr.mxu0 0.0
        %2194 = vmatpush1.msra.mxu0 0.0
        %2195 = vmatprep.subr.mxu0 0.0
        %2196 = vmatpush1.msra.mxu0 0.0
        %2197 = vmatprep.subr.mxu0 0.0
        %2198 = vmatpush1.msra.mxu0 %v2166
        %2199 = vmatprep.subr.mxu0 0.0
        %2200 = vmatpush1.msra.mxu0 %v2165
        %2201 = vmatprep.subr.mxu0 0.0
        %2202 = vmatpush1.msra.mxu0 %v2164
        %2203 = vmatprep.subr.mxu0 0.0
        %2204 = vmatpush1.msra.mxu0 %v2163
        %2205 = vmatprep.subr.mxu0 0.0
        %2206 = vmatpush1.msra.mxu0 %v2162
        %2207 = vmatprep.subr.mxu0 0.0
        %2208 = vmatpush1.msra.mxu0 %v2161
        %2209 = vmatprep.subr.mxu0 0.0
        %2210 = vmatpush1.msra.mxu0 %v2160
        %2211 = vmatprep.subr.mxu0 0.0
        %2212 = vmatpush1.msra.mxu0 %v2159
        %2213 = vmatprep.subr.mxu0 0.0
        %2214 = vmatpush2.msra.mxu0 0.0
        %2215 = vmatprep.subr.mxu0 0.0
        %2216 = vmatpush2.msra.mxu0 0.0
        %2217 = vmatprep.subr.mxu0 0.0
        %2218 = vmatpush2.msra.mxu0 0.0
        %2219 = vmatprep.subr.mxu0 0.0
        %2220 = vmatpush2.msra.mxu0 0.0
        %2221 = vmatprep.subr.mxu0 0.0
        %2222 = vmatpush2.msra.mxu0 0.0
        %2223 = vmatprep.subr.mxu0 0.0
        %2224 = vmatpush2.msra.mxu0 0.0
        %2225 = vmatprep.subr.mxu0 0.0
        %2226 = vmatpush2.msra.mxu0 0.0
        %2227 = vmatprep.subr.mxu0 0.0
        %2228 = vmatpush2.msra.mxu0 0.0
        %2229 = vmatprep.subr.mxu0 0.0
        %2230 = vmatpush2.msra.mxu0 0.0
        %2231 = vmatprep.subr.mxu0 0.0
        %2232 = vmatpush2.msra.mxu0 0.0
        %2233 = vmatprep.subr.mxu0 0.0
        %2234 = vmatpush2.msra.mxu0 0.0
        %2235 = vmatprep.subr.mxu0 0.0
        %2236 = vmatpush2.msra.mxu0 0.0
        %2237 = vmatprep.subr.mxu0 0.0
        %2238 = vmatpush2.msra.mxu0 0.0
        %2239 = vmatprep.subr.mxu0 0.0
        %2240 = vmatpush2.msra.mxu0 0.0
        %2241 = vmatprep.subr.mxu0 0.0
        %2242 = vmatpush2.msra.mxu0 0.0
        %2243 = vmatprep.subr.mxu0 0.0
        %2244 = vmatpush2.msra.mxu0 0.0
        %2245 = vmatprep.mubr.f32.mxu0 0.0
        %2246 = vmatmul.mubr.f32.gmra.mxu0 %v2176
        %v2247 = vpop.f32.mrf.mxu0
        %v2248 = vadd.f32 %v2172, %v2247
        %v2249 = vpop.f32.mrf.mxu0
        %2250 = vmatprep.mubr.f32.mxu0 0.0
        %2251 = vmatmul.mubr.f32.gmra.mxu0 %v2179
        %v2252 = vpop.f32.mrf.mxu0
        %v2253 = vadd.f32 %v2172, %v2252
        %v2254 = vpop.f32.mrf.mxu0
        %2255 = vdwg.mxu0
        %v2256 = vadd.f32 %v2011, %v2248
        %v2257 = vadd.f32 %v2012, %v2253
        %2258 = vst.msk [vmem:[%s422] sm:$0xff] %vm434, %v2256
        %2259 = vst.msk [vmem:[%s422 + $0x8] sm:$0xff] %vm434, %v2257
        %s2260 = sand.u32 %s292, 1
        %s2261 = scalar_lea.sflag [#allocation5], %s2260
        %s2262 = sand.u32 %s292, 1
        %s2263 = smul.addr %s2262, 16
        %s2264 = scalar_lea.vmem [#allocation6], %s2263
        // Predicated region
        $region73: #{tpu_custom_call.1} parent=67 // pred_check
          %p2265 = pneg %p302
        $region74: #{tpu_custom_call.1} parent=67 // pred_check_branch
          %2267 = sbr.rel (%p2265) target = $region76
        $region75: #{tpu_custom_call.1} parent=67 // pred_region
          %s2268 = smul.u32 2, %s27
          %s2270 = ssub.s32 256, 256
          %2271 = vsyncadd %s2261, %s2270
          %s2272 = smul.addr %s2268, 128
          %s2273 = scalar_lea.hbm %s12, %s2272
          %s2274 = sshll.u32 %s2264, 4
          %s2275 = int_to_ptr.vmem [resolvable:$true] %s2274
          %2280 = dma.vmem_to_hbm [thread:$0]  %s2275, 256, %s2273, %s2261, 128, 128, 8
        $region76: #{tpu_custom_call.1} parent=67 // pred_fallthru
          _
      $region68: #{tpu_custom_call.1} parent=5 // pred_fallthru
        _
      %p2281 = scmp.le.s32.totalorder 2, %s22
      // Predicated region
      $region77: #{tpu_custom_call.1} parent=5 // pred_check
        %p2282 = pneg %p2281
      $region78: #{tpu_custom_call.1} parent=5 // pred_check_branch
        %2284 = sbr.rel (%p2282) target = $region80
      $region79: #{tpu_custom_call.1} parent=5 // pred_region
        %s2285 = ssub.s32 %s22, 2
        // Predicated region
        $region81: #{tpu_custom_call.1} parent=79 // pred_check
          %p2286 = pneg %p308
        $region82: #{tpu_custom_call.1} parent=79 // pred_check_branch
          %2288 = sbr.rel (%p2286) target = $region84
        $region83: #{tpu_custom_call.1} parent=79 // pred_region
          %s2289 = sand.u32 %s293, 1
          %s2290 = scalar_lea.sflag [#allocation5], %s2289
          %s2291 = sand.u32 %s293, 1
          %s2292 = smul.addr %s2291, 16
          %s2293 = scalar_lea.vmem [#allocation6], %s2292
          %2294 = dma.done %s2290, 256
        $region84: #{tpu_custom_call.1} parent=79 // pred_fallthru
          _
      $region80: #{tpu_custom_call.1} parent=5 // pred_fallthru
        _
    $region6: #{tpu_custom_call.1} parent=1 // loop_footer
      %s26 = sadd.s32 1, %s22
    $region7: #{tpu_custom_call.1} parent=1 // loop_footer_branch
      %21 = sbr.rel target = $region3
    $region8: #{tpu_custom_call.1} parent=1 // loop_exit
      _
    %2295 = vsyncpa [#allocation4], 1
    %s2296 = scalar_lea.sflag [#allocation4], 1
    %2297 = vsyncpa %s2296, 1
    %2298 = vsyncpa [#allocation5], 1
    %s2299 = scalar_lea.sflag [#allocation5], 1
    %2300 = vsyncpa %s2299, 1

// kernel: tpu_custom_call.1
$region0: #{tpu_custom_call.1}
  #allocation0 [shape = 'u32[]', space=smem, size = 0x4, offset = 0x4, fixed_abs, tag = 'smem constant byte address 0x4 - core index']
  #allocation1 [shape = 'u32[144,128]{1,0:T(1,128)}', space=vmem, size = 0x12000, scoped, tag = 'internal scratch']
  #allocation2 [shape = 'f32[16,32]{1,0:T(8,128)}', space=vmem, size = 0x2000, scoped, tag = 'scratch operand']
  %s0 = inlined_call_operand.vmem [shape: f32[4,8,32], index: 0, kind: input, shape index: {}]
  %s1 = inlined_call_operand.vmem [shape: f32[1,32], index: 1, kind: input, shape index: {}]
  %s2 = inlined_call_operand.vmem [shape: f32[1,32], index: 2, kind: input, shape index: {}]
  %s3 = inlined_call_operand.vmem [shape: f32[32,96], index: 3, kind: input, shape index: {}]
  %s4 = inlined_call_operand.vmem [shape: f32[32,32], index: 4, kind: input, shape index: {}]
  %s5 = inlined_call_operand.vmem [shape: f32[1,32], index: 5, kind: input, shape index: {}]
  %s6 = inlined_call_operand.vmem [shape: f32[1,32], index: 6, kind: input, shape index: {}]
  %s7 = inlined_call_operand.vmem [shape: f32[1,32], index: 7, kind: input, shape index: {}]
  %s8 = inlined_call_operand.hbm [shape: f32[32,64], index: 8, kind: input, shape index: {}]
  %s9 = inlined_call_operand.vmem [shape: f32[1,64], index: 9, kind: input, shape index: {}]
  %s10 = inlined_call_operand.vmem [shape: f32[64,32], index: 10, kind: input, shape index: {}]
  %s11 = inlined_call_operand.vmem [shape: f32[1,32], index: 11, kind: input, shape index: {}]
  %s12 = inlined_call_operand.hbm [shape: f32[4,8,32], index: 12, kind: output, shape index: {}]
  %s13 = sld [smem:[#allocation0]]
  $region85: #{tpu_custom_call.1} parent=0
    _
  %s15 = ssub.s32 1, %s13
  %s16 = scalar_select 0, %s15, %s13
  $region1: #{tpu_custom_call.1} parent=0
    #allocation3 [shape = 'u8[16384]{0}', space=vmem, size = 0x4000, scoped, tag = 'input window, operand 8, single buffered']
    #allocation4 [shape = 's32[2]{0}', space=sflag, size = 0x8, scoped, tag = 'scoped memory for tpu_custom_call.1']
    #allocation5 [shape = 's32[2]{0}', space=sflag, size = 0x8, scoped, tag = 'scoped memory for tpu_custom_call.1']
    #allocation6 [shape = 'u8[16384]{0}', space=vmem, size = 0x4000, scoped, tag = 'output window, operand 0']
    %17 = vsyncpa [#allocation4], 0
    %18 = vsyncpa [#allocation5], 0
    %s19 = scalar_lea.sflag [#allocation5], 1
    %20 = vsyncpa %s19, 0
    loop: start=0, step=1, limit=4
    $region2: #{tpu_custom_call.1} parent=1 // loop_pre_header
      _
    $region3: #{tpu_custom_call.1} parent=1 // loop_header
      %s22 = sphi 0, %s26
      %p23 = scmp.ge.s32.totalorder %s22, 4
      %s32 = sphi 0, %s34
      %s35 = sphi 0, %s32
      %s36 = sphi 0, %s35
      %s52 = sphi 0, %s36
      %s56 = sphi 0, %s56
      %s58 = sphi 0, %s56
      %s59 = sphi 0, %s58
      %s73 = sphi 0, %s59
      %s77 = sphi 0, %s77
      %s79 = sphi 0, %s77
      %s80 = sphi 0, %s79
      %s94 = sphi 0, %s80
      %s98 = sphi 0, %s98
      %s100 = sphi 0, %s98
      %s101 = sphi 0, %s100
      %s115 = sphi 0, %s101
      %s119 = sphi 0, %s119
      %s121 = sphi 0, %s119
      %s122 = sphi 0, %s121
      %s136 = sphi 0, %s122
      %s140 = sphi 0, %s140
      %s142 = sphi 0, %s140
      %s143 = sphi 0, %s142
      %s157 = sphi 0, %s143
      %s161 = sphi 0, %s161
      %s163 = sphi 0, %s161
      %s164 = sphi 0, %s163
      %s178 = sphi 0, %s164
      %s182 = sphi 0, %s182
      %s184 = sphi 0, %s182
      %s185 = sphi 0, %s184
      %s199 = sphi 0, %s185
      %s203 = sphi 0, %s203
      %s205 = sphi 0, %s203
      %s206 = sphi 0, %s205
      %s220 = sphi 0, %s206
      %s224 = sphi 0, %s224
      %s226 = sphi 0, %s224
      %s227 = sphi 0, %s226
      %s241 = sphi 0, %s227
      %s245 = sphi 0, %s245
      %s247 = sphi 0, %s245
      %s248 = sphi 0, %s247
      %s262 = sphi 0, %s248
      %s266 = sphi 0, %s266
      %s268 = sphi 0, %s266
      %s269 = sphi 0, %s268
      %s283 = sphi 0, %s269
      %s289 = sphi 0, %s291
      %s292 = sphi 0, %s289
      %s293 = sphi 0, %s292
      %s309 = sphi 0, %s293
    $region4: #{tpu_custom_call.1} parent=1 // loop_header_branch
      %25 = sbr.rel (%p23) target = $region8
    $region5: #{tpu_custom_call.1} parent=1 // loop_body
      %s27 = ssub.s32 %s22, 1
      %s28 = ssub.s32 %s22, 2
      %s29 = sadd.s32 %s22, 1
      %s30 = ssub.s32 %s22, %s29
      %p31 = scmp.eq.s32.totalorder %s30, 0
      %s33 = sadd.s32 %s32, 1
      %s34 = scalar_select %p31, %s32, %s33
      %p37 = pneg %p31
      %p38 = scmp.eq.s32.totalorder %s22, 1
      %p39 = por %p37, %p38
      %p40 = scmp.ne.s32.totalorder %s32, %s35
      %p41 = scmp.eq.s32.totalorder %s22, 0
      %p42 = por %p40, %p41
      %p43 = scmp.ne.s32.totalorder %s32, %s35
      %p44 = scmp.eq.s32.totalorder %s27, 1
      %p45 = por %p43, %p44
      %p46 = scmp.ne.s32.totalorder %s35, %s36
      %p47 = scmp.eq.s32.totalorder %s27, 0
      %p48 = por %p46, %p47
      %p49 = scmp.ne.s32.totalorder %s35, %s36
      %p50 = scmp.eq.s32.totalorder %s28, 1
      %p51 = por %p49, %p50
      %p53 = scmp.ne.s32.totalorder %s36, %s52
      %p54 = scmp.eq.s32.totalorder %s28, 0
      %p55 = por %p53, %p54
      %s57 = sadd.s32 %s56, 1
      %p60 = scmp.eq.s32.totalorder %s22, 1
      %p61 = scmp.ne.s32.totalorder %s56, %s58
      %p62 = scmp.eq.s32.totalorder %s22, 0
      %p63 = por %p61, %p62
      %p64 = scmp.ne.s32.totalorder %s56, %s58
      %p65 = scmp.eq.s32.totalorder %s27, 1
      %p66 = por %p64, %p65
      %p67 = scmp.ne.s32.totalorder %s58, %s59
      %p68 = scmp.eq.s32.totalorder %s27, 0
      %p69 = por %p67, %p68
      %p70 = scmp.ne.s32.totalorder %s58, %s59
      %p71 = scmp.eq.s32.totalorder %s28, 1
      %p72 = por %p70, %p71
      %p74 = scmp.ne.s32.totalorder %s59, %s73
      %p75 = scmp.eq.s32.totalorder %s28, 0
      %p76 = por %p74, %p75
      %s78 = sadd.s32 %s77, 1
      %p81 = scmp.eq.s32.totalorder %s22, 1
      %p82 = scmp.ne.s32.totalorder %s77, %s79
      %p83 = scmp.eq.s32.totalorder %s22, 0
      %p84 = por %p82, %p83
      %p85 = scmp.ne.s32.totalorder %s77, %s79
      %p86 = scmp.eq.s32.totalorder %s27, 1
      %p87 = por %p85, %p86
      %p88 = scmp.ne.s32.totalorder %s79, %s80
      %p89 = scmp.eq.s32.totalorder %s27, 0
      %p90 = por %p88, %p89
      %p91 = scmp.ne.s32.totalorder %s79, %s80
      %p92 = scmp.eq.s32.totalorder %s28, 1
      %p93 = por %p91, %p92
      %p95 = scmp.ne.s32.totalorder %s80, %s94
      %p96 = scmp.eq.s32.totalorder %s28, 0
      %p97 = por %p95, %p96
      %s99 = sadd.s32 %s98, 1
      %p102 = scmp.eq.s32.totalorder %s22, 1
      %p103 = scmp.ne.s32.totalorder %s98, %s100
      %p104 = scmp.eq.s32.totalorder %s22, 0
      %p105 = por %p103, %p104
      %p106 = scmp.ne.s32.totalorder %s98, %s100
      %p107 = scmp.eq.s32.totalorder %s27, 1
      %p108 = por %p106, %p107
      %p109 = scmp.ne.s32.totalorder %s100, %s101
      %p110 = scmp.eq.s32.totalorder %s27, 0
      %p111 = por %p109, %p110
      %p112 = scmp.ne.s32.totalorder %s100, %s101
      %p113 = scmp.eq.s32.totalorder %s28, 1
      %p114 = por %p112, %p113
      %p116 = scmp.ne.s32.totalorder %s101, %s115
      %p117 = scmp.eq.s32.totalorder %s28, 0
      %p118 = por %p116, %p117
      %s120 = sadd.s32 %s119, 1
      %p123 = scmp.eq.s32.totalorder %s22, 1
      %p124 = scmp.ne.s32.totalorder %s119, %s121
      %p125 = scmp.eq.s32.totalorder %s22, 0
      %p126 = por %p124, %p125
      %p127 = scmp.ne.s32.totalorder %s119, %s121
      %p128 = scmp.eq.s32.totalorder %s27, 1
      %p129 = por %p127, %p128
      %p130 = scmp.ne.s32.totalorder %s121, %s122
      %p131 = scmp.eq.s32.totalorder %s27, 0
      %p132 = por %p130, %p131
      %p133 = scmp.ne.s32.totalorder %s121, %s122
      %p134 = scmp.eq.s32.totalorder %s28, 1
      %p135 = por %p133, %p134
      %p137 = scmp.ne.s32.totalorder %s122, %s136
      %p138 = scmp.eq.s32.totalorder %s28, 0
      %p139 = por %p137, %p138
      %s141 = sadd.s32 %s140, 1
      %p144 = scmp.eq.s32.totalorder %s22, 1
      %p145 = scmp.ne.s32.totalorder %s140, %s142
      %p146 = scmp.eq.s32.totalorder %s22, 0
      %p147 = por %p145, %p146
      %p148 = scmp.ne.s32.totalorder %s140, %s142
      %p149 = scmp.eq.s32.totalorder %s27, 1
      %p150 = por %p148, %p149
      %p151 = scmp.ne.s32.totalorder %s142, %s143
      %p152 = scmp.eq.s32.totalorder %s27, 0
      %p153 = por %p151, %p152
      %p154 = scmp.ne.s32.totalorder %s142, %s143
      %p155 = scmp.eq.s32.totalorder %s28, 1
      %p156 = por %p154, %p155
      %p158 = scmp.ne.s32.totalorder %s143, %s157
      %p159 = scmp.eq.s32.totalorder %s28, 0
      %p160 = por %p158, %p159
      %s162 = sadd.s32 %s161, 1
      %p165 = scmp.eq.s32.totalorder %s22, 1
      %p166 = scmp.ne.s32.totalorder %s161, %s163
      %p167 = scmp.eq.s32.totalorder %s22, 0
      %p168 = por %p166, %p167
      %p169 = scmp.ne.s32.totalorder %s161, %s163
      %p170 = scmp.eq.s32.totalorder %s27, 1
      %p171 = por %p169, %p170
      %p172 = scmp.ne.s32.totalorder %s163, %s164
      %p173 = scmp.eq.s32.totalorder %s27, 0
      %p174 = por %p172, %p173
      %p175 = scmp.ne.s32.totalorder %s163, %s164
      %p176 = scmp.eq.s32.totalorder %s28, 1
      %p177 = por %p175, %p176
      %p179 = scmp.ne.s32.totalorder %s164, %s178
      %p180 = scmp.eq.s32.totalorder %s28, 0
      %p181 = por %p179, %p180
      %s183 = sadd.s32 %s182, 1
      %p186 = scmp.eq.s32.totalorder %s22, 1
      %p187 = scmp.ne.s32.totalorder %s182, %s184
      %p188 = scmp.eq.s32.totalorder %s22, 0
      %p189 = por %p187, %p188
      %p190 = scmp.ne.s32.totalorder %s182, %s184
      %p191 = scmp.eq.s32.totalorder %s27, 1
      %p192 = por %p190, %p191
      %p193 = scmp.ne.s32.totalorder %s184, %s185
      %p194 = scmp.eq.s32.totalorder %s27, 0
      %p195 = por %p193, %p194
      %p196 = scmp.ne.s32.totalorder %s184, %s185
      %p197 = scmp.eq.s32.totalorder %s28, 1
      %p198 = por %p196, %p197
      %p200 = scmp.ne.s32.totalorder %s185, %s199
      %p201 = scmp.eq.s32.totalorder %s28, 0
      %p202 = por %p200, %p201
      %s204 = sadd.s32 %s203, 1
      %p207 = scmp.eq.s32.totalorder %s22, 1
      %p208 = scmp.ne.s32.totalorder %s203, %s205
      %p209 = scmp.eq.s32.totalorder %s22, 0
      %p210 = por %p208, %p209
      %p211 = scmp.ne.s32.totalorder %s203, %s205
      %p212 = scmp.eq.s32.totalorder %s27, 1
      %p213 = por %p211, %p212
      %p214 = scmp.ne.s32.totalorder %s205, %s206
      %p215 = scmp.eq.s32.totalorder %s27, 0
      %p216 = por %p214, %p215
      %p217 = scmp.ne.s32.totalorder %s205, %s206
      %p218 = scmp.eq.s32.totalorder %s28, 1
      %p219 = por %p217, %p218
      %p221 = scmp.ne.s32.totalorder %s206, %s220
      %p222 = scmp.eq.s32.totalorder %s28, 0
      %p223 = por %p221, %p222
      %s225 = sadd.s32 %s224, 1
      %p228 = scmp.eq.s32.totalorder %s22, 1
      %p229 = scmp.ne.s32.totalorder %s224, %s226
      %p230 = scmp.eq.s32.totalorder %s22, 0
      %p231 = por %p229, %p230
      %p232 = scmp.ne.s32.totalorder %s224, %s226
      %p233 = scmp.eq.s32.totalorder %s27, 1
      %p234 = por %p232, %p233
      %p235 = scmp.ne.s32.totalorder %s226, %s227
      %p236 = scmp.eq.s32.totalorder %s27, 0
      %p237 = por %p235, %p236
      %p238 = scmp.ne.s32.totalorder %s226, %s227
      %p239 = scmp.eq.s32.totalorder %s28, 1
      %p240 = por %p238, %p239
      %p242 = scmp.ne.s32.totalorder %s227, %s241
      %p243 = scmp.eq.s32.totalorder %s28, 0
      %p244 = por %p242, %p243
      %s246 = sadd.s32 %s245, 1
      %p249 = scmp.eq.s32.totalorder %s22, 1
      %p250 = scmp.ne.s32.totalorder %s245, %s247
      %p251 = scmp.eq.s32.totalorder %s22, 0
      %p252 = por %p250, %p251
      %p253 = scmp.ne.s32.totalorder %s245, %s247
      %p254 = scmp.eq.s32.totalorder %s27, 1
      %p255 = por %p253, %p254
      %p256 = scmp.ne.s32.totalorder %s247, %s248
      %p257 = scmp.eq.s32.totalorder %s27, 0
      %p258 = por %p256, %p257
      %p259 = scmp.ne.s32.totalorder %s247, %s248
      %p260 = scmp.eq.s32.totalorder %s28, 1
      %p261 = por %p259, %p260
      %p263 = scmp.ne.s32.totalorder %s248, %s262
      %p264 = scmp.eq.s32.totalorder %s28, 0
      %p265 = por %p263, %p264
      %s267 = sadd.s32 %s266, 1
      %p270 = scmp.eq.s32.totalorder %s22, 1
      %p271 = scmp.ne.s32.totalorder %s266, %s268
      %p272 = scmp.eq.s32.totalorder %s22, 0
      %p273 = por %p271, %p272
      %p274 = scmp.ne.s32.totalorder %s266, %s268
      %p275 = scmp.eq.s32.totalorder %s27, 1
      %p276 = por %p274, %p275
      %p277 = scmp.ne.s32.totalorder %s268, %s269
      %p278 = scmp.eq.s32.totalorder %s27, 0
      %p279 = por %p277, %p278
      %p280 = scmp.ne.s32.totalorder %s268, %s269
      %p281 = scmp.eq.s32.totalorder %s28, 1
      %p282 = por %p280, %p281
      %p284 = scmp.ne.s32.totalorder %s269, %s283
      %p285 = scmp.eq.s32.totalorder %s28, 0
      %p286 = por %p284, %p285
      %s287 = ssub.s32 %s22, %s29
      %p288 = scmp.eq.s32.totalorder %s287, 0
      %s290 = sadd.s32 %s289, 1
      %s291 = scalar_select %p288, %s289, %s290
      %p294 = pneg %p288
      %p295 = scmp.eq.s32.totalorder %s22, 1
      %p296 = por %p294, %p295
      %p297 = scmp.ne.s32.totalorder %s289, %s292
      %p298 = scmp.eq.s32.totalorder %s22, 0
      %p299 = por %p297, %p298
      %p300 = scmp.ne.s32.totalorder %s289, %s292
      %p301 = scmp.eq.s32.totalorder %s27, 1
      %p302 = por %p300, %p301
      %p303 = scmp.ne.s32.totalorder %s292, %s293
      %p304 = scmp.eq.s32.totalorder %s27, 0
      %p305 = por %p303, %p304
      %p306 = scmp.ne.s32.totalorder %s292, %s293
      %p307 = scmp.eq.s32.totalorder %s28, 1
      %p308 = por %p306, %p307
      %p310 = scmp.ne.s32.totalorder %s293, %s309
      %p311 = scmp.eq.s32.totalorder %s28, 0
      %p312 = por %p310, %p311
      %p313 = scmp.le.s32.totalorder 1, %s22
      %p314 = scmp.lt.s32.totalorder %s22, 3
      %p315 = pnand %p313, %p314
      %p316 = pneg %p315
      // Predicated region
      $region9: #{tpu_custom_call.1} parent=5 // pred_check
        _
      $region10: #{tpu_custom_call.1} parent=5 // pred_check_branch
        %318 = sbr.rel (%p315) target = $region12
      $region11: #{tpu_custom_call.1} parent=5 // pred_region
        %s319 = ssub.s32 %s22, 1
        // Predicated region
        $region13: #{tpu_custom_call.1} parent=11 // pred_check
          %p320 = pneg %p69
        $region14: #{tpu_custom_call.1} parent=11 // pred_check_branch
          %322 = sbr.rel (%p320) target = $region16
        $region15: #{tpu_custom_call.1} parent=11 // pred_region
          _
        $region16: #{tpu_custom_call.1} parent=11 // pred_fallthru
          _
        // Predicated region
        $region17: #{tpu_custom_call.1} parent=11 // pred_check
          %p323 = pneg %p90
        $region18: #{tpu_custom_call.1} parent=11 // pred_check_branch
          %325 = sbr.rel (%p323) target = $region20
        $region19: #{tpu_custom_call.1} parent=11 // pred_region
          _
        $region20: #{tpu_custom_call.1} parent=11 // pred_fallthru
          _
        // Predicated region
        $region21: #{tpu_custom_call.1} parent=11 // pred_check
          %p326 = pneg %p111
        $region22: #{tpu_custom_call.1} parent=11 // pred_check_branch
          %328 = sbr.rel (%p326) target = $region24
        $region23: #{tpu_custom_call.1} parent=11 // pred_region
          _
        $region24: #{tpu_custom_call.1} parent=11 // pred_fallthru
          _
        // Predicated region
        $region25: #{tpu_custom_call.1} parent=11 // pred_check
          %p329 = pneg %p132
        $region26: #{tpu_custom_call.1} parent=11 // pred_check_branch
          %331 = sbr.rel (%p329) target = $region28
        $region27: #{tpu_custom_call.1} parent=11 // pred_region
          _
        $region28: #{tpu_custom_call.1} parent=11 // pred_fallthru
          _
        // Predicated region
        $region29: #{tpu_custom_call.1} parent=11 // pred_check
          %p332 = pneg %p153
        $region30: #{tpu_custom_call.1} parent=11 // pred_check_branch
          %334 = sbr.rel (%p332) target = $region32
        $region31: #{tpu_custom_call.1} parent=11 // pred_region
          _
        $region32: #{tpu_custom_call.1} parent=11 // pred_fallthru
          _
        // Predicated region
        $region33: #{tpu_custom_call.1} parent=11 // pred_check
          %p335 = pneg %p174
        $region34: #{tpu_custom_call.1} parent=11 // pred_check_branch
          %337 = sbr.rel (%p335) target = $region36
        $region35: #{tpu_custom_call.1} parent=11 // pred_region
          _
        $region36: #{tpu_custom_call.1} parent=11 // pred_fallthru
          _
        // Predicated region
        $region37: #{tpu_custom_call.1} parent=11 // pred_check
          %p338 = pneg %p195
        $region38: #{tpu_custom_call.1} parent=11 // pred_check_branch
          %340 = sbr.rel (%p338) target = $region40
        $region39: #{tpu_custom_call.1} parent=11 // pred_region
          _
        $region40: #{tpu_custom_call.1} parent=11 // pred_fallthru
          _
        // Predicated region
        $region41: #{tpu_custom_call.1} parent=11 // pred_check
          %p341 = pneg %p216
        $region42: #{tpu_custom_call.1} parent=11 // pred_check_branch
          %343 = sbr.rel (%p341) target = $region44
        $region43: #{tpu_custom_call.1} parent=11 // pred_region
          %s345 = ssub.s32 512, 512
          %346 = vsyncadd [#allocation4], %s345
          %s347 = sshll.u32 [#allocation3], 4
          %s348 = int_to_ptr.vmem [resolvable:$true] %s347
          %353 = dma.hbm_to_vmem [thread:$0]  %s8, 512, %s348, [#allocation4], 128, 128, 8
        $region44: #{tpu_custom_call.1} parent=11 // pred_fallthru
          _
        // Predicated region
        $region45: #{tpu_custom_call.1} parent=11 // pred_check
          %p354 = pneg %p237
        $region46: #{tpu_custom_call.1} parent=11 // pred_check_branch
          %356 = sbr.rel (%p354) target = $region48
        $region47: #{tpu_custom_call.1} parent=11 // pred_region
          _
        $region48: #{tpu_custom_call.1} parent=11 // pred_fallthru
          _
        // Predicated region
        $region49: #{tpu_custom_call.1} parent=11 // pred_check
          %p357 = pneg %p258
        $region50: #{tpu_custom_call.1} parent=11 // pred_check_branch
          %359 = sbr.rel (%p357) target = $region52
        $region51: #{tpu_custom_call.1} parent=11 // pred_region
          _
        $region52: #{tpu_custom_call.1} parent=11 // pred_fallthru
          _
        // Predicated region
        $region53: #{tpu_custom_call.1} parent=11 // pred_check
          %p360 = pneg %p279
        $region54: #{tpu_custom_call.1} parent=11 // pred_check_branch
          %362 = sbr.rel (%p360) target = $region56
        $region55: #{tpu_custom_call.1} parent=11 // pred_region
          _
        $region56: #{tpu_custom_call.1} parent=11 // pred_fallthru
          _
      $region12: #{tpu_custom_call.1} parent=5 // pred_fallthru
        _
      %p363 = scmp.lt.s32.totalorder %s22, 2
      // Predicated region
      $region57: #{tpu_custom_call.1} parent=5 // pred_check
        %p364 = pneg %p363
      $region58: #{tpu_custom_call.1} parent=5 // pred_check_branch
        %366 = sbr.rel (%p364) target = $region60
      $region59: #{tpu_custom_call.1} parent=5 // pred_region
        // Predicated region
        $region61: #{tpu_custom_call.1} parent=59 // pred_check
          %p367 = pneg %p42
        $region62: #{tpu_custom_call.1} parent=59 // pred_check_branch
          %369 = sbr.rel (%p367) target = $region64
        $region63: #{tpu_custom_call.1} parent=59 // pred_region
          %s370 = smul.u32 2, %s22
          %p371 = scmp.lt.s32.totalorder %s370, 3
          %s372 = scalar_select %p371, %s370, 3
          %s373 = smul.addr %s372, 8
          %s374 = scalar_lea.vmem %s0, %s373
          %s375 = smul.u32 2, %s22
        $region64: #{tpu_custom_call.1} parent=59 // pred_fallthru
          _
      $region60: #{tpu_custom_call.1} parent=5 // pred_fallthru
        _
      %p376 = scmp.le.s32.totalorder 1, %s22
      %p377 = scmp.lt.s32.totalorder %s22, 3
      %p378 = pnand %p376, %p377
      %p379 = pneg %p378
      // Predicated region
      $region65: #{tpu_custom_call.1} parent=5 // pred_check
        _
      $region66: #{tpu_custom_call.1} parent=5 // pred_check_branch
        %381 = sbr.rel (%p378) target = $region68
      $region67: #{tpu_custom_call.1} parent=5 // pred_region
        %s382 = ssub.s32 %s22, 1
        // Predicated region
        $region69: #{tpu_custom_call.1} parent=67 // pred_check
          %p383 = pneg %p216
        $region70: #{tpu_custom_call.1} parent=67 // pred_check_branch
          %385 = sbr.rel (%p383) target = $region72
        $region71: #{tpu_custom_call.1} parent=67 // pred_region
          %386 = dma.done [#allocation4], 512
        $region72: #{tpu_custom_call.1} parent=67 // pred_fallthru
          _
        %s387 = smul.u32 2, %s27
        %p388 = scmp.lt.s32.totalorder %s387, 3
        %s389 = scalar_select %p388, %s387, 3
        %s390 = smul.addr %s389, 8
        %s391 = scalar_lea.vmem %s0, %s390
        %p392 = pneg %p48
        %p393 = pneg %p45
        %p394 = pneg %p69
        %p395 = pneg %p66
        %p396 = pneg %p90
        %p397 = pneg %p87
        %p398 = pneg %p111
        %p399 = pneg %p108
        %p400 = pneg %p132
        %p401 = pneg %p129
        %p402 = pneg %p153
        %p403 = pneg %p150
        %p404 = pneg %p174
        %p405 = pneg %p171
        %p406 = pneg %p195
        %p407 = pneg %p192
        %p408 = pneg %p216
        %p409 = pneg %p213
        %p410 = pneg %p237
        %p411 = pneg %p234
        %p412 = pneg %p258
        %p413 = pneg %p255
        %p414 = pneg %p279
        %p415 = pneg %p276
        %p416 = pneg %p305
        %p417 = pneg %p302
        %s418 = sand.u32 %s292, 1
        %s419 = scalar_lea.sflag [#allocation5], %s418
        %s420 = sand.u32 %s292, 1
        %s421 = smul.addr %s420, 16
        %s422 = scalar_lea.vmem [#allocation6], %s421
        %s423 = smul.u32 2, %s27
        %p424 = scmp.lt.s32.totalorder %s423, 3
        %s425 = scalar_select %p424, %s423, 3
        %s426 = smul.addr %s425, 8
        %s427 = scalar_lea.vmem %s0, %s426
        %s428 = smul.u32 2, %s27
        %s429 = smul.u32 2, %s27
        %v430 = vld [vmem:[%s427] sm:$0xff]
        %v431 = vld [vmem:[%s427 + $0x8] sm:$0xff]
        %v432 = vld [vmem:[%s1] sm:$0x1]
        %v433 = vld [vmem:[%s2] sm:$0x1]
        %vm434 = vcmask 261120
        %v435 = vsel %vm434, %v430, 0.0
        %436 = vadd.xlane.f32.xlu0 %v435
        %v437 = vpop.xlane.xlu0 %436
        %v438 = vsel %vm434, %v431, 0.0
        %439 = vadd.xlane.f32.xlu0 %v438
        %v440 = vpop.xlane.xlu0 %439
        %v441 = vrcp.pop 32.0
        %v442 = vmul.f32 %v437, %v441
        %v443 = vmul.f32 %v440, %v441
        %v444 = vsub.f32 %v430, %v442
        %v445 = vsub.f32 %v431, %v443
        %v446 = vmul.f32 %v444, %v444
        %v447 = vmul.f32 %v445, %v445
        %v448 = vsel %vm434, %v446, 0.0
        %449 = vadd.xlane.f32.xlu0 %v448
        %v450 = vpop.xlane.xlu0 %449
        %v451 = vsel %vm434, %v447, 0.0
        %452 = vadd.xlane.f32.xlu0 %v451
        %v453 = vpop.xlane.xlu0 %452
        %v454 = vmul.f32 %v450, %v441
        %v455 = vmul.f32 %v453, %v441
        %v456 = vadd.f32 %v454, 1e-05
        %v457 = vadd.f32 %v455, 1e-05
        %v458 = vrsqrt.pop %v456
        %v459 = vrsqrt.pop %v457
        %v460 = vmul.f32 %v444, %v458
        %v461 = vmul.f32 %v445, %v459
        %v463 = vlaneseq
        %v464 = vshrl.u32 %v463, 7
        %v465 = vsub.s32 0, %v464
        %v466 = vrot.slane %v432, %v465
        %v468 = vmul.f32 %v460, %v466
        %v469 = vmul.f32 %v461, %v466
        %v471 = vlaneseq
        %v472 = vshrl.u32 %v471, 7
        %v473 = vsub.s32 0, %v472
        %v474 = vrot.slane %v433, %v473
        %v476 = vadd.f32 %v468, %v474
        %v477 = vadd.f32 %v469, %v474
        %v478 = vld [vmem:[%s3] sm:$0xff]
        %v479 = vld [vmem:[%s3 + $0x8] sm:$0xff]
        %v480 = vld [vmem:[%s3 + $0x10] sm:$0xff]
        %v481 = vld [vmem:[%s3 + $0x18] sm:$0xff]
        %v483 = vsel %vm434, %v476, 0
        %v486 = vsel %vm434, %v477, 0
        %488 = vmatprep.subr.mxu0 0.0
        %489 = vmatpush1.msra.mxu0 0.0
        %490 = vmatprep.subr.mxu0 0.0
        %491 = vmatpush1.msra.mxu0 0.0
        %492 = vmatprep.subr.mxu0 0.0
        %493 = vmatpush1.msra.mxu0 0.0
        %494 = vmatprep.subr.mxu0 0.0
        %495 = vmatpush1.msra.mxu0 0.0
        %496 = vmatprep.subr.mxu0 0.0
        %497 = vmatpush1.msra.mxu0 0.0
        %498 = vmatprep.subr.mxu0 0.0
        %499 = vmatpush1.msra.mxu0 0.0
        %500 = vmatprep.subr.mxu0 0.0
        %501 = vmatpush1.msra.mxu0 0.0
        %502 = vmatprep.subr.mxu0 0.0
        %503 = vmatpush1.msra.mxu0 0.0
        %504 = vmatprep.subr.mxu0 0.0
        %505 = vmatpush1.msra.mxu0 0.0
        %506 = vmatprep.subr.mxu0 0.0
        %507 = vmatpush1.msra.mxu0 0.0
        %508 = vmatprep.subr.mxu0 0.0
        %509 = vmatpush1.msra.mxu0 0.0
        %510 = vmatprep.subr.mxu0 0.0
        %511 = vmatpush1.msra.mxu0 0.0
        %512 = vmatprep.subr.mxu0 0.0
        %513 = vmatpush1.msra.mxu0 %v481
        %514 = vmatprep.subr.mxu0 0.0
        %515 = vmatpush1.msra.mxu0 %v480
        %516 = vmatprep.subr.mxu0 0.0
        %517 = vmatpush1.msra.mxu0 %v479
        %518 = vmatprep.subr.mxu0 0.0
        %519 = vmatpush1.msra.mxu0 %v478
        %520 = vmatprep.subr.mxu0 0.0
        %521 = vmatpush2.msra.mxu0 0.0
        %522 = vmatprep.subr.mxu0 0.0
        %523 = vmatpush2.msra.mxu0 0.0
        %524 = vmatprep.subr.mxu0 0.0
        %525 = vmatpush2.msra.mxu0 0.0
        %526 = vmatprep.subr.mxu0 0.0
        %527 = vmatpush2.msra.mxu0 0.0
        %528 = vmatprep.subr.mxu0 0.0
        %529 = vmatpush2.msra.mxu0 0.0
        %530 = vmatprep.subr.mxu0 0.0
        %531 = vmatpush2.msra.mxu0 0.0
        %532 = vmatprep.subr.mxu0 0.0
        %533 = vmatpush2.msra.mxu0 0.0
        %534 = vmatprep.subr.mxu0 0.0
        %535 = vmatpush2.msra.mxu0 0.0
        %536 = vmatprep.subr.mxu0 0.0
        %537 = vmatpush2.msra.mxu0 0.0
        %538 = vmatprep.subr.mxu0 0.0
        %539 = vmatpush2.msra.mxu0 0.0
        %540 = vmatprep.subr.mxu0 0.0
        %541 = vmatpush2.msra.mxu0 0.0
        %542 = vmatprep.subr.mxu0 0.0
        %543 = vmatpush2.msra.mxu0 0.0
        %544 = vmatprep.subr.mxu0 0.0
        %545 = vmatpush2.msra.mxu0 0.0
        %546 = vmatprep.subr.mxu0 0.0
        %547 = vmatpush2.msra.mxu0 0.0
        %548 = vmatprep.subr.mxu0 0.0
        %549 = vmatpush2.msra.mxu0 0.0
        %550 = vmatprep.subr.mxu0 0.0
        %551 = vmatpush2.msra.mxu0 0.0
        %552 = vmatprep.mubr.f32.mxu0 0.0
        %553 = vmatmul.mubr.f32.gmra.mxu0 %v483
        %v554 = vpop.f32.mrf.mxu0
        %v555 = vadd.f32 0.0, %v554
        %v556 = vpop.f32.mrf.mxu0
        %557 = vmatprep.mubr.f32.mxu0 0.0
        %558 = vmatmul.mubr.f32.gmra.mxu0 %v486
        %v559 = vpop.f32.mrf.mxu0
        %v560 = vadd.f32 0.0, %v559
        %v561 = vpop.f32.mrf.mxu0
        %562 = vdwg.mxu0
        %564 = vrot.lane.b32.xlu0 %v555, 96
        %v565 = vpop.permute.xlu0 %564
        %vm566 = vcmask 64512
        %v567 = vsel %vm566, %v555, 0
        %v569 = vsel %vm566, %v565, 0
        %571 = vmatprep.subr.mxu0 0.0
        %572 = vmatpush1.xpose.msra.mxu0 0.0
        %573 = vmatprep.subr.mxu0 0.0
        %574 = vmatpush1.xpose.msra.mxu0 0.0
        %575 = vmatprep.subr.mxu0 0.0
        %576 = vmatpush1.xpose.msra.mxu0 0.0
        %577 = vmatprep.subr.mxu0 0.0
        %578 = vmatpush1.xpose.msra.mxu0 0.0
        %579 = vmatprep.subr.mxu0 0.0
        %580 = vmatpush1.xpose.msra.mxu0 0.0
        %581 = vmatprep.subr.mxu0 0.0
        %582 = vmatpush1.xpose.msra.mxu0 0.0
        %583 = vmatprep.subr.mxu0 0.0
        %584 = vmatpush1.xpose.msra.mxu0 0.0
        %585 = vmatprep.subr.mxu0 0.0
        %586 = vmatpush1.xpose.msra.mxu0 0.0
        %587 = vmatprep.subr.mxu0 0.0
        %588 = vmatpush1.xpose.msra.mxu0 0.0
        %589 = vmatprep.subr.mxu0 0.0
        %590 = vmatpush1.xpose.msra.mxu0 0.0
        %591 = vmatprep.subr.mxu0 0.0
        %592 = vmatpush1.xpose.msra.mxu0 0.0
        %593 = vmatprep.subr.mxu0 0.0
        %594 = vmatpush1.xpose.msra.mxu0 0.0
        %595 = vmatprep.subr.mxu0 0.0
        %596 = vmatpush1.xpose.msra.mxu0 0.0
        %597 = vmatprep.subr.mxu0 0.0
        %598 = vmatpush1.xpose.msra.mxu0 0.0
        %599 = vmatprep.subr.mxu0 0.0
        %600 = vmatpush1.xpose.msra.mxu0 0.0
        %601 = vmatprep.subr.mxu0 0.0
        %602 = vmatpush1.xpose.msra.mxu0 %v569
        %603 = vmatprep.subr.mxu0 0.0
        %604 = vmatpush2.xpose.msra.mxu0 0.0
        %605 = vmatprep.subr.mxu0 0.0
        %606 = vmatpush2.xpose.msra.mxu0 0.0
        %607 = vmatprep.subr.mxu0 0.0
        %608 = vmatpush2.xpose.msra.mxu0 0.0
        %609 = vmatprep.subr.mxu0 0.0
        %610 = vmatpush2.xpose.msra.mxu0 0.0
        %611 = vmatprep.subr.mxu0 0.0
        %612 = vmatpush2.xpose.msra.mxu0 0.0
        %613 = vmatprep.subr.mxu0 0.0
        %614 = vmatpush2.xpose.msra.mxu0 0.0
        %615 = vmatprep.subr.mxu0 0.0
        %616 = vmatpush2.xpose.msra.mxu0 0.0
        %617 = vmatprep.subr.mxu0 0.0
        %618 = vmatpush2.xpose.msra.mxu0 0.0
        %619 = vmatprep.subr.mxu0 0.0
        %620 = vmatpush2.xpose.msra.mxu0 0.0
        %621 = vmatprep.subr.mxu0 0.0
        %622 = vmatpush2.xpose.msra.mxu0 0.0
        %623 = vmatprep.subr.mxu0 0.0
        %624 = vmatpush2.xpose.msra.mxu0 0.0
        %625 = vmatprep.subr.mxu0 0.0
        %626 = vmatpush2.xpose.msra.mxu0 0.0
        %627 = vmatprep.subr.mxu0 0.0
        %628 = vmatpush2.xpose.msra.mxu0 0.0
        %629 = vmatprep.subr.mxu0 0.0
        %630 = vmatpush2.xpose.msra.mxu0 0.0
        %631 = vmatprep.subr.mxu0 0.0
        %632 = vmatpush2.xpose.msra.mxu0 0.0
        %633 = vmatprep.subr.mxu0 0.0
        %634 = vmatpush2.xpose.msra.mxu0 0.0
        %635 = vmatprep.mubr.f32.mxu0 0.0
        %636 = vmatmul.mubr.f32.gmra.mxu0 %v567
        %v637 = vpop.f32.mrf.mxu0
        %v638 = vadd.f32 0.0, %v637
        %v639 = vpop.f32.mrf.mxu0
        %640 = vdwg.mxu0
        %642 = vrot.lane.b32.xlu0 %v560, 96
        %v643 = vpop.permute.xlu0 %642
        %v644 = vsel %vm566, %v560, 0
        %v646 = vsel %vm566, %v643, 0
        %648 = vmatprep.subr.mxu0 0.0
        %649 = vmatpush1.xpose.msra.mxu0 0.0
        %650 = vmatprep.subr.mxu0 0.0
        %651 = vmatpush1.xpose.msra.mxu0 0.0
        %652 = vmatprep.subr.mxu0 0.0
        %653 = vmatpush1.xpose.msra.mxu0 0.0
        %654 = vmatprep.subr.mxu0 0.0
        %655 = vmatpush1.xpose.msra.mxu0 0.0
        %656 = vmatprep.subr.mxu0 0.0
        %657 = vmatpush1.xpose.msra.mxu0 0.0
        %658 = vmatprep.subr.mxu0 0.0
        %659 = vmatpush1.xpose.msra.mxu0 0.0
        %660 = vmatprep.subr.mxu0 0.0
        %661 = vmatpush1.xpose.msra.mxu0 0.0
        %662 = vmatprep.subr.mxu0 0.0
        %663 = vmatpush1.xpose.msra.mxu0 0.0
        %664 = vmatprep.subr.mxu0 0.0
        %665 = vmatpush1.xpose.msra.mxu0 0.0
        %666 = vmatprep.subr.mxu0 0.0
        %667 = vmatpush1.xpose.msra.mxu0 0.0
        %668 = vmatprep.subr.mxu0 0.0
        %669 = vmatpush1.xpose.msra.mxu0 0.0
        %670 = vmatprep.subr.mxu0 0.0
        %671 = vmatpush1.xpose.msra.mxu0 0.0
        %672 = vmatprep.subr.mxu0 0.0
        %673 = vmatpush1.xpose.msra.mxu0 0.0
        %674 = vmatprep.subr.mxu0 0.0
        %675 = vmatpush1.xpose.msra.mxu0 0.0
        %676 = vmatprep.subr.mxu0 0.0
        %677 = vmatpush1.xpose.msra.mxu0 0.0
        %678 = vmatprep.subr.mxu0 0.0
        %679 = vmatpush1.xpose.msra.mxu0 %v646
        %680 = vmatprep.subr.mxu0 0.0
        %681 = vmatpush2.xpose.msra.mxu0 0.0
        %682 = vmatprep.subr.mxu0 0.0
        %683 = vmatpush2.xpose.msra.mxu0 0.0
        %684 = vmatprep.subr.mxu0 0.0
        %685 = vmatpush2.xpose.msra.mxu0 0.0
        %686 = vmatprep.subr.mxu0 0.0
        %687 = vmatpush2.xpose.msra.mxu0 0.0
        %688 = vmatprep.subr.mxu0 0.0
        %689 = vmatpush2.xpose.msra.mxu0 0.0
        %690 = vmatprep.subr.mxu0 0.0
        %691 = vmatpush2.xpose.msra.mxu0 0.0
        %692 = vmatprep.subr.mxu0 0.0
        %693 = vmatpush2.xpose.msra.mxu0 0.0
        %694 = vmatprep.subr.mxu0 0.0
        %695 = vmatpush2.xpose.msra.mxu0 0.0
        %696 = vmatprep.subr.mxu0 0.0
        %697 = vmatpush2.xpose.msra.mxu0 0.0
        %698 = vmatprep.subr.mxu0 0.0
        %699 = vmatpush2.xpose.msra.mxu0 0.0
        %700 = vmatprep.subr.mxu0 0.0
        %701 = vmatpush2.xpose.msra.mxu0 0.0
        %702 = vmatprep.subr.mxu0 0.0
        %703 = vmatpush2.xpose.msra.mxu0 0.0
        %704 = vmatprep.subr.mxu0 0.0
        %705 = vmatpush2.xpose.msra.mxu0 0.0
        %706 = vmatprep.subr.mxu0 0.0
        %707 = vmatpush2.xpose.msra.mxu0 0.0
        %708 = vmatprep.subr.mxu0 0.0
        %709 = vmatpush2.xpose.msra.mxu0 0.0
        %710 = vmatprep.subr.mxu0 0.0
        %711 = vmatpush2.xpose.msra.mxu0 0.0
        %712 = vmatprep.mubr.f32.mxu0 0.0
        %713 = vmatmul.mubr.f32.gmra.mxu0 %v644
        %v714 = vpop.f32.mrf.mxu0
        %v715 = vadd.f32 0.0, %v714
        %v716 = vpop.f32.mrf.mxu0
        %717 = vdwg.mxu0
        %v718 = vsel %vm566, %v638, -inf
        %719 = vmax.xlane.f32.xlu0 %v718
        %v720 = vpop.xlane.xlu0 %719
        %v721 = vsel %vm566, %v715, -inf
        %722 = vmax.xlane.f32.xlu0 %v721
        %v723 = vpop.xlane.xlu0 %722
        %v724 = vsub.f32 %v638, %v720
        %v725 = vsub.f32 %v715, %v723
        %v726 = vmul.f32 %v724, 1.442695
        %v727 = vpow.pop %v726
        %v728 = vmul.f32 %v725, 1.442695
        %v729 = vpow.pop %v728
        %v730 = vsel %vm566, %v727, 0.0
        %731 = vadd.xlane.f32.xlu0 %v730
        %v732 = vpop.xlane.xlu0 %731
        %v733 = vsel %vm566, %v729, 0.0
        %734 = vadd.xlane.f32.xlu0 %v733
        %v735 = vpop.xlane.xlu0 %734
        %v736 = vrcp.pop %v732
        %v737 = vrcp.pop %v735
        %v738 = vmul.f32 %v727, %v736
        %v739 = vmul.f32 %v729, %v737
        %740 = vrot.lane.b32.xlu0 %v555, 64
        %v741 = vpop.permute.xlu0 %740
        %v744 = vsel %vm566, %v738, 0
        %746 = vmatprep.subr.mxu0 0.0
        %747 = vmatpush1.msra.mxu0 0.0
        %748 = vmatprep.subr.mxu0 0.0
        %749 = vmatpush1.msra.mxu0 0.0
        %750 = vmatprep.subr.mxu0 0.0
        %751 = vmatpush1.msra.mxu0 0.0
        %752 = vmatprep.subr.mxu0 0.0
        %753 = vmatpush1.msra.mxu0 0.0
        %754 = vmatprep.subr.mxu0 0.0
        %755 = vmatpush1.msra.mxu0 0.0
        %756 = vmatprep.subr.mxu0 0.0
        %757 = vmatpush1.msra.mxu0 0.0
        %758 = vmatprep.subr.mxu0 0.0
        %759 = vmatpush1.msra.mxu0 0.0
        %760 = vmatprep.subr.mxu0 0.0
        %761 = vmatpush1.msra.mxu0 0.0
        %762 = vmatprep.subr.mxu0 0.0
        %763 = vmatpush1.msra.mxu0 0.0
        %764 = vmatprep.subr.mxu0 0.0
        %765 = vmatpush1.msra.mxu0 0.0
        %766 = vmatprep.subr.mxu0 0.0
        %767 = vmatpush1.msra.mxu0 0.0
        %768 = vmatprep.subr.mxu0 0.0
        %769 = vmatpush1.msra.mxu0 0.0
        %770 = vmatprep.subr.mxu0 0.0
        %771 = vmatpush1.msra.mxu0 0.0
        %772 = vmatprep.subr.mxu0 0.0
        %773 = vmatpush1.msra.mxu0 0.0
        %774 = vmatprep.subr.mxu0 0.0
        %775 = vmatpush1.msra.mxu0 0.0
        %776 = vmatprep.subr.mxu0 0.0
        %777 = vmatpush1.msra.mxu0 %v741
        %778 = vmatprep.subr.mxu0 0.0
        %779 = vmatpush2.msra.mxu0 0.0
        %780 = vmatprep.subr.mxu0 0.0
        %781 = vmatpush2.msra.mxu0 0.0
        %782 = vmatprep.subr.mxu0 0.0
        %783 = vmatpush2.msra.mxu0 0.0
        %784 = vmatprep.subr.mxu0 0.0
        %785 = vmatpush2.msra.mxu0 0.0
        %786 = vmatprep.subr.mxu0 0.0
        %787 = vmatpush2.msra.mxu0 0.0
        %788 = vmatprep.subr.mxu0 0.0
        %789 = vmatpush2.msra.mxu0 0.0
        %790 = vmatprep.subr.mxu0 0.0
        %791 = vmatpush2.msra.mxu0 0.0
        %792 = vmatprep.subr.mxu0 0.0
        %793 = vmatpush2.msra.mxu0 0.0
        %794 = vmatprep.subr.mxu0 0.0
        %795 = vmatpush2.msra.mxu0 0.0
        %796 = vmatprep.subr.mxu0 0.0
        %797 = vmatpush2.msra.mxu0 0.0
        %798 = vmatprep.subr.mxu0 0.0
        %799 = vmatpush2.msra.mxu0 0.0
        %800 = vmatprep.subr.mxu0 0.0
        %801 = vmatpush2.msra.mxu0 0.0
        %802 = vmatprep.subr.mxu0 0.0
        %803 = vmatpush2.msra.mxu0 0.0
        %804 = vmatprep.subr.mxu0 0.0
        %805 = vmatpush2.msra.mxu0 0.0
        %806 = vmatprep.subr.mxu0 0.0
        %807 = vmatpush2.msra.mxu0 0.0
        %808 = vmatprep.subr.mxu0 0.0
        %809 = vmatpush2.msra.mxu0 0.0
        %810 = vmatprep.mubr.f32.mxu0 0.0
        %811 = vmatmul.mubr.f32.gmra.mxu0 %v744
        %v812 = vpop.f32.mrf.mxu0
        %v813 = vadd.f32 0.0, %v812
        %v814 = vpop.f32.mrf.mxu0
        %815 = vdwg.mxu0
        %816 = vrot.lane.b32.xlu0 %v560, 64
        %v817 = vpop.permute.xlu0 %816
        %v820 = vsel %vm566, %v739, 0
        %822 = vmatprep.subr.mxu0 0.0
        %823 = vmatpush1.msra.mxu0 0.0
        %824 = vmatprep.subr.mxu0 0.0
        %825 = vmatpush1.msra.mxu0 0.0
        %826 = vmatprep.subr.mxu0 0.0
        %827 = vmatpush1.msra.mxu0 0.0
        %828 = vmatprep.subr.mxu0 0.0
        %829 = vmatpush1.msra.mxu0 0.0
        %830 = vmatprep.subr.mxu0 0.0
        %831 = vmatpush1.msra.mxu0 0.0
        %832 = vmatprep.subr.mxu0 0.0
        %833 = vmatpush1.msra.mxu0 0.0
        %834 = vmatprep.subr.mxu0 0.0
        %835 = vmatpush1.msra.mxu0 0.0
        %836 = vmatprep.subr.mxu0 0.0
        %837 = vmatpush1.msra.mxu0 0.0
        %838 = vmatprep.subr.mxu0 0.0
        %839 = vmatpush1.msra.mxu0 0.0
        %840 = vmatprep.subr.mxu0 0.0
        %841 = vmatpush1.msra.mxu0 0.0
        %842 = vmatprep.subr.mxu0 0.0
        %843 = vmatpush1.msra.mxu0 0.0
        %844 = vmatprep.subr.mxu0 0.0
        %845 = vmatpush1.msra.mxu0 0.0
        %846 = vmatprep.subr.mxu0 0.0
        %847 = vmatpush1.msra.mxu0 0.0
        %848 = vmatprep.subr.mxu0 0.0
        %849 = vmatpush1.msra.mxu0 0.0
        %850 = vmatprep.subr.mxu0 0.0
        %851 = vmatpush1.msra.mxu0 0.0
        %852 = vmatprep.subr.mxu0 0.0
        %853 = vmatpush1.msra.mxu0 %v817
        %854 = vmatprep.subr.mxu0 0.0
        %855 = vmatpush2.msra.mxu0 0.0
        %856 = vmatprep.subr.mxu0 0.0
        %857 = vmatpush2.msra.mxu0 0.0
        %858 = vmatprep.subr.mxu0 0.0
        %859 = vmatpush2.msra.mxu0 0.0
        %860 = vmatprep.subr.mxu0 0.0
        %861 = vmatpush2.msra.mxu0 0.0
        %862 = vmatprep.subr.mxu0 0.0
        %863 = vmatpush2.msra.mxu0 0.0
        %864 = vmatprep.subr.mxu0 0.0
        %865 = vmatpush2.msra.mxu0 0.0
        %866 = vmatprep.subr.mxu0 0.0
        %867 = vmatpush2.msra.mxu0 0.0
        %868 = vmatprep.subr.mxu0 0.0
        %869 = vmatpush2.msra.mxu0 0.0
        %870 = vmatprep.subr.mxu0 0.0
        %871 = vmatpush2.msra.mxu0 0.0
        %872 = vmatprep.subr.mxu0 0.0
        %873 = vmatpush2.msra.mxu0 0.0
        %874 = vmatprep.subr.mxu0 0.0
        %875 = vmatpush2.msra.mxu0 0.0
        %876 = vmatprep.subr.mxu0 0.0
        %877 = vmatpush2.msra.mxu0 0.0
        %878 = vmatprep.subr.mxu0 0.0
        %879 = vmatpush2.msra.mxu0 0.0
        %880 = vmatprep.subr.mxu0 0.0
        %881 = vmatpush2.msra.mxu0 0.0
        %882 = vmatprep.subr.mxu0 0.0
        %883 = vmatpush2.msra.mxu0 0.0
        %884 = vmatprep.subr.mxu0 0.0
        %885 = vmatpush2.msra.mxu0 0.0
        %886 = vmatprep.mubr.f32.mxu0 0.0
        %887 = vmatmul.mubr.f32.gmra.mxu0 %v820
        %v888 = vpop.f32.mrf.mxu0
        %v889 = vadd.f32 0.0, %v888
        %v890 = vpop.f32.mrf.mxu0
        %891 = vdwg.mxu0
        %892 = vst.msk [vmem:[#allocation2] sm:$0xff] %vm566, %v813
        %893 = vst.msk [vmem:[#allocation2 + $0x8] sm:$0xff] %vm566, %v889
        %894 = vrot.lane.b32.xlu0 %v555, 120
        %v895 = vpop.permute.xlu0 %894
        %896 = vrot.lane.b32.xlu0 %v555, 88
        %v897 = vpop.permute.xlu0 %896
        %v898 = vsel %vm566, %v895, 0
        %v900 = vsel %vm566, %v897, 0
        %902 = vmatprep.subr.mxu0 0.0
        %903 = vmatpush1.xpose.msra.mxu0 0.0
        %904 = vmatprep.subr.mxu0 0.0
        %905 = vmatpush1.xpose.msra.mxu0 0.0
        %906 = vmatprep.subr.mxu0 0.0
        %907 = vmatpush1.xpose.msra.mxu0 0.0
        %908 = vmatprep.subr.mxu0 0.0
        %909 = vmatpush1.xpose.msra.mxu0 0.0
        %910 = vmatprep.subr.mxu0 0.0
        %911 = vmatpush1.xpose.msra.mxu0 0.0
        %912 = vmatprep.subr.mxu0 0.0
        %913 = vmatpush1.xpose.msra.mxu0 0.0
        %914 = vmatprep.subr.mxu0 0.0
        %915 = vmatpush1.xpose.msra.mxu0 0.0
        %916 = vmatprep.subr.mxu0 0.0
        %917 = vmatpush1.xpose.msra.mxu0 0.0
        %918 = vmatprep.subr.mxu0 0.0
        %919 = vmatpush1.xpose.msra.mxu0 0.0
        %920 = vmatprep.subr.mxu0 0.0
        %921 = vmatpush1.xpose.msra.mxu0 0.0
        %922 = vmatprep.subr.mxu0 0.0
        %923 = vmatpush1.xpose.msra.mxu0 0.0
        %924 = vmatprep.subr.mxu0 0.0
        %925 = vmatpush1.xpose.msra.mxu0 0.0
        %926 = vmatprep.subr.mxu0 0.0
        %927 = vmatpush1.xpose.msra.mxu0 0.0
        %928 = vmatprep.subr.mxu0 0.0
        %929 = vmatpush1.xpose.msra.mxu0 0.0
        %930 = vmatprep.subr.mxu0 0.0
        %931 = vmatpush1.xpose.msra.mxu0 0.0
        %932 = vmatprep.subr.mxu0 0.0
        %933 = vmatpush1.xpose.msra.mxu0 %v900
        %934 = vmatprep.subr.mxu0 0.0
        %935 = vmatpush2.xpose.msra.mxu0 0.0
        %936 = vmatprep.subr.mxu0 0.0
        %937 = vmatpush2.xpose.msra.mxu0 0.0
        %938 = vmatprep.subr.mxu0 0.0
        %939 = vmatpush2.xpose.msra.mxu0 0.0
        %940 = vmatprep.subr.mxu0 0.0
        %941 = vmatpush2.xpose.msra.mxu0 0.0
        %942 = vmatprep.subr.mxu0 0.0
        %943 = vmatpush2.xpose.msra.mxu0 0.0
        %944 = vmatprep.subr.mxu0 0.0
        %945 = vmatpush2.xpose.msra.mxu0 0.0
        %946 = vmatprep.subr.mxu0 0.0
        %947 = vmatpush2.xpose.msra.mxu0 0.0
        %948 = vmatprep.subr.mxu0 0.0
        %949 = vmatpush2.xpose.msra.mxu0 0.0
        %950 = vmatprep.subr.mxu0 0.0
        %951 = vmatpush2.xpose.msra.mxu0 0.0
        %952 = vmatprep.subr.mxu0 0.0
        %953 = vmatpush2.xpose.msra.mxu0 0.0
        %954 = vmatprep.subr.mxu0 0.0
        %955 = vmatpush2.xpose.msra.mxu0 0.0
        %956 = vmatprep.subr.mxu0 0.0
        %957 = vmatpush2.xpose.msra.mxu0 0.0
        %958 = vmatprep.subr.mxu0 0.0
        %959 = vmatpush2.xpose.msra.mxu0 0.0
        %960 = vmatprep.subr.mxu0 0.0
        %961 = vmatpush2.xpose.msra.mxu0 0.0
        %962 = vmatprep.subr.mxu0 0.0
        %963 = vmatpush2.xpose.msra.mxu0 0.0
        %964 = vmatprep.subr.mxu0 0.0
        %965 = vmatpush2.xpose.msra.mxu0 0.0
        %966 = vmatprep.mubr.f32.mxu0 0.0
        %967 = vmatmul.mubr.f32.gmra.mxu0 %v898
        %v968 = vpop.f32.mrf.mxu0
        %v969 = vadd.f32 0.0, %v968
        %v970 = vpop.f32.mrf.mxu0
        %971 = vdwg.mxu0
        %972 = vrot.lane.b32.xlu0 %v560, 120
        %v973 = vpop.permute.xlu0 %972
        %974 = vrot.lane.b32.xlu0 %v560, 88
        %v975 = vpop.permute.xlu0 %974
        %v976 = vsel %vm566, %v973, 0
        %v978 = vsel %vm566, %v975, 0
        %980 = vmatprep.subr.mxu0 0.0
        %981 = vmatpush1.xpose.msra.mxu0 0.0
        %982 = vmatprep.subr.mxu0 0.0
        %983 = vmatpush1.xpose.msra.mxu0 0.0
        %984 = vmatprep.subr.mxu0 0.0
        %985 = vmatpush1.xpose.msra.mxu0 0.0
        %986 = vmatprep.subr.mxu0 0.0
        %987 = vmatpush1.xpose.msra.mxu0 0.0
        %988 = vmatprep.subr.mxu0 0.0
        %989 = vmatpush1.xpose.msra.mxu0 0.0
        %990 = vmatprep.subr.mxu0 0.0
        %991 = vmatpush1.xpose.msra.mxu0 0.0
        %992 = vmatprep.subr.mxu0 0.0
        %993 = vmatpush1.xpose.msra.mxu0 0.0
        %994 = vmatprep.subr.mxu0 0.0
        %995 = vmatpush1.xpose.msra.mxu0 0.0
        %996 = vmatprep.subr.mxu0 0.0
        %997 = vmatpush1.xpose.msra.mxu0 0.0
        %998 = vmatprep.subr.mxu0 0.0
        %999 = vmatpush1.xpose.msra.mxu0 0.0
        %1000 = vmatprep.subr.mxu0 0.0
        %1001 = vmatpush1.xpose.msra.mxu0 0.0
        %1002 = vmatprep.subr.mxu0 0.0
        %1003 = vmatpush1.xpose.msra.mxu0 0.0
        %1004 = vmatprep.subr.mxu0 0.0
        %1005 = vmatpush1.xpose.msra.mxu0 0.0
        %1006 = vmatprep.subr.mxu0 0.0
        %1007 = vmatpush1.xpose.msra.mxu0 0.0
        %1008 = vmatprep.subr.mxu0 0.0
        %1009 = vmatpush1.xpose.msra.mxu0 0.0
        %1010 = vmatprep.subr.mxu0 0.0
        %1011 = vmatpush1.xpose.msra.mxu0 %v978
        %1012 = vmatprep.subr.mxu0 0.0
        %1013 = vmatpush2.xpose.msra.mxu0 0.0
        %1014 = vmatprep.subr.mxu0 0.0
        %1015 = vmatpush2.xpose.msra.mxu0 0.0
        %1016 = vmatprep.subr.mxu0 0.0
        %1017 = vmatpush2.xpose.msra.mxu0 0.0
        %1018 = vmatprep.subr.mxu0 0.0
        %1019 = vmatpush2.xpose.msra.mxu0 0.0
        %1020 = vmatprep.subr.mxu0 0.0
        %1021 = vmatpush2.xpose.msra.mxu0 0.0
        %1022 = vmatprep.subr.mxu0 0.0
        %1023 = vmatpush2.xpose.msra.mxu0 0.0
        %1024 = vmatprep.subr.mxu0 0.0
        %1025 = vmatpush2.xpose.msra.mxu0 0.0
        %1026 = vmatprep.subr.mxu0 0.0
        %1027 = vmatpush2.xpose.msra.mxu0 0.0
        %1028 = vmatprep.subr.mxu0 0.0
        %1029 = vmatpush2.xpose.msra.mxu0 0.0
        %1030 = vmatprep.subr.mxu0 0.0
        %1031 = vmatpush2.xpose.msra.mxu0 0.0
        %1032 = vmatprep.subr.mxu0 0.0
        %1033 = vmatpush2.xpose.msra.mxu0 0.0
        %1034 = vmatprep.subr.mxu0 0.0
        %1035 = vmatpush2.xpose.msra.mxu0 0.0
        %1036 = vmatprep.subr.mxu0 0.0
        %1037 = vmatpush2.xpose.msra.mxu0 0.0
        %1038 = vmatprep.subr.mxu0 0.0
        %1039 = vmatpush2.xpose.msra.mxu0 0.0
        %1040 = vmatprep.subr.mxu0 0.0
        %1041 = vmatpush2.xpose.msra.mxu0 0.0
        %1042 = vmatprep.subr.mxu0 0.0
        %1043 = vmatpush2.xpose.msra.mxu0 0.0
        %1044 = vmatprep.mubr.f32.mxu0 0.0
        %1045 = vmatmul.mubr.f32.gmra.mxu0 %v976
        %v1046 = vpop.f32.mrf.mxu0
        %v1047 = vadd.f32 0.0, %v1046
        %v1048 = vpop.f32.mrf.mxu0
        %1049 = vdwg.mxu0
        %v1050 = vsel %vm566, %v969, -inf
        %1051 = vmax.xlane.f32.xlu0 %v1050
        %v1052 = vpop.xlane.xlu0 %1051
        %v1053 = vsel %vm566, %v1047, -inf
        %1054 = vmax.xlane.f32.xlu0 %v1053
        %v1055 = vpop.xlane.xlu0 %1054
        %v1056 = vsub.f32 %v969, %v1052
        %v1057 = vsub.f32 %v1047, %v1055
        %v1058 = vmul.f32 %v1056, 1.442695
        %v1059 = vpow.pop %v1058
        %v1060 = vmul.f32 %v1057, 1.442695
        %v1061 = vpow.pop %v1060
        %v1062 = vsel %vm566, %v1059, 0.0
        %1063 = vadd.xlane.f32.xlu0 %v1062
        %v1064 = vpop.xlane.xlu0 %1063
        %v1065 = vsel %vm566, %v1061, 0.0
        %1066 = vadd.xlane.f32.xlu0 %v1065
        %v1067 = vpop.xlane.xlu0 %1066
        %v1068 = vrcp.pop %v1064
        %v1069 = vrcp.pop %v1067
        %v1070 = vmul.f32 %v1059, %v1068
        %v1071 = vmul.f32 %v1061, %v1069
        %1072 = vrot.lane.b32.xlu0 %v555, 56
        %v1073 = vpop.permute.xlu0 %1072
        %v1076 = vsel %vm566, %v1070, 0
        %1078 = vmatprep.subr.mxu0 0.0
        %1079 = vmatpush1.msra.mxu0 0.0
        %1080 = vmatprep.subr.mxu0 0.0
        %1081 = vmatpush1.msra.mxu0 0.0
        %1082 = vmatprep.subr.mxu0 0.0
        %1083 = vmatpush1.msra.mxu0 0.0
        %1084 = vmatprep.subr.mxu0 0.0
        %1085 = vmatpush1.msra.mxu0 0.0
        %1086 = vmatprep.subr.mxu0 0.0
        %1087 = vmatpush1.msra.mxu0 0.0
        %1088 = vmatprep.subr.mxu0 0.0
        %1089 = vmatpush1.msra.mxu0 0.0
        %1090 = vmatprep.subr.mxu0 0.0
        %1091 = vmatpush1.msra.mxu0 0.0
        %1092 = vmatprep.subr.mxu0 0.0
        %1093 = vmatpush1.msra.mxu0 0.0
        %1094 = vmatprep.subr.mxu0 0.0
        %1095 = vmatpush1.msra.mxu0 0.0
        %1096 = vmatprep.subr.mxu0 0.0
        %1097 = vmatpush1.msra.mxu0 0.0
        %1098 = vmatprep.subr.mxu0 0.0
        %1099 = vmatpush1.msra.mxu0 0.0
        %1100 = vmatprep.subr.mxu0 0.0
        %1101 = vmatpush1.msra.mxu0 0.0
        %1102 = vmatprep.subr.mxu0 0.0
        %1103 = vmatpush1.msra.mxu0 0.0
        %1104 = vmatprep.subr.mxu0 0.0
        %1105 = vmatpush1.msra.mxu0 0.0
        %1106 = vmatprep.subr.mxu0 0.0
        %1107 = vmatpush1.msra.mxu0 0.0
        %1108 = vmatprep.subr.mxu0 0.0
        %1109 = vmatpush1.msra.mxu0 %v1073
        %1110 = vmatprep.subr.mxu0 0.0
        %1111 = vmatpush2.msra.mxu0 0.0
        %1112 = vmatprep.subr.mxu0 0.0
        %1113 = vmatpush2.msra.mxu0 0.0
        %1114 = vmatprep.subr.mxu0 0.0
        %1115 = vmatpush2.msra.mxu0 0.0
        %1116 = vmatprep.subr.mxu0 0.0
        %1117 = vmatpush2.msra.mxu0 0.0
        %1118 = vmatprep.subr.mxu0 0.0
        %1119 = vmatpush2.msra.mxu0 0.0
        %1120 = vmatprep.subr.mxu0 0.0
        %1121 = vmatpush2.msra.mxu0 0.0
        %1122 = vmatprep.subr.mxu0 0.0
        %1123 = vmatpush2.msra.mxu0 0.0
        %1124 = vmatprep.subr.mxu0 0.0
        %1125 = vmatpush2.msra.mxu0 0.0
        %1126 = vmatprep.subr.mxu0 0.0
        %1127 = vmatpush2.msra.mxu0 0.0
        %1128 = vmatprep.subr.mxu0 0.0
        %1129 = vmatpush2.msra.mxu0 0.0
        %1130 = vmatprep.subr.mxu0 0.0
        %1131 = vmatpush2.msra.mxu0 0.0
        %1132 = vmatprep.subr.mxu0 0.0
        %1133 = vmatpush2.msra.mxu0 0.0
        %1134 = vmatprep.subr.mxu0 0.0
        %1135 = vmatpush2.msra.mxu0 0.0
        %1136 = vmatprep.subr.mxu0 0.0
        %1137 = vmatpush2.msra.mxu0 0.0
        %1138 = vmatprep.subr.mxu0 0.0
        %1139 = vmatpush2.msra.mxu0 0.0
        %1140 = vmatprep.subr.mxu0 0.0
        %1141 = vmatpush2.msra.mxu0 0.0
        %1142 = vmatprep.mubr.f32.mxu0 0.0
        %1143 = vmatmul.mubr.f32.gmra.mxu0 %v1076
        %v1144 = vpop.f32.mrf.mxu0
        %v1145 = vadd.f32 0.0, %v1144
        %v1146 = vpop.f32.mrf.mxu0
        %1147 = vdwg.mxu0
        %1148 = vrot.lane.b32.xlu0 %v560, 56
        %v1149 = vpop.permute.xlu0 %1148
        %v1152 = vsel %vm566, %v1071, 0
        %1154 = vmatprep.subr.mxu0 0.0
        %1155 = vmatpush1.msra.mxu0 0.0
        %1156 = vmatprep.subr.mxu0 0.0
        %1157 = vmatpush1.msra.mxu0 0.0
        %1158 = vmatprep.subr.mxu0 0.0
        %1159 = vmatpush1.msra.mxu0 0.0
        %1160 = vmatprep.subr.mxu0 0.0
        %1161 = vmatpush1.msra.mxu0 0.0
        %1162 = vmatprep.subr.mxu0 0.0
        %1163 = vmatpush1.msra.mxu0 0.0
        %1164 = vmatprep.subr.mxu0 0.0
        %1165 = vmatpush1.msra.mxu0 0.0
        %1166 = vmatprep.subr.mxu0 0.0
        %1167 = vmatpush1.msra.mxu0 0.0
        %1168 = vmatprep.subr.mxu0 0.0
        %1169 = vmatpush1.msra.mxu0 0.0
        %1170 = vmatprep.subr.mxu0 0.0
        %1171 = vmatpush1.msra.mxu0 0.0
        %1172 = vmatprep.subr.mxu0 0.0
        %1173 = vmatpush1.msra.mxu0 0.0
        %1174 = vmatprep.subr.mxu0 0.0
        %1175 = vmatpush1.msra.mxu0 0.0
        %1176 = vmatprep.subr.mxu0 0.0
        %1177 = vmatpush1.msra.mxu0 0.0
        %1178 = vmatprep.subr.mxu0 0.0
        %1179 = vmatpush1.msra.mxu0 0.0
        %1180 = vmatprep.subr.mxu0 0.0
        %1181 = vmatpush1.msra.mxu0 0.0
        %1182 = vmatprep.subr.mxu0 0.0
        %1183 = vmatpush1.msra.mxu0 0.0
        %1184 = vmatprep.subr.mxu0 0.0
        %1185 = vmatpush1.msra.mxu0 %v1149
        %1186 = vmatprep.subr.mxu0 0.0
        %1187 = vmatpush2.msra.mxu0 0.0
        %1188 = vmatprep.subr.mxu0 0.0
        %1189 = vmatpush2.msra.mxu0 0.0
        %1190 = vmatprep.subr.mxu0 0.0
        %1191 = vmatpush2.msra.mxu0 0.0
        %1192 = vmatprep.subr.mxu0 0.0
        %1193 = vmatpush2.msra.mxu0 0.0
        %1194 = vmatprep.subr.mxu0 0.0
        %1195 = vmatpush2.msra.mxu0 0.0
        %1196 = vmatprep.subr.mxu0 0.0
        %1197 = vmatpush2.msra.mxu0 0.0
        %1198 = vmatprep.subr.mxu0 0.0
        %1199 = vmatpush2.msra.mxu0 0.0
        %1200 = vmatprep.subr.mxu0 0.0
        %1201 = vmatpush2.msra.mxu0 0.0
        %1202 = vmatprep.subr.mxu0 0.0
        %1203 = vmatpush2.msra.mxu0 0.0
        %1204 = vmatprep.subr.mxu0 0.0
        %1205 = vmatpush2.msra.mxu0 0.0
        %1206 = vmatprep.subr.mxu0 0.0
        %1207 = vmatpush2.msra.mxu0 0.0
        %1208 = vmatprep.subr.mxu0 0.0
        %1209 = vmatpush2.msra.mxu0 0.0
        %1210 = vmatprep.subr.mxu0 0.0
        %1211 = vmatpush2.msra.mxu0 0.0
        %1212 = vmatprep.subr.mxu0 0.0
        %1213 = vmatpush2.msra.mxu0 0.0
        %1214 = vmatprep.subr.mxu0 0.0
        %1215 = vmatpush2.msra.mxu0 0.0
        %1216 = vmatprep.subr.mxu0 0.0
        %1217 = vmatpush2.msra.mxu0 0.0
        %1218 = vmatprep.mubr.f32.mxu0 0.0
        %1219 = vmatmul.mubr.f32.gmra.mxu0 %v1152
        %v1220 = vpop.f32.mrf.mxu0
        %v1221 = vadd.f32 0.0, %v1220
        %v1222 = vpop.f32.mrf.mxu0
        %1223 = vdwg.mxu0
        %1226 = vrot.lane.b32.xlu0 %v1145, 8
        %v1227 = vpop.permute.xlu0 %1226
        %1228 = vrot.lane.b32.xlu0 %v1221, 8
        %v1229 = vpop.permute.xlu0 %1228
        %vm1232 = vcmask 130112
        %1233 = vst.msk [vmem:[#allocation2] sm:$0xff] %vm1232, %v1227
        %1234 = vst.msk [vmem:[#allocation2 + $0x8] sm:$0xff] %vm1232, %v1229
        %1235 = vrot.lane.b32.xlu0 %v555, 112
        %v1236 = vpop.permute.xlu0 %1235
        %1237 = vrot.lane.b32.xlu0 %v555, 80
        %v1238 = vpop.permute.xlu0 %1237
        %v1239 = vsel %vm566, %v1236, 0
        %v1241 = vsel %vm566, %v1238, 0
        %1243 = vmatprep.subr.mxu0 0.0
        %1244 = vmatpush1.xpose.msra.mxu0 0.0
        %1245 = vmatprep.subr.mxu0 0.0
        %1246 = vmatpush1.xpose.msra.mxu0 0.0
        %1247 = vmatprep.subr.mxu0 0.0
        %1248 = vmatpush1.xpose.msra.mxu0 0.0
        %1249 = vmatprep.subr.mxu0 0.0
        %1250 = vmatpush1.xpose.msra.mxu0 0.0
        %1251 = vmatprep.subr.mxu0 0.0
        %1252 = vmatpush1.xpose.msra.mxu0 0.0
        %1253 = vmatprep.subr.mxu0 0.0
        %1254 = vmatpush1.xpose.msra.mxu0 0.0
        %1255 = vmatprep.subr.mxu0 0.0
        %1256 = vmatpush1.xpose.msra.mxu0 0.0
        %1257 = vmatprep.subr.mxu0 0.0
        %1258 = vmatpush1.xpose.msra.mxu0 0.0
        %1259 = vmatprep.subr.mxu0 0.0
        %1260 = vmatpush1.xpose.msra.mxu0 0.0
        %1261 = vmatprep.subr.mxu0 0.0
        %1262 = vmatpush1.xpose.msra.mxu0 0.0
        %1263 = vmatprep.subr.mxu0 0.0
        %1264 = vmatpush1.xpose.msra.mxu0 0.0
        %1265 = vmatprep.subr.mxu0 0.0
        %1266 = vmatpush1.xpose.msra.mxu0 0.0
        %1267 = vmatprep.subr.mxu0 0.0
        %1268 = vmatpush1.xpose.msra.mxu0 0.0
        %1269 = vmatprep.subr.mxu0 0.0
        %1270 = vmatpush1.xpose.msra.mxu0 0.0
        %1271 = vmatprep.subr.mxu0 0.0
        %1272 = vmatpush1.xpose.msra.mxu0 0.0
        %1273 = vmatprep.subr.mxu0 0.0
        %1274 = vmatpush1.xpose.msra.mxu0 %v1241
        %1275 = vmatprep.subr.mxu0 0.0
        %1276 = vmatpush2.xpose.msra.mxu0 0.0
        %1277 = vmatprep.subr.mxu0 0.0
        %1278 = vmatpush2.xpose.msra.mxu0 0.0
        %1279 = vmatprep.subr.mxu0 0.0
        %1280 = vmatpush2.xpose.msra.mxu0 0.0
        %1281 = vmatprep.subr.mxu0 0.0
        %1282 = vmatpush2.xpose.msra.mxu0 0.0
        %1283 = vmatprep.subr.mxu0 0.0
        %1284 = vmatpush2.xpose.msra.mxu0 0.0
        %1285 = vmatprep.subr.mxu0 0.0
        %1286 = vmatpush2.xpose.msra.mxu0 0.0
        %1287 = vmatprep.subr.mxu0 0.0
        %1288 = vmatpush2.xpose.msra.mxu0 0.0
        %1289 = vmatprep.subr.mxu0 0.0
        %1290 = vmatpush2.xpose.msra.mxu0 0.0
        %1291 = vmatprep.subr.mxu0 0.0
        %1292 = vmatpush2.xpose.msra.mxu0 0.0
        %1293 = vmatprep.subr.mxu0 0.0
        %1294 = vmatpush2.xpose.msra.mxu0 0.0
        %1295 = vmatprep.subr.mxu0 0.0
        %1296 = vmatpush2.xpose.msra.mxu0 0.0
        %1297 = vmatprep.subr.mxu0 0.0
        %1298 = vmatpush2.xpose.msra.mxu0 0.0
        %1299 = vmatprep.subr.mxu0 0.0
        %1300 = vmatpush2.xpose.msra.mxu0 0.0
        %1301 = vmatprep.subr.mxu0 0.0
        %1302 = vmatpush2.xpose.msra.mxu0 0.0
        %1303 = vmatprep.subr.mxu0 0.0
        %1304 = vmatpush2.xpose.msra.mxu0 0.0
        %1305 = vmatprep.subr.mxu0 0.0
        %1306 = vmatpush2.xpose.msra.mxu0 0.0
        %1307 = vmatprep.mubr.f32.mxu0 0.0
        %1308 = vmatmul.mubr.f32.gmra.mxu0 %v1239
        %v1309 = vpop.f32.mrf.mxu0
        %v1310 = vadd.f32 0.0, %v1309
        %v1311 = vpop.f32.mrf.mxu0
        %1312 = vdwg.mxu0
        %1313 = vrot.lane.b32.xlu0 %v560, 112
        %v1314 = vpop.permute.xlu0 %1313
        %1315 = vrot.lane.b32.xlu0 %v560, 80
        %v1316 = vpop.permute.xlu0 %1315
        %v1317 = vsel %vm566, %v1314, 0
        %v1319 = vsel %vm566, %v1316, 0
        %1321 = vmatprep.subr.mxu0 0.0
        %1322 = vmatpush1.xpose.msra.mxu0 0.0
        %1323 = vmatprep.subr.mxu0 0.0
        %1324 = vmatpush1.xpose.msra.mxu0 0.0
        %1325 = vmatprep.subr.mxu0 0.0
        %1326 = vmatpush1.xpose.msra.mxu0 0.0
        %1327 = vmatprep.subr.mxu0 0.0
        %1328 = vmatpush1.xpose.msra.mxu0 0.0
        %1329 = vmatprep.subr.mxu0 0.0
        %1330 = vmatpush1.xpose.msra.mxu0 0.0
        %1331 = vmatprep.subr.mxu0 0.0
        %1332 = vmatpush1.xpose.msra.mxu0 0.0
        %1333 = vmatprep.subr.mxu0 0.0
        %1334 = vmatpush1.xpose.msra.mxu0 0.0
        %1335 = vmatprep.subr.mxu0 0.0
        %1336 = vmatpush1.xpose.msra.mxu0 0.0
        %1337 = vmatprep.subr.mxu0 0.0
        %1338 = vmatpush1.xpose.msra.mxu0 0.0
        %1339 = vmatprep.subr.mxu0 0.0
        %1340 = vmatpush1.xpose.msra.mxu0 0.0
        %1341 = vmatprep.subr.mxu0 0.0
        %1342 = vmatpush1.xpose.msra.mxu0 0.0
        %1343 = vmatprep.subr.mxu0 0.0
        %1344 = vmatpush1.xpose.msra.mxu0 0.0
        %1345 = vmatprep.subr.mxu0 0.0
        %1346 = vmatpush1.xpose.msra.mxu0 0.0
        %1347 = vmatprep.subr.mxu0 0.0
        %1348 = vmatpush1.xpose.msra.mxu0 0.0
        %1349 = vmatprep.subr.mxu0 0.0
        %1350 = vmatpush1.xpose.msra.mxu0 0.0
        %1351 = vmatprep.subr.mxu0 0.0
        %1352 = vmatpush1.xpose.msra.mxu0 %v1319
        %1353 = vmatprep.subr.mxu0 0.0
        %1354 = vmatpush2.xpose.msra.mxu0 0.0
        %1355 = vmatprep.subr.mxu0 0.0
        %1356 = vmatpush2.xpose.msra.mxu0 0.0
        %1357 = vmatprep.subr.mxu0 0.0
        %1358 = vmatpush2.xpose.msra.mxu0 0.0
        %1359 = vmatprep.subr.mxu0 0.0
        %1360 = vmatpush2.xpose.msra.mxu0 0.0
        %1361 = vmatprep.subr.mxu0 0.0
        %1362 = vmatpush2.xpose.msra.mxu0 0.0
        %1363 = vmatprep.subr.mxu0 0.0
        %1364 = vmatpush2.xpose.msra.mxu0 0.0
        %1365 = vmatprep.subr.mxu0 0.0
        %1366 = vmatpush2.xpose.msra.mxu0 0.0
        %1367 = vmatprep.subr.mxu0 0.0
        %1368 = vmatpush2.xpose.msra.mxu0 0.0
        %1369 = vmatprep.subr.mxu0 0.0
        %1370 = vmatpush2.xpose.msra.mxu0 0.0
        %1371 = vmatprep.subr.mxu0 0.0
        %1372 = vmatpush2.xpose.msra.mxu0 0.0
        %1373 = vmatprep.subr.mxu0 0.0
        %1374 = vmatpush2.xpose.msra.mxu0 0.0
        %1375 = vmatprep.subr.mxu0 0.0
        %1376 = vmatpush2.xpose.msra.mxu0 0.0
        %1377 = vmatprep.subr.mxu0 0.0
        %1378 = vmatpush2.xpose.msra.mxu0 0.0
        %1379 = vmatprep.subr.mxu0 0.0
        %1380 = vmatpush2.xpose.msra.mxu0 0.0
        %1381 = vmatprep.subr.mxu0 0.0
        %1382 = vmatpush2.xpose.msra.mxu0 0.0
        %1383 = vmatprep.subr.mxu0 0.0
        %1384 = vmatpush2.xpose.msra.mxu0 0.0
        %1385 = vmatprep.mubr.f32.mxu0 0.0
        %1386 = vmatmul.mubr.f32.gmra.mxu0 %v1317
        %v1387 = vpop.f32.mrf.mxu0
        %v1388 = vadd.f32 0.0, %v1387
        %v1389 = vpop.f32.mrf.mxu0
        %1390 = vdwg.mxu0
        %v1391 = vsel %vm566, %v1310, -inf
        %1392 = vmax.xlane.f32.xlu0 %v1391
        %v1393 = vpop.xlane.xlu0 %1392
        %v1394 = vsel %vm566, %v1388, -inf
        %1395 = vmax.xlane.f32.xlu0 %v1394
        %v1396 = vpop.xlane.xlu0 %1395
        %v1397 = vsub.f32 %v1310, %v1393
        %v1398 = vsub.f32 %v1388, %v1396
        %v1399 = vmul.f32 %v1397, 1.442695
        %v1400 = vpow.pop %v1399
        %v1401 = vmul.f32 %v1398, 1.442695
        %v1402 = vpow.pop %v1401
        %v1403 = vsel %vm566, %v1400, 0.0
        %1404 = vadd.xlane.f32.xlu0 %v1403
        %v1405 = vpop.xlane.xlu0 %1404
        %v1406 = vsel %vm566, %v1402, 0.0
        %1407 = vadd.xlane.f32.xlu0 %v1406
        %v1408 = vpop.xlane.xlu0 %1407
        %v1409 = vrcp.pop %v1405
        %v1410 = vrcp.pop %v1408
        %v1411 = vmul.f32 %v1400, %v1409
        %v1412 = vmul.f32 %v1402, %v1410
        %1413 = vrot.lane.b32.xlu0 %v555, 48
        %v1414 = vpop.permute.xlu0 %1413
        %v1417 = vsel %vm566, %v1411, 0
        %1419 = vmatprep.subr.mxu0 0.0
        %1420 = vmatpush1.msra.mxu0 0.0
        %1421 = vmatprep.subr.mxu0 0.0
        %1422 = vmatpush1.msra.mxu0 0.0
        %1423 = vmatprep.subr.mxu0 0.0
        %1424 = vmatpush1.msra.mxu0 0.0
        %1425 = vmatprep.subr.mxu0 0.0
        %1426 = vmatpush1.msra.mxu0 0.0
        %1427 = vmatprep.subr.mxu0 0.0
        %1428 = vmatpush1.msra.mxu0 0.0
        %1429 = vmatprep.subr.mxu0 0.0
        %1430 = vmatpush1.msra.mxu0 0.0
        %1431 = vmatprep.subr.mxu0 0.0
        %1432 = vmatpush1.msra.mxu0 0.0
        %1433 = vmatprep.subr.mxu0 0.0
        %1434 = vmatpush1.msra.mxu0 0.0
        %1435 = vmatprep.subr.mxu0 0.0
        %1436 = vmatpush1.msra.mxu0 0.0
        %1437 = vmatprep.subr.mxu0 0.0
        %1438 = vmatpush1.msra.mxu0 0.0
        %1439 = vmatprep.subr.mxu0 0.0
        %1440 = vmatpush1.msra.mxu0 0.0
        %1441 = vmatprep.subr.mxu0 0.0
        %1442 = vmatpush1.msra.mxu0 0.0
        %1443 = vmatprep.subr.mxu0 0.0
        %1444 = vmatpush1.msra.mxu0 0.0
        %1445 = vmatprep.subr.mxu0 0.0
        %1446 = vmatpush1.msra.mxu0 0.0
        %1447 = vmatprep.subr.mxu0 0.0
        %1448 = vmatpush1.msra.mxu0 0.0
        %1449 = vmatprep.subr.mxu0 0.0
        %1450 = vmatpush1.msra.mxu0 %v1414
        %1451 = vmatprep.subr.mxu0 0.0
        %1452 = vmatpush2.msra.mxu0 0.0
        %1453 = vmatprep.subr.mxu0 0.0
        %1454 = vmatpush2.msra.mxu0 0.0
        %1455 = vmatprep.subr.mxu0 0.0
        %1456 = vmatpush2.msra.mxu0 0.0
        %1457 = vmatprep.subr.mxu0 0.0
        %1458 = vmatpush2.msra.mxu0 0.0
        %1459 = vmatprep.subr.mxu0 0.0
        %1460 = vmatpush2.msra.mxu0 0.0
        %1461 = vmatprep.subr.mxu0 0.0
        %1462 = vmatpush2.msra.mxu0 0.0
        %1463 = vmatprep.subr.mxu0 0.0
        %1464 = vmatpush2.msra.mxu0 0.0
        %1465 = vmatprep.subr.mxu0 0.0
        %1466 = vmatpush2.msra.mxu0 0.0
        %1467 = vmatprep.subr.mxu0 0.0
        %1468 = vmatpush2.msra.mxu0 0.0
        %1469 = vmatprep.subr.mxu0 0.0
        %1470 = vmatpush2.msra.mxu0 0.0
        %1471 = vmatprep.subr.mxu0 0.0
        %1472 = vmatpush2.msra.mxu0 0.0
        %1473 = vmatprep.subr.mxu0 0.0
        %1474 = vmatpush2.msra.mxu0 0.0
        %1475 = vmatprep.subr.mxu0 0.0
        %1476 = vmatpush2.msra.mxu0 0.0
        %1477 = vmatprep.subr.mxu0 0.0
        %1478 = vmatpush2.msra.mxu0 0.0
        %1479 = vmatprep.subr.mxu0 0.0
        %1480 = vmatpush2.msra.mxu0 0.0
        %1481 = vmatprep.subr.mxu0 0.0
        %1482 = vmatpush2.msra.mxu0 0.0
        %1483 = vmatprep.mubr.f32.mxu0 0.0
        %1484 = vmatmul.mubr.f32.gmra.mxu0 %v1417
        %v1485 = vpop.f32.mrf.mxu0
        %v1486 = vadd.f32 0.0, %v1485
        %v1487 = vpop.f32.mrf.mxu0
        %1488 = vdwg.mxu0
        %1489 = vrot.lane.b32.xlu0 %v560, 48
        %v1490 = vpop.permute.xlu0 %1489
        %v1493 = vsel %vm566, %v1412, 0
        %1495 = vmatprep.subr.mxu0 0.0
        %1496 = vmatpush1.msra.mxu0 0.0
        %1497 = vmatprep.subr.mxu0 0.0
        %1498 = vmatpush1.msra.mxu0 0.0
        %1499 = vmatprep.subr.mxu0 0.0
        %1500 = vmatpush1.msra.mxu0 0.0
        %1501 = vmatprep.subr.mxu0 0.0
        %1502 = vmatpush1.msra.mxu0 0.0
        %1503 = vmatprep.subr.mxu0 0.0
        %1504 = vmatpush1.msra.mxu0 0.0
        %1505 = vmatprep.subr.mxu0 0.0
        %1506 = vmatpush1.msra.mxu0 0.0
        %1507 = vmatprep.subr.mxu0 0.0
        %1508 = vmatpush1.msra.mxu0 0.0
        %1509 = vmatprep.subr.mxu0 0.0
        %1510 = vmatpush1.msra.mxu0 0.0
        %1511 = vmatprep.subr.mxu0 0.0
        %1512 = vmatpush1.msra.mxu0 0.0
        %1513 = vmatprep.subr.mxu0 0.0
        %1514 = vmatpush1.msra.mxu0 0.0
        %1515 = vmatprep.subr.mxu0 0.0
        %1516 = vmatpush1.msra.mxu0 0.0
        %1517 = vmatprep.subr.mxu0 0.0
        %1518 = vmatpush1.msra.mxu0 0.0
        %1519 = vmatprep.subr.mxu0 0.0
        %1520 = vmatpush1.msra.mxu0 0.0
        %1521 = vmatprep.subr.mxu0 0.0
        %1522 = vmatpush1.msra.mxu0 0.0
        %1523 = vmatprep.subr.mxu0 0.0
        %1524 = vmatpush1.msra.mxu0 0.0
        %1525 = vmatprep.subr.mxu0 0.0
        %1526 = vmatpush1.msra.mxu0 %v1490
        %1527 = vmatprep.subr.mxu0 0.0
        %1528 = vmatpush2.msra.mxu0 0.0
        %1529 = vmatprep.subr.mxu0 0.0
        %1530 = vmatpush2.msra.mxu0 0.0
        %1531 = vmatprep.subr.mxu0 0.0
        %1532 = vmatpush2.msra.mxu0 0.0
        %1533 = vmatprep.subr.mxu0 0.0
        %1534 = vmatpush2.msra.mxu0 0.0
        %1535 = vmatprep.subr.mxu0 0.0
        %1536 = vmatpush2.msra.mxu0 0.0
        %1537 = vmatprep.subr.mxu0 0.0
        %1538 = vmatpush2.msra.mxu0 0.0
        %1539 = vmatprep.subr.mxu0 0.0
        %1540 = vmatpush2.msra.mxu0 0.0
        %1541 = vmatprep.subr.mxu0 0.0
        %1542 = vmatpush2.msra.mxu0 0.0
        %1543 = vmatprep.subr.mxu0 0.0
        %1544 = vmatpush2.msra.mxu0 0.0
        %1545 = vmatprep.subr.mxu0 0.0
        %1546 = vmatpush2.msra.mxu0 0.0
        %1547 = vmatprep.subr.mxu0 0.0
        %1548 = vmatpush2.msra.mxu0 0.0
        %1549 = vmatprep.subr.mxu0 0.0
        %1550 = vmatpush2.msra.mxu0 0.0
        %1551 = vmatprep.subr.mxu0 0.0
        %1552 = vmatpush2.msra.mxu0 0.0
        %1553 = vmatprep.subr.mxu0 0.0
        %1554 = vmatpush2.msra.mxu0 0.0
        %1555 = vmatprep.subr.mxu0 0.0
        %1556 = vmatpush2.msra.mxu0 0.0
        %1557 = vmatprep.subr.mxu0 0.0
        %1558 = vmatpush2.msra.mxu0 0.0
        %1559 = vmatprep.mubr.f32.mxu0 0.0
        %1560 = vmatmul.mubr.f32.gmra.mxu0 %v1493
        %v1561 = vpop.f32.mrf.mxu0
        %v1562 = vadd.f32 0.0, %v1561
        %v1563 = vpop.f32.mrf.mxu0
        %1564 = vdwg.mxu0
        %1567 = vrot.lane.b32.xlu0 %v1486, 16
        %v1568 = vpop.permute.xlu0 %1567
        %1569 = vrot.lane.b32.xlu0 %v1562, 16
        %v1570 = vpop.permute.xlu0 %1569
        %vm1573 = vcmask 195712
        %1574 = vst.msk [vmem:[#allocation2] sm:$0xff] %vm1573, %v1568
        %1575 = vst.msk [vmem:[#allocation2 + $0x8] sm:$0xff] %vm1573, %v1570
        %1576 = vrot.lane.b32.xlu0 %v555, 104
        %v1577 = vpop.permute.xlu0 %1576
        %1578 = vrot.lane.b32.xlu0 %v555, 72
        %v1579 = vpop.permute.xlu0 %1578
        %v1580 = vsel %vm566, %v1577, 0
        %v1582 = vsel %vm566, %v1579, 0
        %1584 = vmatprep.subr.mxu0 0.0
        %1585 = vmatpush1.xpose.msra.mxu0 0.0
        %1586 = vmatprep.subr.mxu0 0.0
        %1587 = vmatpush1.xpose.msra.mxu0 0.0
        %1588 = vmatprep.subr.mxu0 0.0
        %1589 = vmatpush1.xpose.msra.mxu0 0.0
        %1590 = vmatprep.subr.mxu0 0.0
        %1591 = vmatpush1.xpose.msra.mxu0 0.0
        %1592 = vmatprep.subr.mxu0 0.0
        %1593 = vmatpush1.xpose.msra.mxu0 0.0
        %1594 = vmatprep.subr.mxu0 0.0
        %1595 = vmatpush1.xpose.msra.mxu0 0.0
        %1596 = vmatprep.subr.mxu0 0.0
        %1597 = vmatpush1.xpose.msra.mxu0 0.0
        %1598 = vmatprep.subr.mxu0 0.0
        %1599 = vmatpush1.xpose.msra.mxu0 0.0
        %1600 = vmatprep.subr.mxu0 0.0
        %1601 = vmatpush1.xpose.msra.mxu0 0.0
        %1602 = vmatprep.subr.mxu0 0.0
        %1603 = vmatpush1.xpose.msra.mxu0 0.0
        %1604 = vmatprep.subr.mxu0 0.0
        %1605 = vmatpush1.xpose.msra.mxu0 0.0
        %1606 = vmatprep.subr.mxu0 0.0
        %1607 = vmatpush1.xpose.msra.mxu0 0.0
        %1608 = vmatprep.subr.mxu0 0.0
        %1609 = vmatpush1.xpose.msra.mxu0 0.0
        %1610 = vmatprep.subr.mxu0 0.0
        %1611 = vmatpush1.xpose.msra.mxu0 0.0
        %1612 = vmatprep.subr.mxu0 0.0
        %1613 = vmatpush1.xpose.msra.mxu0 0.0
        %1614 = vmatprep.subr.mxu0 0.0
        %1615 = vmatpush1.xpose.msra.mxu0 %v1582
        %1616 = vmatprep.subr.mxu0 0.0
        %1617 = vmatpush2.xpose.msra.mxu0 0.0
        %1618 = vmatprep.subr.mxu0 0.0
        %1619 = vmatpush2.xpose.msra.mxu0 0.0
        %1620 = vmatprep.subr.mxu0 0.0
        %1621 = vmatpush2.xpose.msra.mxu0 0.0
        %1622 = vmatprep.subr.mxu0 0.0
        %1623 = vmatpush2.xpose.msra.mxu0 0.0
        %1624 = vmatprep.subr.mxu0 0.0
        %1625 = vmatpush2.xpose.msra.mxu0 0.0
        %1626 = vmatprep.subr.mxu0 0.0
        %1627 = vmatpush2.xpose.msra.mxu0 0.0
        %1628 = vmatprep.subr.mxu0 0.0
        %1629 = vmatpush2.xpose.msra.mxu0 0.0
        %1630 = vmatprep.subr.mxu0 0.0
        %1631 = vmatpush2.xpose.msra.mxu0 0.0
        %1632 = vmatprep.subr.mxu0 0.0
        %1633 = vmatpush2.xpose.msra.mxu0 0.0
        %1634 = vmatprep.subr.mxu0 0.0
        %1635 = vmatpush2.xpose.msra.mxu0 0.0
        %1636 = vmatprep.subr.mxu0 0.0
        %1637 = vmatpush2.xpose.msra.mxu0 0.0
        %1638 = vmatprep.subr.mxu0 0.0
        %1639 = vmatpush2.xpose.msra.mxu0 0.0
        %1640 = vmatprep.subr.mxu0 0.0
        %1641 = vmatpush2.xpose.msra.mxu0 0.0
        %1642 = vmatprep.subr.mxu0 0.0
        %1643 = vmatpush2.xpose.msra.mxu0 0.0
        %1644 = vmatprep.subr.mxu0 0.0
        %1645 = vmatpush2.xpose.msra.mxu0 0.0
        %1646 = vmatprep.subr.mxu0 0.0
        %1647 = vmatpush2.xpose.msra.mxu0 0.0
        %1648 = vmatprep.mubr.f32.mxu0 0.0
        %1649 = vmatmul.mubr.f32.gmra.mxu0 %v1580
        %v1650 = vpop.f32.mrf.mxu0
        %v1651 = vadd.f32 0.0, %v1650
        %v1652 = vpop.f32.mrf.mxu0
        %1653 = vdwg.mxu0
        %1654 = vrot.lane.b32.xlu0 %v560, 104
        %v1655 = vpop.permute.xlu0 %1654
        %1656 = vrot.lane.b32.xlu0 %v560, 72
        %v1657 = vpop.permute.xlu0 %1656
        %v1658 = vsel %vm566, %v1655, 0
        %v1660 = vsel %vm566, %v1657, 0
        %1662 = vmatprep.subr.mxu0 0.0
        %1663 = vmatpush1.xpose.msra.mxu0 0.0
        %1664 = vmatprep.subr.mxu0 0.0
        %1665 = vmatpush1.xpose.msra.mxu0 0.0
        %1666 = vmatprep.subr.mxu0 0.0
        %1667 = vmatpush1.xpose.msra.mxu0 0.0
        %1668 = vmatprep.subr.mxu0 0.0
        %1669 = vmatpush1.xpose.msra.mxu0 0.0
        %1670 = vmatprep.subr.mxu0 0.0
        %1671 = vmatpush1.xpose.msra.mxu0 0.0
        %1672 = vmatprep.subr.mxu0 0.0
        %1673 = vmatpush1.xpose.msra.mxu0 0.0
        %1674 = vmatprep.subr.mxu0 0.0
        %1675 = vmatpush1.xpose.msra.mxu0 0.0
        %1676 = vmatprep.subr.mxu0 0.0
        %1677 = vmatpush1.xpose.msra.mxu0 0.0
        %1678 = vmatprep.subr.mxu0 0.0
        %1679 = vmatpush1.xpose.msra.mxu0 0.0
        %1680 = vmatprep.subr.mxu0 0.0
        %1681 = vmatpush1.xpose.msra.mxu0 0.0
        %1682 = vmatprep.subr.mxu0 0.0
        %1683 = vmatpush1.xpose.msra.mxu0 0.0
        %1684 = vmatprep.subr.mxu0 0.0
        %1685 = vmatpush1.xpose.msra.mxu0 0.0
        %1686 = vmatprep.subr.mxu0 0.0
        %1687 = vmatpush1.xpose.msra.mxu0 0.0
        %1688 = vmatprep.subr.mxu0 0.0
        %1689 = vmatpush1.xpose.msra.mxu0 0.0
        %1690 = vmatprep.subr.mxu0 0.0
        %1691 = vmatpush1.xpose.msra.mxu0 0.0
        %1692 = vmatprep.subr.mxu0 0.0
        %1693 = vmatpush1.xpose.msra.mxu0 %v1660
        %1694 = vmatprep.subr.mxu0 0.0
        %1695 = vmatpush2.xpose.msra.mxu0 0.0
        %1696 = vmatprep.subr.mxu0 0.0
        %1697 = vmatpush2.xpose.msra.mxu0 0.0
        %1698 = vmatprep.subr.mxu0 0.0
        %1699 = vmatpush2.xpose.msra.mxu0 0.0
        %1700 = vmatprep.subr.mxu0 0.0
        %1701 = vmatpush2.xpose.msra.mxu0 0.0
        %1702 = vmatprep.subr.mxu0 0.0
        %1703 = vmatpush2.xpose.msra.mxu0 0.0
        %1704 = vmatprep.subr.mxu0 0.0
        %1705 = vmatpush2.xpose.msra.mxu0 0.0
        %1706 = vmatprep.subr.mxu0 0.0
        %1707 = vmatpush2.xpose.msra.mxu0 0.0
        %1708 = vmatprep.subr.mxu0 0.0
        %1709 = vmatpush2.xpose.msra.mxu0 0.0
        %1710 = vmatprep.subr.mxu0 0.0
        %1711 = vmatpush2.xpose.msra.mxu0 0.0
        %1712 = vmatprep.subr.mxu0 0.0
        %1713 = vmatpush2.xpose.msra.mxu0 0.0
        %1714 = vmatprep.subr.mxu0 0.0
        %1715 = vmatpush2.xpose.msra.mxu0 0.0
        %1716 = vmatprep.subr.mxu0 0.0
        %1717 = vmatpush2.xpose.msra.mxu0 0.0
        %1718 = vmatprep.subr.mxu0 0.0
        %1719 = vmatpush2.xpose.msra.mxu0 0.0
        %1720 = vmatprep.subr.mxu0 0.0
        %1721 = vmatpush2.xpose.msra.mxu0 0.0
        %1722 = vmatprep.subr.mxu0 0.0
        %1723 = vmatpush2.xpose.msra.mxu0 0.0
        %1724 = vmatprep.subr.mxu0 0.0
        %1725 = vmatpush2.xpose.msra.mxu0 0.0
        %1726 = vmatprep.mubr.f32.mxu0 0.0
        %1727 = vmatmul.mubr.f32.gmra.mxu0 %v1658
        %v1728 = vpop.f32.mrf.mxu0
        %v1729 = vadd.f32 0.0, %v1728
        %v1730 = vpop.f32.mrf.mxu0
        %1731 = vdwg.mxu0
        %v1732 = vsel %vm566, %v1651, -inf
        %1733 = vmax.xlane.f32.xlu0 %v1732
        %v1734 = vpop.xlane.xlu0 %1733
        %v1735 = vsel %vm566, %v1729, -inf
        %1736 = vmax.xlane.f32.xlu0 %v1735
        %v1737 = vpop.xlane.xlu0 %1736
        %v1738 = vsub.f32 %v1651, %v1734
        %v1739 = vsub.f32 %v1729, %v1737
        %v1740 = vmul.f32 %v1738, 1.442695
        %v1741 = vpow.pop %v1740
        %v1742 = vmul.f32 %v1739, 1.442695
        %v1743 = vpow.pop %v1742
        %v1744 = vsel %vm566, %v1741, 0.0
        %1745 = vadd.xlane.f32.xlu0 %v1744
        %v1746 = vpop.xlane.xlu0 %1745
        %v1747 = vsel %vm566, %v1743, 0.0
        %1748 = vadd.xlane.f32.xlu0 %v1747
        %v1749 = vpop.xlane.xlu0 %1748
        %v1750 = vrcp.pop %v1746
        %v1751 = vrcp.pop %v1749
        %v1752 = vmul.f32 %v1741, %v1750
        %v1753 = vmul.f32 %v1743, %v1751
        %1754 = vrot.lane.b32.xlu0 %v555, 40
        %v1755 = vpop.permute.xlu0 %1754
        %v1758 = vsel %vm566, %v1752, 0
        %1760 = vmatprep.subr.mxu0 0.0
        %1761 = vmatpush1.msra.mxu0 0.0
        %1762 = vmatprep.subr.mxu0 0.0
        %1763 = vmatpush1.msra.mxu0 0.0
        %1764 = vmatprep.subr.mxu0 0.0
        %1765 = vmatpush1.msra.mxu0 0.0
        %1766 = vmatprep.subr.mxu0 0.0
        %1767 = vmatpush1.msra.mxu0 0.0
        %1768 = vmatprep.subr.mxu0 0.0
        %1769 = vmatpush1.msra.mxu0 0.0
        %1770 = vmatprep.subr.mxu0 0.0
        %1771 = vmatpush1.msra.mxu0 0.0
        %1772 = vmatprep.subr.mxu0 0.0
        %1773 = vmatpush1.msra.mxu0 0.0
        %1774 = vmatprep.subr.mxu0 0.0
        %1775 = vmatpush1.msra.mxu0 0.0
        %1776 = vmatprep.subr.mxu0 0.0
        %1777 = vmatpush1.msra.mxu0 0.0
        %1778 = vmatprep.subr.mxu0 0.0
        %1779 = vmatpush1.msra.mxu0 0.0
        %1780 = vmatprep.subr.mxu0 0.0
        %1781 = vmatpush1.msra.mxu0 0.0
        %1782 = vmatprep.subr.mxu0 0.0
        %1783 = vmatpush1.msra.mxu0 0.0
        %1784 = vmatprep.subr.mxu0 0.0
        %1785 = vmatpush1.msra.mxu0 0.0
        %1786 = vmatprep.subr.mxu0 0.0
        %1787 = vmatpush1.msra.mxu0 0.0
        %1788 = vmatprep.subr.mxu0 0.0
        %1789 = vmatpush1.msra.mxu0 0.0
        %1790 = vmatprep.subr.mxu0 0.0
        %1791 = vmatpush1.msra.mxu0 %v1755
        %1792 = vmatprep.subr.mxu0 0.0
        %1793 = vmatpush2.msra.mxu0 0.0
        %1794 = vmatprep.subr.mxu0 0.0
        %1795 = vmatpush2.msra.mxu0 0.0
        %1796 = vmatprep.subr.mxu0 0.0
        %1797 = vmatpush2.msra.mxu0 0.0
        %1798 = vmatprep.subr.mxu0 0.0
        %1799 = vmatpush2.msra.mxu0 0.0
        %1800 = vmatprep.subr.mxu0 0.0
        %1801 = vmatpush2.msra.mxu0 0.0
        %1802 = vmatprep.subr.mxu0 0.0
        %1803 = vmatpush2.msra.mxu0 0.0
        %1804 = vmatprep.subr.mxu0 0.0
        %1805 = vmatpush2.msra.mxu0 0.0
        %1806 = vmatprep.subr.mxu0 0.0
        %1807 = vmatpush2.msra.mxu0 0.0
        %1808 = vmatprep.subr.mxu0 0.0
        %1809 = vmatpush2.msra.mxu0 0.0
        %1810 = vmatprep.subr.mxu0 0.0
        %1811 = vmatpush2.msra.mxu0 0.0
        %1812 = vmatprep.subr.mxu0 0.0
        %1813 = vmatpush2.msra.mxu0 0.0
        %1814 = vmatprep.subr.mxu0 0.0
        %1815 = vmatpush2.msra.mxu0 0.0
        %1816 = vmatprep.subr.mxu0 0.0
        %1817 = vmatpush2.msra.mxu0 0.0
        %1818 = vmatprep.subr.mxu0 0.0
        %1819 = vmatpush2.msra.mxu0 0.0
        %1820 = vmatprep.subr.mxu0 0.0
        %1821 = vmatpush2.msra.mxu0 0.0
        %1822 = vmatprep.subr.mxu0 0.0
        %1823 = vmatpush2.msra.mxu0 0.0
        %1824 = vmatprep.mubr.f32.mxu0 0.0
        %1825 = vmatmul.mubr.f32.gmra.mxu0 %v1758
        %v1826 = vpop.f32.mrf.mxu0
        %v1827 = vadd.f32 0.0, %v1826
        %v1828 = vpop.f32.mrf.mxu0
        %1829 = vdwg.mxu0
        %1830 = vrot.lane.b32.xlu0 %v560, 40
        %v1831 = vpop.permute.xlu0 %1830
        %v1834 = vsel %vm566, %v1753, 0
        %1836 = vmatprep.subr.mxu0 0.0
        %1837 = vmatpush1.msra.mxu0 0.0
        %1838 = vmatprep.subr.mxu0 0.0
        %1839 = vmatpush1.msra.mxu0 0.0
        %1840 = vmatprep.subr.mxu0 0.0
        %1841 = vmatpush1.msra.mxu0 0.0
        %1842 = vmatprep.subr.mxu0 0.0
        %1843 = vmatpush1.msra.mxu0 0.0
        %1844 = vmatprep.subr.mxu0 0.0
        %1845 = vmatpush1.msra.mxu0 0.0
        %1846 = vmatprep.subr.mxu0 0.0
        %1847 = vmatpush1.msra.mxu0 0.0
        %1848 = vmatprep.subr.mxu0 0.0
        %1849 = vmatpush1.msra.mxu0 0.0
        %1850 = vmatprep.subr.mxu0 0.0
        %1851 = vmatpush1.msra.mxu0 0.0
        %1852 = vmatprep.subr.mxu0 0.0
        %1853 = vmatpush1.msra.mxu0 0.0
        %1854 = vmatprep.subr.mxu0 0.0
        %1855 = vmatpush1.msra.mxu0 0.0
        %1856 = vmatprep.subr.mxu0 0.0
        %1857 = vmatpush1.msra.mxu0 0.0
        %1858 = vmatprep.subr.mxu0 0.0
        %1859 = vmatpush1.msra.mxu0 0.0
        %1860 = vmatprep.subr.mxu0 0.0
        %1861 = vmatpush1.msra.mxu0 0.0
        %1862 = vmatprep.subr.mxu0 0.0
        %1863 = vmatpush1.msra.mxu0 0.0
        %1864 = vmatprep.subr.mxu0 0.0
        %1865 = vmatpush1.msra.mxu0 0.0
        %1866 = vmatprep.subr.mxu0 0.0
        %1867 = vmatpush1.msra.mxu0 %v1831
        %1868 = vmatprep.subr.mxu0 0.0
        %1869 = vmatpush2.msra.mxu0 0.0
        %1870 = vmatprep.subr.mxu0 0.0
        %1871 = vmatpush2.msra.mxu0 0.0
        %1872 = vmatprep.subr.mxu0 0.0
        %1873 = vmatpush2.msra.mxu0 0.0
        %1874 = vmatprep.subr.mxu0 0.0
        %1875 = vmatpush2.msra.mxu0 0.0
        %1876 = vmatprep.subr.mxu0 0.0
        %1877 = vmatpush2.msra.mxu0 0.0
        %1878 = vmatprep.subr.mxu0 0.0
        %1879 = vmatpush2.msra.mxu0 0.0
        %1880 = vmatprep.subr.mxu0 0.0
        %1881 = vmatpush2.msra.mxu0 0.0
        %1882 = vmatprep.subr.mxu0 0.0
        %1883 = vmatpush2.msra.mxu0 0.0
        %1884 = vmatprep.subr.mxu0 0.0
        %1885 = vmatpush2.msra.mxu0 0.0
        %1886 = vmatprep.subr.mxu0 0.0
        %1887 = vmatpush2.msra.mxu0 0.0
        %1888 = vmatprep.subr.mxu0 0.0
        %1889 = vmatpush2.msra.mxu0 0.0
        %1890 = vmatprep.subr.mxu0 0.0
        %1891 = vmatpush2.msra.mxu0 0.0
        %1892 = vmatprep.subr.mxu0 0.0
        %1893 = vmatpush2.msra.mxu0 0.0
        %1894 = vmatprep.subr.mxu0 0.0
        %1895 = vmatpush2.msra.mxu0 0.0
        %1896 = vmatprep.subr.mxu0 0.0
        %1897 = vmatpush2.msra.mxu0 0.0
        %1898 = vmatprep.subr.mxu0 0.0
        %1899 = vmatpush2.msra.mxu0 0.0
        %1900 = vmatprep.mubr.f32.mxu0 0.0
        %1901 = vmatmul.mubr.f32.gmra.mxu0 %v1834
        %v1902 = vpop.f32.mrf.mxu0
        %v1903 = vadd.f32 0.0, %v1902
        %v1904 = vpop.f32.mrf.mxu0
        %1905 = vdwg.mxu0
        %1908 = vrot.lane.b32.xlu0 %v1827, 24
        %v1909 = vpop.permute.xlu0 %1908
        %1910 = vrot.lane.b32.xlu0 %v1903, 24
        %v1911 = vpop.permute.xlu0 %1910
        %vm1914 = vcmask 261312
        %1915 = vst.msk [vmem:[#allocation2] sm:$0xff] %vm1914, %v1909
        %1916 = vst.msk [vmem:[#allocation2 + $0x8] sm:$0xff] %vm1914, %v1911
        %v1917 = vld [vmem:[#allocation2] sm:$0xff]
        %v1918 = vld [vmem:[#allocation2 + $0x8] sm:$0xff]
        %v1919 = vld [vmem:[%s4] sm:$0xff]
        %v1920 = vld [vmem:[%s4 + $0x8] sm:$0xff]
        %v1921 = vld [vmem:[%s4 + $0x10] sm:$0xff]
        %v1922 = vld [vmem:[%s4 + $0x18] sm:$0xff]
        %v1923 = vld [vmem:[%s5] sm:$0x1]
        %v1925 = vlaneseq
        %v1926 = vshrl.u32 %v1925, 7
        %v1927 = vsub.s32 0, %v1926
        %v1928 = vrot.slane %v1923, %v1927
        %v1931 = vsel %vm434, %v1917, 0
        %v1934 = vsel %vm434, %v1918, 0
        %1936 = vmatprep.subr.mxu0 0.0
        %1937 = vmatpush1.msra.mxu0 0.0
        %1938 = vmatprep.subr.mxu0 0.0
        %1939 = vmatpush1.msra.mxu0 0.0
        %1940 = vmatprep.subr.mxu0 0.0
        %1941 = vmatpush1.msra.mxu0 0.0
        %1942 = vmatprep.subr.mxu0 0.0
        %1943 = vmatpush1.msra.mxu0 0.0
        %1944 = vmatprep.subr.mxu0 0.0
        %1945 = vmatpush1.msra.mxu0 0.0
        %1946 = vmatprep.subr.mxu0 0.0
        %1947 = vmatpush1.msra.mxu0 0.0
        %1948 = vmatprep.subr.mxu0 0.0
        %1949 = vmatpush1.msra.mxu0 0.0
        %1950 = vmatprep.subr.mxu0 0.0
        %1951 = vmatpush1.msra.mxu0 0.0
        %1952 = vmatprep.subr.mxu0 0.0
        %1953 = vmatpush1.msra.mxu0 0.0
        %1954 = vmatprep.subr.mxu0 0.0
        %1955 = vmatpush1.msra.mxu0 0.0
        %1956 = vmatprep.subr.mxu0 0.0
        %1957 = vmatpush1.msra.mxu0 0.0
        %1958 = vmatprep.subr.mxu0 0.0
        %1959 = vmatpush1.msra.mxu0 0.0
        %1960 = vmatprep.subr.mxu0 0.0
        %1961 = vmatpush1.msra.mxu0 %v1922
        %1962 = vmatprep.subr.mxu0 0.0
        %1963 = vmatpush1.msra.mxu0 %v1921
        %1964 = vmatprep.subr.mxu0 0.0
        %1965 = vmatpush1.msra.mxu0 %v1920
        %1966 = vmatprep.subr.mxu0 0.0
        %1967 = vmatpush1.msra.mxu0 %v1919
        %1968 = vmatprep.subr.mxu0 0.0
        %1969 = vmatpush2.msra.mxu0 0.0
        %1970 = vmatprep.subr.mxu0 0.0
        %1971 = vmatpush2.msra.mxu0 0.0
        %1972 = vmatprep.subr.mxu0 0.0
        %1973 = vmatpush2.msra.mxu0 0.0
        %1974 = vmatprep.subr.mxu0 0.0
        %1975 = vmatpush2.msra.mxu0 0.0
        %1976 = vmatprep.subr.mxu0 0.0
        %1977 = vmatpush2.msra.mxu0 0.0
        %1978 = vmatprep.subr.mxu0 0.0
        %1979 = vmatpush2.msra.mxu0 0.0
        %1980 = vmatprep.subr.mxu0 0.0
        %1981 = vmatpush2.msra.mxu0 0.0
        %1982 = vmatprep.subr.mxu0 0.0
        %1983 = vmatpush2.msra.mxu0 0.0
        %1984 = vmatprep.subr.mxu0 0.0
        %1985 = vmatpush2.msra.mxu0 0.0
        %1986 = vmatprep.subr.mxu0 0.0
        %1987 = vmatpush2.msra.mxu0 0.0
        %1988 = vmatprep.subr.mxu0 0.0
        %1989 = vmatpush2.msra.mxu0 0.0
        %1990 = vmatprep.subr.mxu0 0.0
        %1991 = vmatpush2.msra.mxu0 0.0
        %1992 = vmatprep.subr.mxu0 0.0
        %1993 = vmatpush2.msra.mxu0 0.0
        %1994 = vmatprep.subr.mxu0 0.0
        %1995 = vmatpush2.msra.mxu0 0.0
        %1996 = vmatprep.subr.mxu0 0.0
        %1997 = vmatpush2.msra.mxu0 0.0
        %1998 = vmatprep.subr.mxu0 0.0
        %1999 = vmatpush2.msra.mxu0 0.0
        %2000 = vmatprep.mubr.f32.mxu0 0.0
        %2001 = vmatmul.mubr.f32.gmra.mxu0 %v1931
        %v2002 = vpop.f32.mrf.mxu0
        %v2003 = vadd.f32 %v1928, %v2002
        %v2004 = vpop.f32.mrf.mxu0
        %2005 = vmatprep.mubr.f32.mxu0 0.0
        %2006 = vmatmul.mubr.f32.gmra.mxu0 %v1934
        %v2007 = vpop.f32.mrf.mxu0
        %v2008 = vadd.f32 %v1928, %v2007
        %v2009 = vpop.f32.mrf.mxu0
        %2010 = vdwg.mxu0
        %v2011 = vadd.f32 %v430, %v2003
        %v2012 = vadd.f32 %v431, %v2008
        %v2013 = vld [vmem:[%s6] sm:$0x1]
        %v2014 = vld [vmem:[%s7] sm:$0x1]
        %v2015 = vsel %vm434, %v2011, 0.0
        %2016 = vadd.xlane.f32.xlu0 %v2015
        %v2017 = vpop.xlane.xlu0 %2016
        %v2018 = vsel %vm434, %v2012, 0.0
        %2019 = vadd.xlane.f32.xlu0 %v2018
        %v2020 = vpop.xlane.xlu0 %2019
        %v2021 = vmul.f32 %v2017, %v441
        %v2022 = vmul.f32 %v2020, %v441
        %v2023 = vsub.f32 %v2011, %v2021
        %v2024 = vsub.f32 %v2012, %v2022
        %v2025 = vmul.f32 %v2023, %v2023
        %v2026 = vmul.f32 %v2024, %v2024
        %v2027 = vsel %vm434, %v2025, 0.0
        %2028 = vadd.xlane.f32.xlu0 %v2027
        %v2029 = vpop.xlane.xlu0 %2028
        %v2030 = vsel %vm434, %v2026, 0.0
        %2031 = vadd.xlane.f32.xlu0 %v2030
        %v2032 = vpop.xlane.xlu0 %2031
        %v2033 = vmul.f32 %v2029, %v441
        %v2034 = vmul.f32 %v2032, %v441
        %v2035 = vadd.f32 %v2033, 1e-05
        %v2036 = vadd.f32 %v2034, 1e-05
        %v2037 = vrsqrt.pop %v2035
        %v2038 = vrsqrt.pop %v2036
        %v2039 = vmul.f32 %v2023, %v2037
        %v2040 = vmul.f32 %v2024, %v2038
        %v2042 = vlaneseq
        %v2043 = vshrl.u32 %v2042, 7
        %v2044 = vsub.s32 0, %v2043
        %v2045 = vrot.slane %v2013, %v2044
        %v2047 = vmul.f32 %v2039, %v2045
        %v2048 = vmul.f32 %v2040, %v2045
        %v2050 = vlaneseq
        %v2051 = vshrl.u32 %v2050, 7
        %v2052 = vsub.s32 0, %v2051
        %v2053 = vrot.slane %v2014, %v2052
        %v2055 = vadd.f32 %v2047, %v2053
        %v2056 = vadd.f32 %v2048, %v2053
        %v2057 = vld [vmem:[#allocation3] sm:$0xff]
        %v2058 = vld [vmem:[#allocation3 + $0x8] sm:$0xff]
        %v2059 = vld [vmem:[#allocation3 + $0x10] sm:$0xff]
        %v2060 = vld [vmem:[#allocation3 + $0x18] sm:$0xff]
        %v2061 = vld [vmem:[%s9] sm:$0x1]
        %v2063 = vlaneseq
        %v2064 = vshrl.u32 %v2063, 7
        %v2065 = vsub.s32 0, %v2064
        %v2066 = vrot.slane %v2061, %v2065
        %v2069 = vsel %vm434, %v2055, 0
        %v2072 = vsel %vm434, %v2056, 0
        %2074 = vmatprep.subr.mxu0 0.0
        %2075 = vmatpush1.msra.mxu0 0.0
        %2076 = vmatprep.subr.mxu0 0.0
        %2077 = vmatpush1.msra.mxu0 0.0
        %2078 = vmatprep.subr.mxu0 0.0
        %2079 = vmatpush1.msra.mxu0 0.0
        %2080 = vmatprep.subr.mxu0 0.0
        %2081 = vmatpush1.msra.mxu0 0.0
        %2082 = vmatprep.subr.mxu0 0.0
        %2083 = vmatpush1.msra.mxu0 0.0
        %2084 = vmatprep.subr.mxu0 0.0
        %2085 = vmatpush1.msra.mxu0 0.0
        %2086 = vmatprep.subr.mxu0 0.0
        %2087 = vmatpush1.msra.mxu0 0.0
        %2088 = vmatprep.subr.mxu0 0.0
        %2089 = vmatpush1.msra.mxu0 0.0
        %2090 = vmatprep.subr.mxu0 0.0
        %2091 = vmatpush1.msra.mxu0 0.0
        %2092 = vmatprep.subr.mxu0 0.0
        %2093 = vmatpush1.msra.mxu0 0.0
        %2094 = vmatprep.subr.mxu0 0.0
        %2095 = vmatpush1.msra.mxu0 0.0
        %2096 = vmatprep.subr.mxu0 0.0
        %2097 = vmatpush1.msra.mxu0 0.0
        %2098 = vmatprep.subr.mxu0 0.0
        %2099 = vmatpush1.msra.mxu0 %v2060
        %2100 = vmatprep.subr.mxu0 0.0
        %2101 = vmatpush1.msra.mxu0 %v2059
        %2102 = vmatprep.subr.mxu0 0.0
        %2103 = vmatpush1.msra.mxu0 %v2058
        %2104 = vmatprep.subr.mxu0 0.0
        %2105 = vmatpush1.msra.mxu0 %v2057
        %2106 = vmatprep.subr.mxu0 0.0
        %2107 = vmatpush2.msra.mxu0 0.0
        %2108 = vmatprep.subr.mxu0 0.0
        %2109 = vmatpush2.msra.mxu0 0.0
        %2110 = vmatprep.subr.mxu0 0.0
        %2111 = vmatpush2.msra.mxu0 0.0
        %2112 = vmatprep.subr.mxu0 0.0
        %2113 = vmatpush2.msra.mxu0 0.0
        %2114 = vmatprep.subr.mxu0 0.0
        %2115 = vmatpush2.msra.mxu0 0.0
        %2116 = vmatprep.subr.mxu0 0.0
        %2117 = vmatpush2.msra.mxu0 0.0
        %2118 = vmatprep.subr.mxu0 0.0
        %2119 = vmatpush2.msra.mxu0 0.0
        %2120 = vmatprep.subr.mxu0 0.0
        %2121 = vmatpush2.msra.mxu0 0.0
        %2122 = vmatprep.subr.mxu0 0.0
        %2123 = vmatpush2.msra.mxu0 0.0
        %2124 = vmatprep.subr.mxu0 0.0
        %2125 = vmatpush2.msra.mxu0 0.0
        %2126 = vmatprep.subr.mxu0 0.0
        %2127 = vmatpush2.msra.mxu0 0.0
        %2128 = vmatprep.subr.mxu0 0.0
        %2129 = vmatpush2.msra.mxu0 0.0
        %2130 = vmatprep.subr.mxu0 0.0
        %2131 = vmatpush2.msra.mxu0 0.0
        %2132 = vmatprep.subr.mxu0 0.0
        %2133 = vmatpush2.msra.mxu0 0.0
        %2134 = vmatprep.subr.mxu0 0.0
        %2135 = vmatpush2.msra.mxu0 0.0
        %2136 = vmatprep.subr.mxu0 0.0
        %2137 = vmatpush2.msra.mxu0 0.0
        %2138 = vmatprep.mubr.f32.mxu0 0.0
        %2139 = vmatmul.mubr.f32.gmra.mxu0 %v2069
        %v2140 = vpop.f32.mrf.mxu0
        %v2141 = vadd.f32 %v2066, %v2140
        %v2142 = vpop.f32.mrf.mxu0
        %2143 = vmatprep.mubr.f32.mxu0 0.0
        %2144 = vmatmul.mubr.f32.gmra.mxu0 %v2072
        %v2145 = vpop.f32.mrf.mxu0
        %v2146 = vadd.f32 %v2066, %v2145
        %v2147 = vpop.f32.mrf.mxu0
        %2148 = vdwg.mxu0
        %v2149 = vmul.f32 %v2141, 0.5
        %v2150 = vmul.f32 %v2146, 0.5
        %v2151 = vmul.f32 %v2141, 0.70710677
        %v2152 = vmul.f32 %v2146, 0.70710677
        %v2153 = verf.f32.pop %v2151
        %v2154 = verf.f32.pop %v2152
        %v2155 = vadd.f32 %v2153, 1.0
        %v2156 = vadd.f32 %v2154, 1.0
        %v2157 = vmul.f32 %v2149, %v2155
        %v2158 = vmul.f32 %v2150, %v2156
        %v2159 = vld [vmem:[%s10] sm:$0xff]
        %v2160 = vld [vmem:[%s10 + $0x8] sm:$0xff]
        %v2161 = vld [vmem:[%s10 + $0x10] sm:$0xff]
        %v2162 = vld [vmem:[%s10 + $0x18] sm:$0xff]
        %v2163 = vld [vmem:[%s10 + $0x20] sm:$0xff]
        %v2164 = vld [vmem:[%s10 + $0x28] sm:$0xff]
        %v2165 = vld [vmem:[%s10 + $0x30] sm:$0xff]
        %v2166 = vld [vmem:[%s10 + $0x38] sm:$0xff]
        %v2167 = vld [vmem:[%s11] sm:$0x1]
        %v2169 = vlaneseq
        %v2170 = vshrl.u32 %v2169, 7
        %v2171 = vsub.s32 0, %v2170
        %v2172 = vrot.slane %v2167, %v2171
        %vm2174 = vcmask 523264
        %v2176 = vsel %vm2174, %v2157, 0
        %v2179 = vsel %vm2174, %v2158, 0
        %2181 = vmatprep.subr.mxu0 0.0
        %2182 = vmatpush1.msra.mxu0 0.0
        %2183 = vmatprep.subr.mxu0 0.0
        %2184 = vmatpush1.msra.mxu0 0.0
        %2185 = vmatprep.subr.mxu0 0.0
        %2186 = vmatpush1.msra.mxu0 0.0
        %2187 = vmatprep.subr.mxu0 0.0
        %2188 = vmatpush1.msra.mxu0 0.0
        %2189 = vmatprep.subr.mxu0 0.0
        %2190 = vmatpush1.msra.mxu0 0.0
        %2191 = vmatprep.subr.mxu0 0.0
        %2192 = vmatpush1.msra.mxu0 0.0
        %2193 = vmatprep.subr.mxu0 0.0
        %2194 = vmatpush1.msra.mxu0 0.0
        %2195 = vmatprep.subr.mxu0 0.0
        %2196 = vmatpush1.msra.mxu0 0.0
        %2197 = vmatprep.subr.mxu0 0.0
        %2198 = vmatpush1.msra.mxu0 %v2166
        %2199 = vmatprep.subr.mxu0 0.0
        %2200 = vmatpush1.msra.mxu0 %v2165
        %2201 = vmatprep.subr.mxu0 0.0
        %2202 = vmatpush1.msra.mxu0 %v2164
        %2203 = vmatprep.subr.mxu0 0.0
        %2204 = vmatpush1.msra.mxu0 %v2163
        %2205 = vmatprep.subr.mxu0 0.0
        %2206 = vmatpush1.msra.mxu0 %v2162
        %2207 = vmatprep.subr.mxu0 0.0
        %2208 = vmatpush1.msra.mxu0 %v2161
        %2209 = vmatprep.subr.mxu0 0.0
        %2210 = vmatpush1.msra.mxu0 %v2160
        %2211 = vmatprep.subr.mxu0 0.0
        %2212 = vmatpush1.msra.mxu0 %v2159
        %2213 = vmatprep.subr.mxu0 0.0
        %2214 = vmatpush2.msra.mxu0 0.0
        %2215 = vmatprep.subr.mxu0 0.0
        %2216 = vmatpush2.msra.mxu0 0.0
        %2217 = vmatprep.subr.mxu0 0.0
        %2218 = vmatpush2.msra.mxu0 0.0
        %2219 = vmatprep.subr.mxu0 0.0
        %2220 = vmatpush2.msra.mxu0 0.0
        %2221 = vmatprep.subr.mxu0 0.0
        %2222 = vmatpush2.msra.mxu0 0.0
        %2223 = vmatprep.subr.mxu0 0.0
        %2224 = vmatpush2.msra.mxu0 0.0
        %2225 = vmatprep.subr.mxu0 0.0
        %2226 = vmatpush2.msra.mxu0 0.0
        %2227 = vmatprep.subr.mxu0 0.0
        %2228 = vmatpush2.msra.mxu0 0.0
        %2229 = vmatprep.subr.mxu0 0.0
        %2230 = vmatpush2.msra.mxu0 0.0
        %2231 = vmatprep.subr.mxu0 0.0
        %2232 = vmatpush2.msra.mxu0 0.0
        %2233 = vmatprep.subr.mxu0 0.0
        %2234 = vmatpush2.msra.mxu0 0.0
        %2235 = vmatprep.subr.mxu0 0.0
        %2236 = vmatpush2.msra.mxu0 0.0
        %2237 = vmatprep.subr.mxu0 0.0
        %2238 = vmatpush2.msra.mxu0 0.0
        %2239 = vmatprep.subr.mxu0 0.0
        %2240 = vmatpush2.msra.mxu0 0.0
        %2241 = vmatprep.subr.mxu0 0.0
        %2242 = vmatpush2.msra.mxu0 0.0
        %2243 = vmatprep.subr.mxu0 0.0
        %2244 = vmatpush2.msra.mxu0 0.0
        %2245 = vmatprep.mubr.f32.mxu0 0.0
        %2246 = vmatmul.mubr.f32.gmra.mxu0 %v2176
        %v2247 = vpop.f32.mrf.mxu0
        %v2248 = vadd.f32 %v2172, %v2247
        %v2249 = vpop.f32.mrf.mxu0
        %2250 = vmatprep.mubr.f32.mxu0 0.0
        %2251 = vmatmul.mubr.f32.gmra.mxu0 %v2179
        %v2252 = vpop.f32.mrf.mxu0
        %v2253 = vadd.f32 %v2172, %v2252
        %v2254 = vpop.f32.mrf.mxu0
        %2255 = vdwg.mxu0
        %v2256 = vadd.f32 %v2011, %v2248
        %v2257 = vadd.f32 %v2012, %v2253
        %2258 = vst.msk [vmem:[%s422] sm:$0xff] %vm434, %v2256
        %2259 = vst.msk [vmem:[%s422 + $0x8] sm:$0xff] %vm434, %v2257
        %s2260 = sand.u32 %s292, 1
        %s2261 = scalar_lea.sflag [#allocation5], %s2260
        %s2262 = sand.u32 %s292, 1
        %s2263 = smul.addr %s2262, 16
        %s2264 = scalar_lea.vmem [#allocation6], %s2263
        // Predicated region
        $region73: #{tpu_custom_call.1} parent=67 // pred_check
          %p2265 = pneg %p302
        $region74: #{tpu_custom_call.1} parent=67 // pred_check_branch
          %2267 = sbr.rel (%p2265) target = $region76
        $region75: #{tpu_custom_call.1} parent=67 // pred_region
          %s2268 = smul.u32 2, %s27
          %s2270 = ssub.s32 256, 256
          %2271 = vsyncadd %s2261, %s2270
          %s2272 = smul.addr %s2268, 128
          %s2273 = scalar_lea.hbm %s12, %s2272
          %s2274 = sshll.u32 %s2264, 4
          %s2275 = int_to_ptr.vmem [resolvable:$true] %s2274
          %2280 = dma.vmem_to_hbm [thread:$0]  %s2275, 256, %s2273, %s2261, 128, 128, 8
        $region76: #{tpu_custom_call.1} parent=67 // pred_fallthru
          _
      $region68: #{tpu_custom_call.1} parent=5 // pred_fallthru
        _
      %p2281 = scmp.le.s32.totalorder 2, %s22
      // Predicated region
      $region77: #{tpu_custom_call.1} parent=5 // pred_check
        %p2282 = pneg %p2281
      $region78: #{tpu_custom_call.1} parent=5 // pred_check_branch
        %2284 = sbr.rel (%p2282) target = $region80
      $region79: #{tpu_custom_call.1} parent=5 // pred_region
        %s2285 = ssub.s32 %s22, 2
        // Predicated region
        $region81: #{tpu_custom_call.1} parent=79 // pred_check
          %p2286 = pneg %p308
        $region82: #{tpu_custom_call.1} parent=79 // pred_check_branch
          %2288 = sbr.rel (%p2286) target = $region84
        $region83: #{tpu_custom_call.1} parent=79 // pred_region
          %s2289 = sand.u32 %s293, 1
          %s2290 = scalar_lea.sflag [#allocation5], %s2289
          %s2291 = sand.u32 %s293, 1
          %s2292 = smul.addr %s2291, 16
          %s2293 = scalar_lea.vmem [#allocation6], %s2292
          %2294 = dma.done %s2290, 256
        $region84: #{tpu_custom_call.1} parent=79 // pred_fallthru
          _
      $region80: #{tpu_custom_call.1} parent=5 // pred_fallthru
        _
    $region6: #{tpu_custom_call.1} parent=1 // loop_footer
      %s26 = sadd.s32 1, %s22
    $region7: #{tpu_custom_call.1} parent=1 // loop_footer_branch
      %21 = sbr.rel target = $region3
    $region8: #{tpu_custom_call.1} parent=1 // loop_exit
      _
    %2295 = vsyncpa [#allocation4], 1
    %s2296 = scalar_lea.sflag [#allocation4], 1
    %2297 = vsyncpa %s2296, 1
    %2298 = vsyncpa [#allocation5], 1
    %s2299 = scalar_lea.sflag [#allocation5], 1
    %2300 = vsyncpa %s2299, 1

</llo_original>
